<compile_context>
chip_gen: v5e
topology: v5e:2x2
jax: 0.10.0
libtpu: 0.0.40
codegen_flags: <defaults>
</compile_context>

<pallas_src>
import functools

import jax
import jax.numpy as jnp
from jax.experimental import pallas as pl
from jax.experimental.pallas import tpu as pltpu


def _round_up(n, m):
    return ((n + m - 1) // m) * m


def _cdiv(a, b):
    return -(-a // b)


# -----------------------------------------------------------------------------
# Generation-aware knobs
# -----------------------------------------------------------------------------
def _tpu_knobs():
    vmem_bytes = 128 * 1024 * 1024
    try:
        vmem_bytes = int(pltpu.get_tpu_info().vmem_capacity_bytes)
    except Exception:
        pass
    kind = ""
    try:
        kind = jax.devices()[0].device_kind.lower()
    except Exception:
        pass
    small_vmem = vmem_bytes <= 64 * 1024 * 1024          # v7x-class: 64 MiB per TC
    is_v7 = small_vmem or ("v7" in kind)
    is_v5 = ("v5" in kind) and not is_v7
    if small_vmem:
        vmem_limit = 48 * 1024 * 1024                    # leave headroom out of 64 MiB
    else:
        vmem_limit = 100 * 1024 * 1024                   # v5e / v6e: 128 MiB physical
    return {
        "vmem_limit": vmem_limit,
        "b_tile_cap": 128 if is_v5 else 256,             # v5e MXU is 128x128
        "two_core": is_v7,                               # v7x: 2 TensorCores / chip
    }


def _pick_batch_tiling(bs, knobs):
    """Returns (B_padded, b_tile); b_tile divides B_padded, multiple of 8."""
    bs_p = _round_up(max(bs, 1), 8)
    # On v7x make sure there are >=2 batch tiles (when batch allows) so the
    # "parallel" grid axis actually shards across the two TensorCores.
    n_min = 2 if (knobs["two_core"] and bs_p >= 16) else 1
    b_tile = min(knobs["b_tile_cap"], _round_up(_cdiv(bs_p, n_min), 8))
    n_b = _cdiv(bs_p, b_tile)
    return n_b * b_tile, b_tile


def _pick_time_chunk(seq, b_tile, layer_dims, vmem_limit):
    """Largest multiple-of-8 time chunk whose per-call VMEM footprint fits the budget.

    layer_dims: list of (in_pad, h_pad) per layer.
    """
    budget = int(vmem_limit * 0.7)                       # headroom for compiler scratch
    max_chunk = min(128, _round_up(seq, 8))
    best = 8
    for cand in range(8, max_chunk + 1, 8):
        worst = 0
        for in_p, hp in layer_dims:
            fh = 4 * hp
            # projection pass: 2x bf16 x-blocks, 2x f32 gx-out blocks, single W_ih copy
            proj = (2 * cand * b_tile * in_p * 2
                    + 2 * cand * b_tile * fh * 4
                    + in_p * fh * 2 + 2 * fh * 4)
            # recurrence pass: 2x f32 gx blocks, 2x bf16 hseq blocks, single W_hh copy,
            # f32 h/c carries and h_T/c_T output blocks
            rec = (2 * cand * b_tile * fh * 4
                   + 2 * cand * b_tile * hp * 2
                   + hp * fh * 2 + 6 * b_tile * hp * 4)
            worst = max(worst, proj, rec)
        if worst <= budget:
            best = cand
        else:
            break
    return best


# -----------------------------------------------------------------------------
# Kernels
# -----------------------------------------------------------------------------
def _input_proj_kernel(x_ref, wih_hbm, b_ref, gx_ref, w_sc, sem):
    """gx = x @ W_ih + b for one (time_chunk, batch_tile) block.

    x_ref : (T, BT, In_p)   bf16 (time-major)
    wih_hbm: (In_p, 4*H_p)  bf16, left in HBM; copied once per batch tile into w_sc
    b_ref : (1, 4*H_p)      f32
    gx_ref: (T, BT, 4*H_p)  f32
    """
    ti = pl.program_id(1)

    @pl.when(ti == 0)
    def _():
        cp = pltpu.make_async_copy(wih_hbm, w_sc, sem.at[0])
        cp.start()
        cp.wait()

    tc, bt, in_p = x_ref.shape
    four_h = w_sc.shape[1]
    # leading-dim collapse (T, BT, In) -> (T*BT, In): BT is a multiple of 8 and In_p a
    # multiple of 128, so this is layout-friendly; one big MXU GEMM per chunk.
    x2d = x_ref[...].reshape(tc * bt, in_p)
    gx = jnp.dot(x2d, w_sc[...], preferred_element_type=jnp.float32) + b_ref[...]
    gx_ref[...] = gx.reshape(tc, bt, four_h)


def _recurrence_kernel(gx_ref, whh_hbm, hseq_ref, hlast_ref, clast_ref,
                       w_sc, h_sc, c_sc, sem,
                       *, t_chunk, hidden_pad, seq_len):
    """Serial LSTM recurrence over one time chunk for one batch tile.

    gx_ref   : (T, BT, 4*H_p) f32   precomputed x@W_ih + b
    whh_hbm  : (H_p, 4*H_p)   bf16  HBM; copied once per batch tile into w_sc
    hseq_ref : (T, BT, H_p)   bf16  time-major hidden outputs
    hlast_ref/clast_ref : (BT, H_p) f32 final h / c (block pinned along time axis)
    h_sc/c_sc: (BT, H_p)      f32   recurrence carries across time chunks
    """
    ti = pl.program_id(1)
    hp = hidden_pad

    @pl.when(ti == 0)
    def _():
        cp = pltpu.make_async_copy(whh_hbm, w_sc, sem.at[0])
        cp.start()
        cp.wait()
        h_sc[...] = jnp.zeros_like(h_sc)
        c_sc[...] = jnp.zeros_like(c_sc)

    h = h_sc[...]
    c = c_sc[...]

    mask_needed = (seq_len % t_chunk) != 0         # static: only the padded tail chunk
    base_t = ti * t_chunk if mask_needed else None

    def _sigmoid(x):                                # one EUP op instead of exp + recip
        return 0.5 * (jnp.tanh(0.5 * x) + 1.0)

    for tt in range(t_chunk):                       # statically unrolled
        gates = gx_ref[tt] + jnp.dot(h.astype(jnp.bfloat16), w_sc[...],
                                     preferred_element_type=jnp.float32)
        i_t = _sigmoid(gates[:, 0 * hp:1 * hp])
        f_t = _sigmoid(gates[:, 1 * hp:2 * hp])
        g_t = jnp.tanh(gates[:, 2 * hp:3 * hp])
        o_t = _sigmoid(gates[:, 3 * hp:4 * hp])
        c_new = f_t * c + i_t * g_t
        h_new = o_t * jnp.tanh(c_new)
        if mask_needed:
            valid = (base_t + tt) < seq_len         # freeze h/c past the real sequence
            c = jnp.where(valid, c_new, c)
            h = jnp.where(valid, h_new, h)
        else:
            c = c_new
            h = h_new
        # full (BT, H_p) lane-dense store per timestep (time-major layout)
        hseq_ref[tt] = h.astype(hseq_ref.dtype)

    h_sc[...] = h
    c_sc[...] = c
    # written every chunk (cheap) so the pinned output block is never uninitialized;
    # the value after the last chunk is the real (h_T, c_T).
    hlast_ref[...] = h
    clast_ref[...] = c


# -----------------------------------------------------------------------------
# pallas_call wrappers
# -----------------------------------------------------------------------------
def _input_projection(x_p, w_ih_p, b_p, *, t_chunk, b_tile, vmem_limit):
    s_p, bs_p, in_p = x_p.shape
    four_h = w_ih_p.shape[1]
    n_b = bs_p // b_tile
    n_t = s_p // t_chunk
    return pl.pallas_call(
        _input_proj_kernel,
        out_shape=jax.ShapeDtypeStruct((s_p, bs_p, four_h), jnp.float32),
        grid_spec=pltpu.PrefetchScalarGridSpec(
            num_scalar_prefetch=0,
            grid=(n_b, n_t),
            in_specs=[
                pl.BlockSpec((t_chunk, b_tile, in_p), lambda bi, ti: (ti, bi, 0)),
                pl.BlockSpec(memory_space=pl.ANY),              # W_ih stays in HBM
                pl.BlockSpec((1, four_h), lambda bi, ti: (0, 0)),
            ],
            out_specs=pl.BlockSpec((t_chunk, b_tile, four_h),
                                   lambda bi, ti: (ti, bi, 0)),
            scratch_shapes=[
                pltpu.VMEM((in_p, four_h), jnp.bfloat16),       # single resident W_ih
                pltpu.SemaphoreType.DMA((1,)),
            ],
        ),
        compiler_params=pltpu.CompilerParams(
            dimension_semantics=("parallel", "arbitrary"),
            vmem_limit_bytes=vmem_limit,
        ),
    )(x_p, w_ih_p, b_p)


def _lstm_recurrence(gx, w_hh_p, *, t_chunk, b_tile, hidden_pad, seq_len, vmem_limit):
    s_p, bs_p, four_h = gx.shape
    hp = hidden_pad
    n_b = bs_p // b_tile
    n_t = s_p // t_chunk
    kernel = functools.partial(_recurrence_kernel, t_chunk=t_chunk,
                               hidden_pad=hp, seq_len=seq_len)
    return pl.pallas_call(
        kernel,
        out_shape=(
            jax.ShapeDtypeStruct((s_p, bs_p, hp), jnp.bfloat16),   # hseq (time-major)
            jax.ShapeDtypeStruct((bs_p, hp), jnp.float32),          # h_T
            jax.ShapeDtypeStruct((bs_p, hp), jnp.float32),          # c_T
        ),
        grid_spec=pltpu.PrefetchScalarGridSpec(
            num_scalar_prefetch=0,
            grid=(n_b, n_t),
            in_specs=[
                pl.BlockSpec((t_chunk, b_tile, four_h), lambda bi, ti: (ti, bi, 0)),
                pl.BlockSpec(memory_space=pl.ANY),              # W_hh stays in HBM
            ],
            out_specs=[
                pl.BlockSpec((t_chunk, b_tile, hp), lambda bi, ti: (ti, bi, 0)),
                pl.BlockSpec((b_tile, hp), lambda bi, ti: (bi, 0)),
                pl.BlockSpec((b_tile, hp), lambda bi, ti: (bi, 0)),
            ],
            scratch_shapes=[
                pltpu.VMEM((hp, four_h), jnp.bfloat16),         # single resident W_hh
                pltpu.VMEM((b_tile, hp), jnp.float32),          # h carry
                pltpu.VMEM((b_tile, hp), jnp.float32),          # c carry
                pltpu.SemaphoreType.DMA((1,)),
            ],
        ),
        compiler_params=pltpu.CompilerParams(
            dimension_semantics=("parallel", "arbitrary"),
            vmem_limit_bytes=vmem_limit,
        ),
    )(gx, w_hh_p)


# -----------------------------------------------------------------------------
# Weight padding helpers (each gate slot widened to H_p lanes)
# -----------------------------------------------------------------------------
def _pad_gate_weight(w, in_dim, hidden, in_pad, h_pad):
    """(in_dim, 4*hidden) -> (in_pad, 4*h_pad)."""
    wp = jnp.zeros((in_pad, 4 * h_pad), w.dtype)
    for k in range(4):
        wp = wp.at[:in_dim, k * h_pad:k * h_pad + hidden].set(
            w[:, k * hidden:(k + 1) * hidden])
    return wp


def _pad_gate_bias(b, hidden, h_pad):
    bp = jnp.zeros((4 * h_pad,), jnp.float32)
    for k in range(4):
        bp = bp.at[k * h_pad:k * h_pad + hidden].set(
            b[k * hidden:(k + 1) * hidden].astype(jnp.float32))
    return bp.reshape(1, 4 * h_pad)


# -----------------------------------------------------------------------------
# StackedLSTM forward
# -----------------------------------------------------------------------------
def stacked_lstm(x, params):
    """Mirrors StackedLSTM.forward.

    x: (B, S, input_dim) f32; params: list of (w_ih (In,4H), w_hh (H,4H), b (4H,)).
    Returns (layer_output_list, last_state_list) with the same nesting as torch.
    """
    bs, seq, in_dim = x.shape
    knobs = _tpu_knobs()
    bs_p, b_tile = _pick_batch_tiling(bs, knobs)

    h_dims = [w_hh.shape[0] for (_, w_hh, _) in params]
    h_pads = [_round_up(hd, 128) for hd in h_dims]
    in_dims = [in_dim] + h_dims[:-1]
    in_pads = [_round_up(in_dim, 128)] + h_pads[:-1]

    t_chunk = _pick_time_chunk(seq, b_tile, list(zip(in_pads, h_pads)),
                               knobs["vmem_limit"])
    s_p = _round_up(seq, t_chunk)

    # Time-major, padded, bf16 activations: (S_p, B_p, In_p).  Padded hidden lanes /
    # batch rows stay exactly zero through every layer, so layers chain directly.
    x_p = jnp.zeros((s_p, bs_p, in_pads[0]), jnp.bfloat16)
    x_p = x_p.at[:seq, :bs, :in_dim].set(
        jnp.transpose(x, (1, 0, 2)).astype(jnp.bfloat16))

    hseq_p = hlast_p = clast_p = None
    hd = None
    cur = x_p
    for li, (w_ih, w_hh, b) in enumerate(params):
        hd = h_dims[li]
        h_pad = h_pads[li]
        w_ih_p = _pad_gate_weight(w_ih, in_dims[li], hd,
                                  in_pads[li], h_pad).astype(jnp.bfloat16)
        w_hh_p = _pad_gate_weight(w_hh, hd, hd, h_pad, h_pad).astype(jnp.bfloat16)
        b_p = _pad_gate_bias(b, hd, h_pad)

        gx = _input_projection(cur, w_ih_p, b_p, t_chunk=t_chunk, b_tile=b_tile,
                               vmem_limit=knobs["vmem_limit"])
        hseq_p, hlast_p, clast_p = _lstm_recurrence(
            gx, w_hh_p, t_chunk=t_chunk, b_tile=b_tile, hidden_pad=h_pad,
            seq_len=seq, vmem_limit=knobs["vmem_limit"])
        cur = hseq_p                                # bf16 padded activations feed next layer

    hseq = jnp.transpose(hseq_p[:seq, :bs, :hd], (1, 0, 2)).astype(jnp.float32)
    h_t = hlast_p[:bs, :hd]                         # (B, H_last) f32
    c_t = clast_p[:bs, :hd]                         # (B, H_last) f32

    layer_output = hseq[:, :, None, :]              # (B, S, 1, H) == torch stack of (B,1,H)
    h_final_call = hseq[:, -1:, :]                  # hidden_seq of the last per-step call
    layer_output_list = [layer_output]
    last_state_list = [[h_final_call, (h_t, c_t)]]
    return layer_output_list, last_state_list


# -----------------------------------------------------------------------------
# Params / reference / demo
# -----------------------------------------------------------------------------
def _xavier_uniform(key, shape):
    bound = (6.0 / (shape[0] + shape[1])) ** 0.5
    return jax.random.uniform(key, shape, jnp.float32, minval=-bound, maxval=bound)


def init_params(key, input_dim, hidden_dims):
    params = []
    for i, hd in enumerate(hidden_dims):
        cur_in = input_dim if i == 0 else hidden_dims[i - 1]
        key, k1, k2 = jax.random.split(key, 3)
        w_ih = _xavier_uniform(k1, (cur_in, 4 * hd))
        w_hh = _xavier_uniform(k2, (hd, 4 * hd))
        b = jnp.zeros((4 * hd,), jnp.float32)
        params.append((w_ih, w_hh, b))
    return params


def _reference_stacked_lstm(x, params):
    """Pure-JAX f32 reference for correctness checking."""
    for (w_ih, w_hh, b) in params:
        bs, seq, _ = x.shape
        hs = w_hh.shape[0]
        h = jnp.zeros((bs, hs), jnp.float32)
        c = jnp.zeros((bs, hs), jnp.float32)
        outs = []
        for t in range(seq):
            gates = x[:, t, :] @ w_ih + h @ w_hh + b
            i_t = jax.nn.sigmoid(gates[:, :hs])
            f_t = jax.nn.sigmoid(gates[:, hs:2 * hs])
            g_t = jnp.tanh(gates[:, 2 * hs:3 * hs])
            o_t = jax.nn.sigmoid(gates[:, 3 * hs:])
            c = f_t * c + i_t * g_t
            h = o_t * jnp.tanh(c)
            outs.append(h)
        x = jnp.stack(outs, axis=1)
    return x, h, c


if __name__ == "__main__":
    key = jax.random.PRNGKey(0)
    batch, seq, input_dim = 2, 8, 16
    hidden_dims = [32, 32]                           # num_layers = 2

    kx, kp = jax.random.split(key)
    x = jax.random.normal(kx, (batch, seq, input_dim), jnp.float32)
    params = init_params(kp, input_dim, hidden_dims)

    forward = jax.jit(stacked_lstm)
    layer_output_list, last_state_list = forward(x, params)
    layer_output = jax.block_until_ready(layer_output_list[0])
    h_call, (h_t, c_t) = last_state_list[0][0], last_state_list[0][1]
    jax.block_until_ready((h_call, h_t, c_t))

    assert layer_output.shape == (batch, seq, 1, hidden_dims[-1])
    assert h_call.shape == (batch, 1, hidden_dims[-1])
    assert h_t.shape == (batch, hidden_dims[-1])
    assert c_t.shape == (batch, hidden_dims[-1])

    ref_seq, ref_h, ref_c = _reference_stacked_lstm(x, params)
    # bf16 MXU operands + bf16 inter-layer activations (f32 accumulation / gate math)
    # -> relaxed tolerance.
    assert jnp.allclose(layer_output[:, :, 0, :], ref_seq, atol=3e-2, rtol=3e-2)
    assert jnp.allclose(h_t, ref_h, atol=3e-2, rtol=3e-2)
    assert jnp.allclose(c_t, ref_c, atol=3e-2, rtol=3e-2)

    print("KERNEL_OK")
</pallas_src>

<mosaic_0001>
module attributes {stable_mosaic.version = 11 : i64} {
  func.func @_input_proj_kernel(%arg0: i32, %arg1: i32, %arg2: memref<8x8x128xbf16, #tpu.memory_space<vmem>>, %arg3: memref<128x512xbf16, #tpu.memory_space<any>>, %arg4: memref<1x512xf32, #tpu.memory_space<vmem>>, %arg5: memref<8x8x512xf32, #tpu.memory_space<vmem>>, %arg6: memref<128x512xbf16, #tpu.memory_space<vmem>>, %arg7: memref<1x!tpu.dma_semaphore, #tpu.memory_space<semaphore_mem>>) attributes {dimension_semantics = [#tpu.dimension_semantics<parallel>, #tpu.dimension_semantics<arbitrary>], iteration_bounds = array<i64: 1, 1>, scalar_prefetch = 0 : i64, scratch_operands = 2 : i64, tpu.core_type = #tpu.core_type<tc>, window_params = [{transform_indices = @transform_0, window_bounds = array<i64: 8, 8, 128>}, {}, {pipeline_mode = #tpu.pipeline_mode<synchronous>, transform_indices = @transform_2, window_bounds = array<i64: 1, 512>}, {transform_indices = @transform_3, window_bounds = array<i64: 8, 8, 512>}]} {
    %c0_i32 = arith.constant 0 : i32
    %0 = arith.cmpi eq, %arg1, %c0_i32 : i32
    %1 = arith.extui %0 : i1 to i32
    %c0_i32_0 = arith.constant 0 : i32
    %2 = arith.cmpi ne, %1, %c0_i32_0 : i32
    scf.if %2 {
      %c0_i32_10 = arith.constant 0 : i32
      %12 = tpu.memref_slice %arg7[%c0_i32_10] : memref<1x!tpu.dma_semaphore, #tpu.memory_space<semaphore_mem>> -> memref<1x!tpu.dma_semaphore, #tpu.memory_space<semaphore_mem>>
      %13 = tpu.memref_squeeze %12 : memref<1x!tpu.dma_semaphore, #tpu.memory_space<semaphore_mem>> -> memref<!tpu.dma_semaphore, #tpu.memory_space<semaphore_mem>>
      tpu.enqueue_dma source(%arg3 : memref<128x512xbf16, #tpu.memory_space<any>>) target(%arg6 : memref<128x512xbf16, #tpu.memory_space<vmem>>) target_semaphore(%13 : memref<!tpu.dma_semaphore, #tpu.memory_space<semaphore_mem>>)
      %c0_i32_11 = arith.constant 0 : i32
      %14 = tpu.memref_slice %arg7[%c0_i32_11] : memref<1x!tpu.dma_semaphore, #tpu.memory_space<semaphore_mem>> -> memref<1x!tpu.dma_semaphore, #tpu.memory_space<semaphore_mem>>
      %15 = tpu.memref_squeeze %14 : memref<1x!tpu.dma_semaphore, #tpu.memory_space<semaphore_mem>> -> memref<!tpu.dma_semaphore, #tpu.memory_space<semaphore_mem>>
      tpu.wait_dma2 semaphore(%15 : memref<!tpu.dma_semaphore, #tpu.memory_space<semaphore_mem>>) src(%arg3 : memref<128x512xbf16, #tpu.memory_space<any>>) dst(%arg6 : memref<128x512xbf16, #tpu.memory_space<vmem>>)
    } else {
    }
    %c0 = arith.constant 0 : index
    %c0_1 = arith.constant 0 : index
    %c0_2 = arith.constant 0 : index
    %3 = vector.load %arg2[%c0, %c0_1, %c0_2] : memref<8x8x128xbf16, #tpu.memory_space<vmem>>, vector<8x8x128xbf16>
    %4 = vector.shape_cast %3 : vector<8x8x128xbf16> to vector<64x128xbf16>
    %c0_3 = arith.constant 0 : index
    %c0_4 = arith.constant 0 : index
    %5 = vector.load %arg6[%c0_3, %c0_4] : memref<128x512xbf16, #tpu.memory_space<vmem>>, vector<128x512xbf16>
    %cst = arith.constant dense<0.000000e+00> : vector<64x512xf32>
    %6 = tpu.matmul %4, %5, %cst {dimension_numbers = #tpu.dot_dimension_numbers<[1], [0], [0], [1], [0, 0, 1, 1], [], []>} : vector<64x128xbf16>, vector<128x512xbf16>, vector<64x512xf32> -> vector<64x512xf32>
    %c0_5 = arith.constant 0 : index
    %c0_6 = arith.constant 0 : index
    %7 = vector.load %arg4[%c0_5, %c0_6] : memref<1x512xf32, #tpu.memory_space<vmem>>, vector<1x512xf32>
    %8 = vector.broadcast %7 : vector<1x512xf32> to vector<64x512xf32>
    %9 = arith.addf %6, %8 : vector<64x512xf32>
    %10 = vector.shape_cast %9 : vector<64x512xf32> to vector<8x8x512xf32>
    %c0_7 = arith.constant 0 : index
    %c0_8 = arith.constant 0 : index
    %c0_9 = arith.constant 0 : index
    %11 = vector.load %arg5[%c0_7, %c0_8, %c0_9] : memref<8x8x512xf32, #tpu.memory_space<vmem>>, vector<8x8x512xf32>
    tpu.vector_store %arg5[%c0_7, %c0_8, %c0_9], %10 {strides = array<i32>} : memref<8x8x512xf32, #tpu.memory_space<vmem>>, vector<8x8x512xf32>,
    return
  }
  func.func @transform_0(%arg0: i32, %arg1: i32) -> (i32, i32, i32) {
    %c0_i32 = arith.constant 0 : i32
    %c0_i32_0 = arith.constant 0 : i32
    return %arg1, %arg0, %c0_i32 : i32, i32, i32
  }
  func.func @transform_2(%arg0: i32, %arg1: i32) -> (i32, i32) {
    %c0_i32 = arith.constant 0 : i32
    %c0_i32_0 = arith.constant 0 : i32
    %c0_i32_1 = arith.constant 0 : i32
    return %c0_i32, %c0_i32_0 : i32, i32
  }
  func.func @transform_3(%arg0: i32, %arg1: i32) -> (i32, i32, i32) {
    %c0_i32 = arith.constant 0 : i32
    %c0_i32_0 = arith.constant 0 : i32
    return %arg1, %arg0, %c0_i32 : i32, i32, i32
  }
}

module attributes {stable_mosaic.version = 11 : i64} {
  func.func @_recurrence_kernel(%arg0: i32, %arg1: i32, %arg2: memref<8x8x512xf32, #tpu.memory_space<vmem>>, %arg3: memref<128x512xbf16, #tpu.memory_space<any>>, %arg4: memref<8x8x128xbf16, #tpu.memory_space<vmem>>, %arg5: memref<8x128xf32, #tpu.memory_space<vmem>>, %arg6: memref<8x128xf32, #tpu.memory_space<vmem>>, %arg7: memref<128x512xbf16, #tpu.memory_space<vmem>>, %arg8: memref<8x128xf32, #tpu.memory_space<vmem>>, %arg9: memref<8x128xf32, #tpu.memory_space<vmem>>, %arg10: memref<1x!tpu.dma_semaphore, #tpu.memory_space<semaphore_mem>>) attributes {dimension_semantics = [#tpu.dimension_semantics<parallel>, #tpu.dimension_semantics<arbitrary>], iteration_bounds = array<i64: 1, 1>, scalar_prefetch = 0 : i64, scratch_operands = 4 : i64, tpu.core_type = #tpu.core_type<tc>, window_params = [{transform_indices = @transform_0, window_bounds = array<i64: 8, 8, 512>}, {}, {transform_indices = @transform_2, window_bounds = array<i64: 8, 8, 128>}, {transform_indices = @transform_3, window_bounds = array<i64: 8, 128>}, {transform_indices = @transform_4, window_bounds = array<i64: 8, 128>}]} {
    %c0_i32 = arith.constant 0 : i32
    %0 = arith.cmpi eq, %arg1, %c0_i32 : i32
    %1 = arith.extui %0 : i1 to i32
    %c0_i32_0 = arith.constant 0 : i32
    %2 = arith.cmpi ne, %1, %c0_i32_0 : i32
    scf.if %2 {
      %c0_i32_148 = arith.constant 0 : i32
      %337 = tpu.memref_slice %arg10[%c0_i32_148] : memref<1x!tpu.dma_semaphore, #tpu.memory_space<semaphore_mem>> -> memref<1x!tpu.dma_semaphore, #tpu.memory_space<semaphore_mem>>
      %338 = tpu.memref_squeeze %337 : memref<1x!tpu.dma_semaphore, #tpu.memory_space<semaphore_mem>> -> memref<!tpu.dma_semaphore, #tpu.memory_space<semaphore_mem>>
      tpu.enqueue_dma source(%arg3 : memref<128x512xbf16, #tpu.memory_space<any>>) target(%arg7 : memref<128x512xbf16, #tpu.memory_space<vmem>>) target_semaphore(%338 : memref<!tpu.dma_semaphore, #tpu.memory_space<semaphore_mem>>)
      %c0_i32_149 = arith.constant 0 : i32
      %339 = tpu.memref_slice %arg10[%c0_i32_149] : memref<1x!tpu.dma_semaphore, #tpu.memory_space<semaphore_mem>> -> memref<1x!tpu.dma_semaphore, #tpu.memory_space<semaphore_mem>>
      %340 = tpu.memref_squeeze %339 : memref<1x!tpu.dma_semaphore, #tpu.memory_space<semaphore_mem>> -> memref<!tpu.dma_semaphore, #tpu.memory_space<semaphore_mem>>
      tpu.wait_dma2 semaphore(%340 : memref<!tpu.dma_semaphore, #tpu.memory_space<semaphore_mem>>) src(%arg3 : memref<128x512xbf16, #tpu.memory_space<any>>) dst(%arg7 : memref<128x512xbf16, #tpu.memory_space<vmem>>)
      %cst_150 = arith.constant 0.000000e+00 : f32
      %341 = vector.broadcast %cst_150 : f32 to vector<8x128xf32>
      %c0_151 = arith.constant 0 : index
      %c0_152 = arith.constant 0 : index
      %342 = vector.load %arg8[%c0_151, %c0_152] : memref<8x128xf32, #tpu.memory_space<vmem>>, vector<8x128xf32>
      tpu.vector_store %arg8[%c0_151, %c0_152], %341 {strides = array<i32>} : memref<8x128xf32, #tpu.memory_space<vmem>>, vector<8x128xf32>,
      %cst_153 = arith.constant 0.000000e+00 : f32
      %343 = vector.broadcast %cst_153 : f32 to vector<8x128xf32>
      %c0_154 = arith.constant 0 : index
      %c0_155 = arith.constant 0 : index
      %344 = vector.load %arg9[%c0_154, %c0_155] : memref<8x128xf32, #tpu.memory_space<vmem>>, vector<8x128xf32>
      tpu.vector_store %arg9[%c0_154, %c0_155], %343 {strides = array<i32>} : memref<8x128xf32, #tpu.memory_space<vmem>>, vector<8x128xf32>,
    } else {
    }
    %c0 = arith.constant 0 : index
    %c0_1 = arith.constant 0 : index
    %3 = vector.load %arg8[%c0, %c0_1] : memref<8x128xf32, #tpu.memory_space<vmem>>, vector<8x128xf32>
    %c0_2 = arith.constant 0 : index
    %c0_3 = arith.constant 0 : index
    %4 = vector.load %arg9[%c0_2, %c0_3] : memref<8x128xf32, #tpu.memory_space<vmem>>, vector<8x128xf32>
    %c0_4 = arith.constant 0 : index
    %c0_5 = arith.constant 0 : index
    %c0_6 = arith.constant 0 : index
    %5 = vector.load %arg2[%c0_4, %c0_5, %c0_6] : memref<8x8x512xf32, #tpu.memory_space<vmem>>, vector<1x8x512xf32>
    %6 = vector.shape_cast %5 : vector<1x8x512xf32> to vector<8x512xf32>
    %7 = arith.truncf %3 : vector<8x128xf32> to vector<8x128xbf16>
    %c0_7 = arith.constant 0 : index
    %c0_8 = arith.constant 0 : index
    %8 = vector.load %arg7[%c0_7, %c0_8] : memref<128x512xbf16, #tpu.memory_space<vmem>>, vector<128x512xbf16>
    %cst = arith.constant dense<0.000000e+00> : vector<8x512xf32>
    %9 = tpu.matmul %7, %8, %cst {dimension_numbers = #tpu.dot_dimension_numbers<[1], [0], [0], [1], [0, 0, 1, 1], [], []>} : vector<8x128xbf16>, vector<128x512xbf16>, vector<8x512xf32> -> vector<8x512xf32>
    %10 = arith.addf %6, %9 : vector<8x512xf32>
    %11 = vector.extract_strided_slice %10 {offsets = [0, 0], sizes = [8, 128], strides = [1, 1]} : vector<8x512xf32> to vector<8x128xf32>
    %cst_9 = arith.constant 5.000000e-01 : f32
    %12 = vector.broadcast %cst_9 : f32 to vector<8x128xf32>
    %13 = arith.mulf %12, %11 : vector<8x128xf32>
    %14 = math.tanh %13 : vector<8x128xf32>
    %cst_10 = arith.constant 1.000000e+00 : f32
    %15 = vector.broadcast %cst_10 : f32 to vector<8x128xf32>
    %16 = arith.addf %14, %15 : vector<8x128xf32>
    %cst_11 = arith.constant 5.000000e-01 : f32
    %17 = vector.broadcast %cst_11 : f32 to vector<8x128xf32>
    %18 = arith.mulf %17, %16 : vector<8x128xf32>
    %19 = vector.extract_strided_slice %10 {offsets = [0, 128], sizes = [8, 128], strides = [1, 1]} : vector<8x512xf32> to vector<8x128xf32>
    %cst_12 = arith.constant 5.000000e-01 : f32
    %20 = vector.broadcast %cst_12 : f32 to vector<8x128xf32>
    %21 = arith.mulf %20, %19 : vector<8x128xf32>
    %22 = math.tanh %21 : vector<8x128xf32>
    %cst_13 = arith.constant 1.000000e+00 : f32
    %23 = vector.broadcast %cst_13 : f32 to vector<8x128xf32>
    %24 = arith.addf %22, %23 : vector<8x128xf32>
    %cst_14 = arith.constant 5.000000e-01 : f32
    %25 = vector.broadcast %cst_14 : f32 to vector<8x128xf32>
    %26 = arith.mulf %25, %24 : vector<8x128xf32>
    %27 = vector.extract_strided_slice %10 {offsets = [0, 256], sizes = [8, 128], strides = [1, 1]} : vector<8x512xf32> to vector<8x128xf32>
    %28 = math.tanh %27 : vector<8x128xf32>
    %29 = vector.extract_strided_slice %10 {offsets = [0, 384], sizes = [8, 128], strides = [1, 1]} : vector<8x512xf32> to vector<8x128xf32>
    %cst_15 = arith.constant 5.000000e-01 : f32
    %30 = vector.broadcast %cst_15 : f32 to vector<8x128xf32>
    %31 = arith.mulf %30, %29 : vector<8x128xf32>
    %32 = math.tanh %31 : vector<8x128xf32>
    %cst_16 = arith.constant 1.000000e+00 : f32
    %33 = vector.broadcast %cst_16 : f32 to vector<8x128xf32>
    %34 = arith.addf %32, %33 : vector<8x128xf32>
    %cst_17 = arith.constant 5.000000e-01 : f32
    %35 = vector.broadcast %cst_17 : f32 to vector<8x128xf32>
    %36 = arith.mulf %35, %34 : vector<8x128xf32>
    %37 = arith.mulf %26, %4 : vector<8x128xf32>
    %38 = arith.mulf %18, %28 : vector<8x128xf32>
    %39 = arith.addf %37, %38 : vector<8x128xf32>
    %40 = math.tanh %39 : vector<8x128xf32>
    %41 = arith.mulf %36, %40 : vector<8x128xf32>
    %42 = arith.truncf %41 : vector<8x128xf32> to vector<8x128xbf16>
    %c0_18 = arith.constant 0 : index
    %c0_19 = arith.constant 0 : index
    %c0_20 = arith.constant 0 : index
    %43 = vector.load %arg4[%c0_18, %c0_19, %c0_20] : memref<8x8x128xbf16, #tpu.memory_space<vmem>>, vector<1x8x128xbf16>
    %44 = vector.shape_cast %43 : vector<1x8x128xbf16> to vector<8x128xbf16>
    %45 = vector.shape_cast %42 : vector<8x128xbf16> to vector<1x8x128xbf16>
    tpu.vector_store %arg4[%c0_18, %c0_19, %c0_20], %45 {strides = array<i32>} : memref<8x8x128xbf16, #tpu.memory_space<vmem>>, vector<1x8x128xbf16>,
    %c1 = arith.constant 1 : index
    %c0_21 = arith.constant 0 : index
    %c0_22 = arith.constant 0 : index
    %46 = vector.load %arg2[%c1, %c0_21, %c0_22] : memref<8x8x512xf32, #tpu.memory_space<vmem>>, vector<1x8x512xf32>
    %47 = vector.shape_cast %46 : vector<1x8x512xf32> to vector<8x512xf32>
    %48 = arith.truncf %41 : vector<8x128xf32> to vector<8x128xbf16>
    %c0_23 = arith.constant 0 : index
    %c0_24 = arith.constant 0 : index
    %49 = vector.load %arg7[%c0_23, %c0_24] : memref<128x512xbf16, #tpu.memory_space<vmem>>, vector<128x512xbf16>
    %cst_25 = arith.constant dense<0.000000e+00> : vector<8x512xf32>
    %50 = tpu.matmul %48, %49, %cst_25 {dimension_numbers = #tpu.dot_dimension_numbers<[1], [0], [0], [1], [0, 0, 1, 1], [], []>} : vector<8x128xbf16>, vector<128x512xbf16>, vector<8x512xf32> -> vector<8x512xf32>
    %51 = arith.addf %47, %50 : vector<8x512xf32>
    %52 = vector.extract_strided_slice %51 {offsets = [0, 0], sizes = [8, 128], strides = [1, 1]} : vector<8x512xf32> to vector<8x128xf32>
    %cst_26 = arith.constant 5.000000e-01 : f32
    %53 = vector.broadcast %cst_26 : f32 to vector<8x128xf32>
    %54 = arith.mulf %53, %52 : vector<8x128xf32>
    %55 = math.tanh %54 : vector<8x128xf32>
    %cst_27 = arith.constant 1.000000e+00 : f32
    %56 = vector.broadcast %cst_27 : f32 to vector<8x128xf32>
    %57 = arith.addf %55, %56 : vector<8x128xf32>
    %cst_28 = arith.constant 5.000000e-01 : f32
    %58 = vector.broadcast %cst_28 : f32 to vector<8x128xf32>
    %59 = arith.mulf %58, %57 : vector<8x128xf32>
    %60 = vector.extract_strided_slice %51 {offsets = [0, 128], sizes = [8, 128], strides = [1, 1]} : vector<8x512xf32> to vector<8x128xf32>
    %cst_29 = arith.constant 5.000000e-01 : f32
    %61 = vector.broadcast %cst_29 : f32 to vector<8x128xf32>
    %62 = arith.mulf %61, %60 : vector<8x128xf32>
    %63 = math.tanh %62 : vector<8x128xf32>
    %cst_30 = arith.constant 1.000000e+00 : f32
    %64 = vector.broadcast %cst_30 : f32 to vector<8x128xf32>
    %65 = arith.addf %63, %64 : vector<8x128xf32>
    %cst_31 = arith.constant 5.000000e-01 : f32
    %66 = vector.broadcast %cst_31 : f32 to vector<8x128xf32>
    %67 = arith.mulf %66, %65 : vector<8x128xf32>
    %68 = vector.extract_strided_slice %51 {offsets = [0, 256], sizes = [8, 128], strides = [1, 1]} : vector<8x512xf32> to vector<8x128xf32>
    %69 = math.tanh %68 : vector<8x128xf32>
    %70 = vector.extract_strided_slice %51 {offsets = [0, 384], sizes = [8, 128], strides = [1, 1]} : vector<8x512xf32> to vector<8x128xf32>
    %cst_32 = arith.constant 5.000000e-01 : f32
    %71 = vector.broadcast %cst_32 : f32 to vector<8x128xf32>
    %72 = arith.mulf %71, %70 : vector<8x128xf32>
    %73 = math.tanh %72 : vector<8x128xf32>
    %cst_33 = arith.constant 1.000000e+00 : f32
    %74 = vector.broadcast %cst_33 : f32 to vector<8x128xf32>
    %75 = arith.addf %73, %74 : vector<8x128xf32>
    %cst_34 = arith.constant 5.000000e-01 : f32
    %76 = vector.broadcast %cst_34 : f32 to vector<8x128xf32>
    %77 = arith.mulf %76, %75 : vector<8x128xf32>
    %78 = arith.mulf %67, %39 : vector<8x128xf32>
    %79 = arith.mulf %59, %69 : vector<8x128xf32>
    %80 = arith.addf %78, %79 : vector<8x128xf32>
    %81 = math.tanh %80 : vector<8x128xf32>
    %82 = arith.mulf %77, %81 : vector<8x128xf32>
    %83 = arith.truncf %82 : vector<8x128xf32> to vector<8x128xbf16>
    %c1_35 = arith.constant 1 : index
    %c0_36 = arith.constant 0 : index
    %c0_37 = arith.constant 0 : index
    %84 = vector.load %arg4[%c1_35, %c0_36, %c0_37] : memref<8x8x128xbf16, #tpu.memory_space<vmem>>, vector<1x8x128xbf16>
    %85 = vector.shape_cast %84 : vector<1x8x128xbf16> to vector<8x128xbf16>
    %86 = vector.shape_cast %83 : vector<8x128xbf16> to vector<1x8x128xbf16>
    tpu.vector_store %arg4[%c1_35, %c0_36, %c0_37], %86 {strides = array<i32>} : memref<8x8x128xbf16, #tpu.memory_space<vmem>>, vector<1x8x128xbf16>,
    %c2 = arith.constant 2 : index
    %c0_38 = arith.constant 0 : index
    %c0_39 = arith.constant 0 : index
    %87 = vector.load %arg2[%c2, %c0_38, %c0_39] : memref<8x8x512xf32, #tpu.memory_space<vmem>>, vector<1x8x512xf32>
    %88 = vector.shape_cast %87 : vector<1x8x512xf32> to vector<8x512xf32>
    %89 = arith.truncf %82 : vector<8x128xf32> to vector<8x128xbf16>
    %c0_40 = arith.constant 0 : index
    %c0_41 = arith.constant 0 : index
    %90 = vector.load %arg7[%c0_40, %c0_41] : memref<128x512xbf16, #tpu.memory_space<vmem>>, vector<128x512xbf16>
    %cst_42 = arith.constant dense<0.000000e+00> : vector<8x512xf32>
    %91 = tpu.matmul %89, %90, %cst_42 {dimension_numbers = #tpu.dot_dimension_numbers<[1], [0], [0], [1], [0, 0, 1, 1], [], []>} : vector<8x128xbf16>, vector<128x512xbf16>, vector<8x512xf32> -> vector<8x512xf32>
    %92 = arith.addf %88, %91 : vector<8x512xf32>
    %93 = vector.extract_strided_slice %92 {offsets = [0, 0], sizes = [8, 128], strides = [1, 1]} : vector<8x512xf32> to vector<8x128xf32>
    %cst_43 = arith.constant 5.000000e-01 : f32
    %94 = vector.broadcast %cst_43 : f32 to vector<8x128xf32>
    %95 = arith.mulf %94, %93 : vector<8x128xf32>
    %96 = math.tanh %95 : vector<8x128xf32>
    %cst_44 = arith.constant 1.000000e+00 : f32
    %97 = vector.broadcast %cst_44 : f32 to vector<8x128xf32>
    %98 = arith.addf %96, %97 : vector<8x128xf32>
    %cst_45 = arith.constant 5.000000e-01 : f32
    %99 = vector.broadcast %cst_45 : f32 to vector<8x128xf32>
    %100 = arith.mulf %99, %98 : vector<8x128xf32>
    %101 = vector.extract_strided_slice %92 {offsets = [0, 128], sizes = [8, 128], strides = [1, 1]} : vector<8x512xf32> to vector<8x128xf32>
    %cst_46 = arith.constant 5.000000e-01 : f32
    %102 = vector.broadcast %cst_46 : f32 to vector<8x128xf32>
    %103 = arith.mulf %102, %101 : vector<8x128xf32>
    %104 = math.tanh %103 : vector<8x128xf32>
    %cst_47 = arith.constant 1.000000e+00 : f32
    %105 = vector.broadcast %cst_47 : f32 to vector<8x128xf32>
    %106 = arith.addf %104, %105 : vector<8x128xf32>
    %cst_48 = arith.constant 5.000000e-01 : f32
    %107 = vector.broadcast %cst_48 : f32 to vector<8x128xf32>
    %108 = arith.mulf %107, %106 : vector<8x128xf32>
    %109 = vector.extract_strided_slice %92 {offsets = [0, 256], sizes = [8, 128], strides = [1, 1]} : vector<8x512xf32> to vector<8x128xf32>
    %110 = math.tanh %109 : vector<8x128xf32>
    %111 = vector.extract_strided_slice %92 {offsets = [0, 384], sizes = [8, 128], strides = [1, 1]} : vector<8x512xf32> to vector<8x128xf32>
    %cst_49 = arith.constant 5.000000e-01 : f32
    %112 = vector.broadcast %cst_49 : f32 to vector<8x128xf32>
    %113 = arith.mulf %112, %111 : vector<8x128xf32>
    %114 = math.tanh %113 : vector<8x128xf32>
    %cst_50 = arith.constant 1.000000e+00 : f32
    %115 = vector.broadcast %cst_50 : f32 to vector<8x128xf32>
    %116 = arith.addf %114, %115 : vector<8x128xf32>
    %cst_51 = arith.constant 5.000000e-01 : f32
    %117 = vector.broadcast %cst_51 : f32 to vector<8x128xf32>
    %118 = arith.mulf %117, %116 : vector<8x128xf32>
    %119 = arith.mulf %108, %80 : vector<8x128xf32>
    %120 = arith.mulf %100, %110 : vector<8x128xf32>
    %121 = arith.addf %119, %120 : vector<8x128xf32>
    %122 = math.tanh %121 : vector<8x128xf32>
    %123 = arith.mulf %118, %122 : vector<8x128xf32>
    %124 = arith.truncf %123 : vector<8x128xf32> to vector<8x128xbf16>
    %c2_52 = arith.constant 2 : index
    %c0_53 = arith.constant 0 : index
    %c0_54 = arith.constant 0 : index
    %125 = vector.load %arg4[%c2_52, %c0_53, %c0_54] : memref<8x8x128xbf16, #tpu.memory_space<vmem>>, vector<1x8x128xbf16>
    %126 = vector.shape_cast %125 : vector<1x8x128xbf16> to vector<8x128xbf16>
    %127 = vector.shape_cast %124 : vector<8x128xbf16> to vector<1x8x128xbf16>
    tpu.vector_store %arg4[%c2_52, %c0_53, %c0_54], %127 {strides = array<i32>} : memref<8x8x128xbf16, #tpu.memory_space<vmem>>, vector<1x8x128xbf16>,
    %c3 = arith.constant 3 : index
    %c0_55 = arith.constant 0 : index
    %c0_56 = arith.constant 0 : index
    %128 = vector.load %arg2[%c3, %c0_55, %c0_56] : memref<8x8x512xf32, #tpu.memory_space<vmem>>, vector<1x8x512xf32>
    %129 = vector.shape_cast %128 : vector<1x8x512xf32> to vector<8x512xf32>
    %130 = arith.truncf %123 : vector<8x128xf32> to vector<8x128xbf16>
    %c0_57 = arith.constant 0 : index
    %c0_58 = arith.constant 0 : index
    %131 = vector.load %arg7[%c0_57, %c0_58] : memref<128x512xbf16, #tpu.memory_space<vmem>>, vector<128x512xbf16>
    %cst_59 = arith.constant dense<0.000000e+00> : vector<8x512xf32>
    %132 = tpu.matmul %130, %131, %cst_59 {dimension_numbers = #tpu.dot_dimension_numbers<[1], [0], [0], [1], [0, 0, 1, 1], [], []>} : vector<8x128xbf16>, vector<128x512xbf16>, vector<8x512xf32> -> vector<8x512xf32>
    %133 = arith.addf %129, %132 : vector<8x512xf32>
    %134 = vector.extract_strided_slice %133 {offsets = [0, 0], sizes = [8, 128], strides = [1, 1]} : vector<8x512xf32> to vector<8x128xf32>
    %cst_60 = arith.constant 5.000000e-01 : f32
    %135 = vector.broadcast %cst_60 : f32 to vector<8x128xf32>
    %136 = arith.mulf %135, %134 : vector<8x128xf32>
    %137 = math.tanh %136 : vector<8x128xf32>
    %cst_61 = arith.constant 1.000000e+00 : f32
    %138 = vector.broadcast %cst_61 : f32 to vector<8x128xf32>
    %139 = arith.addf %137, %138 : vector<8x128xf32>
    %cst_62 = arith.constant 5.000000e-01 : f32
    %140 = vector.broadcast %cst_62 : f32 to vector<8x128xf32>
    %141 = arith.mulf %140, %139 : vector<8x128xf32>
    %142 = vector.extract_strided_slice %133 {offsets = [0, 128], sizes = [8, 128], strides = [1, 1]} : vector<8x512xf32> to vector<8x128xf32>
    %cst_63 = arith.constant 5.000000e-01 : f32
    %143 = vector.broadcast %cst_63 : f32 to vector<8x128xf32>
    %144 = arith.mulf %143, %142 : vector<8x128xf32>
    %145 = math.tanh %144 : vector<8x128xf32>
    %cst_64 = arith.constant 1.000000e+00 : f32
    %146 = vector.broadcast %cst_64 : f32 to vector<8x128xf32>
    %147 = arith.addf %145, %146 : vector<8x128xf32>
    %cst_65 = arith.constant 5.000000e-01 : f32
    %148 = vector.broadcast %cst_65 : f32 to vector<8x128xf32>
    %149 = arith.mulf %148, %147 : vector<8x128xf32>
    %150 = vector.extract_strided_slice %133 {offsets = [0, 256], sizes = [8, 128], strides = [1, 1]} : vector<8x512xf32> to vector<8x128xf32>
    %151 = math.tanh %150 : vector<8x128xf32>
    %152 = vector.extract_strided_slice %133 {offsets = [0, 384], sizes = [8, 128], strides = [1, 1]} : vector<8x512xf32> to vector<8x128xf32>
    %cst_66 = arith.constant 5.000000e-01 : f32
    %153 = vector.broadcast %cst_66 : f32 to vector<8x128xf32>
    %154 = arith.mulf %153, %152 : vector<8x128xf32>
    %155 = math.tanh %154 : vector<8x128xf32>
    %cst_67 = arith.constant 1.000000e+00 : f32
    %156 = vector.broadcast %cst_67 : f32 to vector<8x128xf32>
    %157 = arith.addf %155, %156 : vector<8x128xf32>
    %cst_68 = arith.constant 5.000000e-01 : f32
    %158 = vector.broadcast %cst_68 : f32 to vector<8x128xf32>
    %159 = arith.mulf %158, %157 : vector<8x128xf32>
    %160 = arith.mulf %149, %121 : vector<8x128xf32>
    %161 = arith.mulf %141, %151 : vector<8x128xf32>
    %162 = arith.addf %160, %161 : vector<8x128xf32>
    %163 = math.tanh %162 : vector<8x128xf32>
    %164 = arith.mulf %159, %163 : vector<8x128xf32>
    %165 = arith.truncf %164 : vector<8x128xf32> to vector<8x128xbf16>
    %c3_69 = arith.constant 3 : index
    %c0_70 = arith.constant 0 : index
    %c0_71 = arith.constant 0 : index
    %166 = vector.load %arg4[%c3_69, %c0_70, %c0_71] : memref<8x8x128xbf16, #tpu.memory_space<vmem>>, vector<1x8x128xbf16>
    %167 = vector.shape_cast %166 : vector<1x8x128xbf16> to vector<8x128xbf16>
    %168 = vector.shape_cast %165 : vector<8x128xbf16> to vector<1x8x128xbf16>
    tpu.vector_store %arg4[%c3_69, %c0_70, %c0_71], %168 {strides = array<i32>} : memref<8x8x128xbf16, #tpu.memory_space<vmem>>, vector<1x8x128xbf16>,
    %c4 = arith.constant 4 : index
    %c0_72 = arith.constant 0 : index
    %c0_73 = arith.constant 0 : index
    %169 = vector.load %arg2[%c4, %c0_72, %c0_73] : memref<8x8x512xf32, #tpu.memory_space<vmem>>, vector<1x8x512xf32>
    %170 = vector.shape_cast %169 : vector<1x8x512xf32> to vector<8x512xf32>
    %171 = arith.truncf %164 : vector<8x128xf32> to vector<8x128xbf16>
    %c0_74 = arith.constant 0 : index
    %c0_75 = arith.constant 0 : index
    %172 = vector.load %arg7[%c0_74, %c0_75] : memref<128x512xbf16, #tpu.memory_space<vmem>>, vector<128x512xbf16>
    %cst_76 = arith.constant dense<0.000000e+00> : vector<8x512xf32>
    %173 = tpu.matmul %171, %172, %cst_76 {dimension_numbers = #tpu.dot_dimension_numbers<[1], [0], [0], [1], [0, 0, 1, 1], [], []>} : vector<8x128xbf16>, vector<128x512xbf16>, vector<8x512xf32> -> vector<8x512xf32>
    %174 = arith.addf %170, %173 : vector<8x512xf32>
    %175 = vector.extract_strided_slice %174 {offsets = [0, 0], sizes = [8, 128], strides = [1, 1]} : vector<8x512xf32> to vector<8x128xf32>
    %cst_77 = arith.constant 5.000000e-01 : f32
    %176 = vector.broadcast %cst_77 : f32 to vector<8x128xf32>
    %177 = arith.mulf %176, %175 : vector<8x128xf32>
    %178 = math.tanh %177 : vector<8x128xf32>
    %cst_78 = arith.constant 1.000000e+00 : f32
    %179 = vector.broadcast %cst_78 : f32 to vector<8x128xf32>
    %180 = arith.addf %178, %179 : vector<8x128xf32>
    %cst_79 = arith.constant 5.000000e-01 : f32
    %181 = vector.broadcast %cst_79 : f32 to vector<8x128xf32>
    %182 = arith.mulf %181, %180 : vector<8x128xf32>
    %183 = vector.extract_strided_slice %174 {offsets = [0, 128], sizes = [8, 128], strides = [1, 1]} : vector<8x512xf32> to vector<8x128xf32>
    %cst_80 = arith.constant 5.000000e-01 : f32
    %184 = vector.broadcast %cst_80 : f32 to vector<8x128xf32>
    %185 = arith.mulf %184, %183 : vector<8x128xf32>
    %186 = math.tanh %185 : vector<8x128xf32>
    %cst_81 = arith.constant 1.000000e+00 : f32
    %187 = vector.broadcast %cst_81 : f32 to vector<8x128xf32>
    %188 = arith.addf %186, %187 : vector<8x128xf32>
    %cst_82 = arith.constant 5.000000e-01 : f32
    %189 = vector.broadcast %cst_82 : f32 to vector<8x128xf32>
    %190 = arith.mulf %189, %188 : vector<8x128xf32>
    %191 = vector.extract_strided_slice %174 {offsets = [0, 256], sizes = [8, 128], strides = [1, 1]} : vector<8x512xf32> to vector<8x128xf32>
    %192 = math.tanh %191 : vector<8x128xf32>
    %193 = vector.extract_strided_slice %174 {offsets = [0, 384], sizes = [8, 128], strides = [1, 1]} : vector<8x512xf32> to vector<8x128xf32>
    %cst_83 = arith.constant 5.000000e-01 : f32
    %194 = vector.broadcast %cst_83 : f32 to vector<8x128xf32>
    %195 = arith.mulf %194, %193 : vector<8x128xf32>
    %196 = math.tanh %195 : vector<8x128xf32>
    %cst_84 = arith.constant 1.000000e+00 : f32
    %197 = vector.broadcast %cst_84 : f32 to vector<8x128xf32>
    %198 = arith.addf %196, %197 : vector<8x128xf32>
    %cst_85 = arith.constant 5.000000e-01 : f32
    %199 = vector.broadcast %cst_85 : f32 to vector<8x128xf32>
    %200 = arith.mulf %199, %198 : vector<8x128xf32>
    %201 = arith.mulf %190, %162 : vector<8x128xf32>
    %202 = arith.mulf %182, %192 : vector<8x128xf32>
    %203 = arith.addf %201, %202 : vector<8x128xf32>
    %204 = math.tanh %203 : vector<8x128xf32>
    %205 = arith.mulf %200, %204 : vector<8x128xf32>
    %206 = arith.truncf %205 : vector<8x128xf32> to vector<8x128xbf16>
    %c4_86 = arith.constant 4 : index
    %c0_87 = arith.constant 0 : index
    %c0_88 = arith.constant 0 : index
    %207 = vector.load %arg4[%c4_86, %c0_87, %c0_88] : memref<8x8x128xbf16, #tpu.memory_space<vmem>>, vector<1x8x128xbf16>
    %208 = vector.shape_cast %207 : vector<1x8x128xbf16> to vector<8x128xbf16>
    %209 = vector.shape_cast %206 : vector<8x128xbf16> to vector<1x8x128xbf16>
    tpu.vector_store %arg4[%c4_86, %c0_87, %c0_88], %209 {strides = array<i32>} : memref<8x8x128xbf16, #tpu.memory_space<vmem>>, vector<1x8x128xbf16>,
    %c5 = arith.constant 5 : index
    %c0_89 = arith.constant 0 : index
    %c0_90 = arith.constant 0 : index
    %210 = vector.load %arg2[%c5, %c0_89, %c0_90] : memref<8x8x512xf32, #tpu.memory_space<vmem>>, vector<1x8x512xf32>
    %211 = vector.shape_cast %210 : vector<1x8x512xf32> to vector<8x512xf32>
    %212 = arith.truncf %205 : vector<8x128xf32> to vector<8x128xbf16>
    %c0_91 = arith.constant 0 : index
    %c0_92 = arith.constant 0 : index
    %213 = vector.load %arg7[%c0_91, %c0_92] : memref<128x512xbf16, #tpu.memory_space<vmem>>, vector<128x512xbf16>
    %cst_93 = arith.constant dense<0.000000e+00> : vector<8x512xf32>
    %214 = tpu.matmul %212, %213, %cst_93 {dimension_numbers = #tpu.dot_dimension_numbers<[1], [0], [0], [1], [0, 0, 1, 1], [], []>} : vector<8x128xbf16>, vector<128x512xbf16>, vector<8x512xf32> -> vector<8x512xf32>
    %215 = arith.addf %211, %214 : vector<8x512xf32>
    %216 = vector.extract_strided_slice %215 {offsets = [0, 0], sizes = [8, 128], strides = [1, 1]} : vector<8x512xf32> to vector<8x128xf32>
    %cst_94 = arith.constant 5.000000e-01 : f32
    %217 = vector.broadcast %cst_94 : f32 to vector<8x128xf32>
    %218 = arith.mulf %217, %216 : vector<8x128xf32>
    %219 = math.tanh %218 : vector<8x128xf32>
    %cst_95 = arith.constant 1.000000e+00 : f32
    %220 = vector.broadcast %cst_95 : f32 to vector<8x128xf32>
    %221 = arith.addf %219, %220 : vector<8x128xf32>
    %cst_96 = arith.constant 5.000000e-01 : f32
    %222 = vector.broadcast %cst_96 : f32 to vector<8x128xf32>
    %223 = arith.mulf %222, %221 : vector<8x128xf32>
    %224 = vector.extract_strided_slice %215 {offsets = [0, 128], sizes = [8, 128], strides = [1, 1]} : vector<8x512xf32> to vector<8x128xf32>
    %cst_97 = arith.constant 5.000000e-01 : f32
    %225 = vector.broadcast %cst_97 : f32 to vector<8x128xf32>
    %226 = arith.mulf %225, %224 : vector<8x128xf32>
    %227 = math.tanh %226 : vector<8x128xf32>
    %cst_98 = arith.constant 1.000000e+00 : f32
    %228 = vector.broadcast %cst_98 : f32 to vector<8x128xf32>
    %229 = arith.addf %227, %228 : vector<8x128xf32>
    %cst_99 = arith.constant 5.000000e-01 : f32
    %230 = vector.broadcast %cst_99 : f32 to vector<8x128xf32>
    %231 = arith.mulf %230, %229 : vector<8x128xf32>
    %232 = vector.extract_strided_slice %215 {offsets = [0, 256], sizes = [8, 128], strides = [1, 1]} : vector<8x512xf32> to vector<8x128xf32>
    %233 = math.tanh %232 : vector<8x128xf32>
    %234 = vector.extract_strided_slice %215 {offsets = [0, 384], sizes = [8, 128], strides = [1, 1]} : vector<8x512xf32> to vector<8x128xf32>
    %cst_100 = arith.constant 5.000000e-01 : f32
    %235 = vector.broadcast %cst_100 : f32 to vector<8x128xf32>
    %236 = arith.mulf %235, %234 : vector<8x128xf32>
    %237 = math.tanh %236 : vector<8x128xf32>
    %cst_101 = arith.constant 1.000000e+00 : f32
    %238 = vector.broadcast %cst_101 : f32 to vector<8x128xf32>
    %239 = arith.addf %237, %238 : vector<8x128xf32>
    %cst_102 = arith.constant 5.000000e-01 : f32
    %240 = vector.broadcast %cst_102 : f32 to vector<8x128xf32>
    %241 = arith.mulf %240, %239 : vector<8x128xf32>
    %242 = arith.mulf %231, %203 : vector<8x128xf32>
    %243 = arith.mulf %223, %233 : vector<8x128xf32>
    %244 = arith.addf %242, %243 : vector<8x128xf32>
    %245 = math.tanh %244 : vector<8x128xf32>
    %246 = arith.mulf %241, %245 : vector<8x128xf32>
    %247 = arith.truncf %246 : vector<8x128xf32> to vector<8x128xbf16>
    %c5_103 = arith.constant 5 : index
    %c0_104 = arith.constant 0 : index
    %c0_105 = arith.constant 0 : index
    %248 = vector.load %arg4[%c5_103, %c0_104, %c0_105] : memref<8x8x128xbf16, #tpu.memory_space<vmem>>, vector<1x8x128xbf16>
    %249 = vector.shape_cast %248 : vector<1x8x128xbf16> to vector<8x128xbf16>
    %250 = vector.shape_cast %247 : vector<8x128xbf16> to vector<1x8x128xbf16>
    tpu.vector_store %arg4[%c5_103, %c0_104, %c0_105], %250 {strides = array<i32>} : memref<8x8x128xbf16, #tpu.memory_space<vmem>>, vector<1x8x128xbf16>,
    %c6 = arith.constant 6 : index
    %c0_106 = arith.constant 0 : index
    %c0_107 = arith.constant 0 : index
    %251 = vector.load %arg2[%c6, %c0_106, %c0_107] : memref<8x8x512xf32, #tpu.memory_space<vmem>>, vector<1x8x512xf32>
    %252 = vector.shape_cast %251 : vector<1x8x512xf32> to vector<8x512xf32>
    %253 = arith.truncf %246 : vector<8x128xf32> to vector<8x128xbf16>
    %c0_108 = arith.constant 0 : index
    %c0_109 = arith.constant 0 : index
    %254 = vector.load %arg7[%c0_108, %c0_109] : memref<128x512xbf16, #tpu.memory_space<vmem>>, vector<128x512xbf16>
    %cst_110 = arith.constant dense<0.000000e+00> : vector<8x512xf32>
    %255 = tpu.matmul %253, %254, %cst_110 {dimension_numbers = #tpu.dot_dimension_numbers<[1], [0], [0], [1], [0, 0, 1, 1], [], []>} : vector<8x128xbf16>, vector<128x512xbf16>, vector<8x512xf32> -> vector<8x512xf32>
    %256 = arith.addf %252, %255 : vector<8x512xf32>
    %257 = vector.extract_strided_slice %256 {offsets = [0, 0], sizes = [8, 128], strides = [1, 1]} : vector<8x512xf32> to vector<8x128xf32>
    %cst_111 = arith.constant 5.000000e-01 : f32
    %258 = vector.broadcast %cst_111 : f32 to vector<8x128xf32>
    %259 = arith.mulf %258, %257 : vector<8x128xf32>
    %260 = math.tanh %259 : vector<8x128xf32>
    %cst_112 = arith.constant 1.000000e+00 : f32
    %261 = vector.broadcast %cst_112 : f32 to vector<8x128xf32>
    %262 = arith.addf %260, %261 : vector<8x128xf32>
    %cst_113 = arith.constant 5.000000e-01 : f32
    %263 = vector.broadcast %cst_113 : f32 to vector<8x128xf32>
    %264 = arith.mulf %263, %262 : vector<8x128xf32>
    %265 = vector.extract_strided_slice %256 {offsets = [0, 128], sizes = [8, 128], strides = [1, 1]} : vector<8x512xf32> to vector<8x128xf32>
    %cst_114 = arith.constant 5.000000e-01 : f32
    %266 = vector.broadcast %cst_114 : f32 to vector<8x128xf32>
    %267 = arith.mulf %266, %265 : vector<8x128xf32>
    %268 = math.tanh %267 : vector<8x128xf32>
    %cst_115 = arith.constant 1.000000e+00 : f32
    %269 = vector.broadcast %cst_115 : f32 to vector<8x128xf32>
    %270 = arith.addf %268, %269 : vector<8x128xf32>
    %cst_116 = arith.constant 5.000000e-01 : f32
    %271 = vector.broadcast %cst_116 : f32 to vector<8x128xf32>
    %272 = arith.mulf %271, %270 : vector<8x128xf32>
    %273 = vector.extract_strided_slice %256 {offsets = [0, 256], sizes = [8, 128], strides = [1, 1]} : vector<8x512xf32> to vector<8x128xf32>
    %274 = math.tanh %273 : vector<8x128xf32>
    %275 = vector.extract_strided_slice %256 {offsets = [0, 384], sizes = [8, 128], strides = [1, 1]} : vector<8x512xf32> to vector<8x128xf32>
    %cst_117 = arith.constant 5.000000e-01 : f32
    %276 = vector.broadcast %cst_117 : f32 to vector<8x128xf32>
    %277 = arith.mulf %276, %275 : vector<8x128xf32>
    %278 = math.tanh %277 : vector<8x128xf32>
    %cst_118 = arith.constant 1.000000e+00 : f32
    %279 = vector.broadcast %cst_118 : f32 to vector<8x128xf32>
    %280 = arith.addf %278, %279 : vector<8x128xf32>
    %cst_119 = arith.constant 5.000000e-01 : f32
    %281 = vector.broadcast %cst_119 : f32 to vector<8x128xf32>
    %282 = arith.mulf %281, %280 : vector<8x128xf32>
    %283 = arith.mulf %272, %244 : vector<8x128xf32>
    %284 = arith.mulf %264, %274 : vector<8x128xf32>
    %285 = arith.addf %283, %284 : vector<8x128xf32>
    %286 = math.tanh %285 : vector<8x128xf32>
    %287 = arith.mulf %282, %286 : vector<8x128xf32>
    %288 = arith.truncf %287 : vector<8x128xf32> to vector<8x128xbf16>
    %c6_120 = arith.constant 6 : index
    %c0_121 = arith.constant 0 : index
    %c0_122 = arith.constant 0 : index
    %289 = vector.load %arg4[%c6_120, %c0_121, %c0_122] : memref<8x8x128xbf16, #tpu.memory_space<vmem>>, vector<1x8x128xbf16>
    %290 = vector.shape_cast %289 : vector<1x8x128xbf16> to vector<8x128xbf16>
    %291 = vector.shape_cast %288 : vector<8x128xbf16> to vector<1x8x128xbf16>
    tpu.vector_store %arg4[%c6_120, %c0_121, %c0_122], %291 {strides = array<i32>} : memref<8x8x128xbf16, #tpu.memory_space<vmem>>, vector<1x8x128xbf16>,
    %c7 = arith.constant 7 : index
    %c0_123 = arith.constant 0 : index
    %c0_124 = arith.constant 0 : index
    %292 = vector.load %arg2[%c7, %c0_123, %c0_124] : memref<8x8x512xf32, #tpu.memory_space<vmem>>, vector<1x8x512xf32>
    %293 = vector.shape_cast %292 : vector<1x8x512xf32> to vector<8x512xf32>
    %294 = arith.truncf %287 : vector<8x128xf32> to vector<8x128xbf16>
    %c0_125 = arith.constant 0 : index
    %c0_126 = arith.constant 0 : index
    %295 = vector.load %arg7[%c0_125, %c0_126] : memref<128x512xbf16, #tpu.memory_space<vmem>>, vector<128x512xbf16>
    %cst_127 = arith.constant dense<0.000000e+00> : vector<8x512xf32>
    %296 = tpu.matmul %294, %295, %cst_127 {dimension_numbers = #tpu.dot_dimension_numbers<[1], [0], [0], [1], [0, 0, 1, 1], [], []>} : vector<8x128xbf16>, vector<128x512xbf16>, vector<8x512xf32> -> vector<8x512xf32>
    %297 = arith.addf %293, %296 : vector<8x512xf32>
    %298 = vector.extract_strided_slice %297 {offsets = [0, 0], sizes = [8, 128], strides = [1, 1]} : vector<8x512xf32> to vector<8x128xf32>
    %cst_128 = arith.constant 5.000000e-01 : f32
    %299 = vector.broadcast %cst_128 : f32 to vector<8x128xf32>
    %300 = arith.mulf %299, %298 : vector<8x128xf32>
    %301 = math.tanh %300 : vector<8x128xf32>
    %cst_129 = arith.constant 1.000000e+00 : f32
    %302 = vector.broadcast %cst_129 : f32 to vector<8x128xf32>
    %303 = arith.addf %301, %302 : vector<8x128xf32>
    %cst_130 = arith.constant 5.000000e-01 : f32
    %304 = vector.broadcast %cst_130 : f32 to vector<8x128xf32>
    %305 = arith.mulf %304, %303 : vector<8x128xf32>
    %306 = vector.extract_strided_slice %297 {offsets = [0, 128], sizes = [8, 128], strides = [1, 1]} : vector<8x512xf32> to vector<8x128xf32>
    %cst_131 = arith.constant 5.000000e-01 : f32
    %307 = vector.broadcast %cst_131 : f32 to vector<8x128xf32>
    %308 = arith.mulf %307, %306 : vector<8x128xf32>
    %309 = math.tanh %308 : vector<8x128xf32>
    %cst_132 = arith.constant 1.000000e+00 : f32
    %310 = vector.broadcast %cst_132 : f32 to vector<8x128xf32>
    %311 = arith.addf %309, %310 : vector<8x128xf32>
    %cst_133 = arith.constant 5.000000e-01 : f32
    %312 = vector.broadcast %cst_133 : f32 to vector<8x128xf32>
    %313 = arith.mulf %312, %311 : vector<8x128xf32>
    %314 = vector.extract_strided_slice %297 {offsets = [0, 256], sizes = [8, 128], strides = [1, 1]} : vector<8x512xf32> to vector<8x128xf32>
    %315 = math.tanh %314 : vector<8x128xf32>
    %316 = vector.extract_strided_slice %297 {offsets = [0, 384], sizes = [8, 128], strides = [1, 1]} : vector<8x512xf32> to vector<8x128xf32>
    %cst_134 = arith.constant 5.000000e-01 : f32
    %317 = vector.broadcast %cst_134 : f32 to vector<8x128xf32>
    %318 = arith.mulf %317, %316 : vector<8x128xf32>
    %319 = math.tanh %318 : vector<8x128xf32>
    %cst_135 = arith.constant 1.000000e+00 : f32
    %320 = vector.broadcast %cst_135 : f32 to vector<8x128xf32>
    %321 = arith.addf %319, %320 : vector<8x128xf32>
    %cst_136 = arith.constant 5.000000e-01 : f32
    %322 = vector.broadcast %cst_136 : f32 to vector<8x128xf32>
    %323 = arith.mulf %322, %321 : vector<8x128xf32>
    %324 = arith.mulf %313, %285 : vector<8x128xf32>
    %325 = arith.mulf %305, %315 : vector<8x128xf32>
    %326 = arith.addf %324, %325 : vector<8x128xf32>
    %327 = math.tanh %326 : vector<8x128xf32>
    %328 = arith.mulf %323, %327 : vector<8x128xf32>
    %329 = arith.truncf %328 : vector<8x128xf32> to vector<8x128xbf16>
    %c7_137 = arith.constant 7 : index
    %c0_138 = arith.constant 0 : index
    %c0_139 = arith.constant 0 : index
    %330 = vector.load %arg4[%c7_137, %c0_138, %c0_139] : memref<8x8x128xbf16, #tpu.memory_space<vmem>>, vector<1x8x128xbf16>
    %331 = vector.shape_cast %330 : vector<1x8x128xbf16> to vector<8x128xbf16>
    %332 = vector.shape_cast %329 : vector<8x128xbf16> to vector<1x8x128xbf16>
    tpu.vector_store %arg4[%c7_137, %c0_138, %c0_139], %332 {strides = array<i32>} : memref<8x8x128xbf16, #tpu.memory_space<vmem>>, vector<1x8x128xbf16>,
    %c0_140 = arith.constant 0 : index
    %c0_141 = arith.constant 0 : index
    %333 = vector.load %arg8[%c0_140, %c0_141] : memref<8x128xf32, #tpu.memory_space<vmem>>, vector<8x128xf32>
    tpu.vector_store %arg8[%c0_140, %c0_141], %328 {strides = array<i32>} : memref<8x128xf32, #tpu.memory_space<vmem>>, vector<8x128xf32>,
    %c0_142 = arith.constant 0 : index
    %c0_143 = arith.constant 0 : index
    %334 = vector.load %arg9[%c0_142, %c0_143] : memref<8x128xf32, #tpu.memory_space<vmem>>, vector<8x128xf32>
    tpu.vector_store %arg9[%c0_142, %c0_143], %326 {strides = array<i32>} : memref<8x128xf32, #tpu.memory_space<vmem>>, vector<8x128xf32>,
    %c0_144 = arith.constant 0 : index
    %c0_145 = arith.constant 0 : index
    %335 = vector.load %arg5[%c0_144, %c0_145] : memref<8x128xf32, #tpu.memory_space<vmem>>, vector<8x128xf32>
    tpu.vector_store %arg5[%c0_144, %c0_145], %328 {strides = array<i32>} : memref<8x128xf32, #tpu.memory_space<vmem>>, vector<8x128xf32>,
    %c0_146 = arith.constant 0 : index
    %c0_147 = arith.constant 0 : index
    %336 = vector.load %arg6[%c0_146, %c0_147] : memref<8x128xf32, #tpu.memory_space<vmem>>, vector<8x128xf32>
    tpu.vector_store %arg6[%c0_146, %c0_147], %326 {strides = array<i32>} : memref<8x128xf32, #tpu.memory_space<vmem>>, vector<8x128xf32>,
    return
  }
  func.func @transform_0(%arg0: i32, %arg1: i32) -> (i32, i32, i32) {
    %c0_i32 = arith.constant 0 : i32
    %c0_i32_0 = arith.constant 0 : i32
    return %arg1, %arg0, %c0_i32 : i32, i32, i32
  }
  func.func @transform_2(%arg0: i32, %arg1: i32) -> (i32, i32, i32) {
    %c0_i32 = arith.constant 0 : i32
    %c0_i32_0 = arith.constant 0 : i32
    return %arg1, %arg0, %c0_i32 : i32, i32, i32
  }
  func.func @transform_3(%arg0: i32, %arg1: i32) -> (i32, i32) {
    %c0_i32 = arith.constant 0 : i32
    %c0_i32_0 = arith.constant 0 : i32
    return %arg0, %c0_i32 : i32, i32
  }
  func.func @transform_4(%arg0: i32, %arg1: i32) -> (i32, i32) {
    %c0_i32 = arith.constant 0 : i32
    %c0_i32_0 = arith.constant 0 : i32
    return %arg0, %c0_i32 : i32, i32
  }
}

module attributes {stable_mosaic.version = 11 : i64} {
  func.func @_recurrence_kernel(%arg0: i32, %arg1: i32, %arg2: memref<8x8x512xf32, #tpu.memory_space<vmem>>, %arg3: memref<128x512xbf16, #tpu.memory_space<any>>, %arg4: memref<8x8x128xbf16, #tpu.memory_space<vmem>>, %arg5: memref<8x128xf32, #tpu.memory_space<vmem>>, %arg6: memref<8x128xf32, #tpu.memory_space<vmem>>, %arg7: memref<128x512xbf16, #tpu.memory_space<vmem>>, %arg8: memref<8x128xf32, #tpu.memory_space<vmem>>, %arg9: memref<8x128xf32, #tpu.memory_space<vmem>>, %arg10: memref<1x!tpu.dma_semaphore, #tpu.memory_space<semaphore_mem>>) attributes {dimension_semantics = [#tpu.dimension_semantics<parallel>, #tpu.dimension_semantics<arbitrary>], iteration_bounds = array<i64: 1, 1>, scalar_prefetch = 0 : i64, scratch_operands = 4 : i64, tpu.core_type = #tpu.core_type<tc>, window_params = [{transform_indices = @transform_0, window_bounds = array<i64: 8, 8, 512>}, {}, {transform_indices = @transform_2, window_bounds = array<i64: 8, 8, 128>}, {transform_indices = @transform_3, window_bounds = array<i64: 8, 128>}, {transform_indices = @transform_4, window_bounds = array<i64: 8, 128>}]} {
    %c0_i32 = arith.constant 0 : i32
    %0 = arith.cmpi eq, %arg1, %c0_i32 : i32
    %1 = arith.extui %0 : i1 to i32
    %c0_i32_0 = arith.constant 0 : i32
    %2 = arith.cmpi ne, %1, %c0_i32_0 : i32
    scf.if %2 {
      %c0_i32_148 = arith.constant 0 : i32
      %337 = tpu.memref_slice %arg10[%c0_i32_148] : memref<1x!tpu.dma_semaphore, #tpu.memory_space<semaphore_mem>> -> memref<1x!tpu.dma_semaphore, #tpu.memory_space<semaphore_mem>>
      %338 = tpu.memref_squeeze %337 : memref<1x!tpu.dma_semaphore, #tpu.memory_space<semaphore_mem>> -> memref<!tpu.dma_semaphore, #tpu.memory_space<semaphore_mem>>
      tpu.enqueue_dma source(%arg3 : memref<128x512xbf16, #tpu.memory_space<any>>) target(%arg7 : memref<128x512xbf16, #tpu.memory_space<vmem>>) target_semaphore(%338 : memref<!tpu.dma_semaphore, #tpu.memory_space<semaphore_mem>>)
      %c0_i32_149 = arith.constant 0 : i32
      %339 = tpu.memref_slice %arg10[%c0_i32_149] : memref<1x!tpu.dma_semaphore, #tpu.memory_space<semaphore_mem>> -> memref<1x!tpu.dma_semaphore, #tpu.memory_space<semaphore_mem>>
      %340 = tpu.memref_squeeze %339 : memref<1x!tpu.dma_semaphore, #tpu.memory_space<semaphore_mem>> -> memref<!tpu.dma_semaphore, #tpu.memory_space<semaphore_mem>>
      tpu.wait_dma2 semaphore(%340 : memref<!tpu.dma_semaphore, #tpu.memory_space<semaphore_mem>>) src(%arg3 : memref<128x512xbf16, #tpu.memory_space<any>>) dst(%arg7 : memref<128x512xbf16, #tpu.memory_space<vmem>>)
      %cst_150 = arith.constant 0.000000e+00 : f32
      %341 = vector.broadcast %cst_150 : f32 to vector<8x128xf32>
      %c0_151 = arith.constant 0 : index
      %c0_152 = arith.constant 0 : index
      %342 = vector.load %arg8[%c0_151, %c0_152] : memref<8x128xf32, #tpu.memory_space<vmem>>, vector<8x128xf32>
      tpu.vector_store %arg8[%c0_151, %c0_152], %341 {strides = array<i32>} : memref<8x128xf32, #tpu.memory_space<vmem>>, vector<8x128xf32>,
      %cst_153 = arith.constant 0.000000e+00 : f32
      %343 = vector.broadcast %cst_153 : f32 to vector<8x128xf32>
      %c0_154 = arith.constant 0 : index
      %c0_155 = arith.constant 0 : index
      %344 = vector.load %arg9[%c0_154, %c0_155] : memref<8x128xf32, #tpu.memory_space<vmem>>, vector<8x128xf32>
      tpu.vector_store %arg9[%c0_154, %c0_155], %343 {strides = array<i32>} : memref<8x128xf32, #tpu.memory_space<vmem>>, vector<8x128xf32>,
    } else {
    }
    %c0 = arith.constant 0 : index
    %c0_1 = arith.constant 0 : index
    %3 = vector.load %arg8[%c0, %c0_1] : memref<8x128xf32, #tpu.memory_space<vmem>>, vector<8x128xf32>
    %c0_2 = arith.constant 0 : index
    %c0_3 = arith.constant 0 : index
    %4 = vector.load %arg9[%c0_2, %c0_3] : memref<8x128xf32, #tpu.memory_space<vmem>>, vector<8x128xf32>
    %c0_4 = arith.constant 0 : index
    %c0_5 = arith.constant 0 : index
    %c0_6 = arith.constant 0 : index
    %5 = vector.load %arg2[%c0_4, %c0_5, %c0_6] : memref<8x8x512xf32, #tpu.memory_space<vmem>>, vector<1x8x512xf32>
    %6 = vector.shape_cast %5 : vector<1x8x512xf32> to vector<8x512xf32>
    %7 = arith.truncf %3 : vector<8x128xf32> to vector<8x128xbf16>
    %c0_7 = arith.constant 0 : index
    %c0_8 = arith.constant 0 : index
    %8 = vector.load %arg7[%c0_7, %c0_8] : memref<128x512xbf16, #tpu.memory_space<vmem>>, vector<128x512xbf16>
    %cst = arith.constant dense<0.000000e+00> : vector<8x512xf32>
    %9 = tpu.matmul %7, %8, %cst {dimension_numbers = #tpu.dot_dimension_numbers<[1], [0], [0], [1], [0, 0, 1, 1], [], []>} : vector<8x128xbf16>, vector<128x512xbf16>, vector<8x512xf32> -> vector<8x512xf32>
    %10 = arith.addf %6, %9 : vector<8x512xf32>
    %11 = vector.extract_strided_slice %10 {offsets = [0, 0], sizes = [8, 128], strides = [1, 1]} : vector<8x512xf32> to vector<8x128xf32>
    %cst_9 = arith.constant 5.000000e-01 : f32
    %12 = vector.broadcast %cst_9 : f32 to vector<8x128xf32>
    %13 = arith.mulf %12, %11 : vector<8x128xf32>
    %14 = math.tanh %13 : vector<8x128xf32>
    %cst_10 = arith.constant 1.000000e+00 : f32
    %15 = vector.broadcast %cst_10 : f32 to vector<8x128xf32>
    %16 = arith.addf %14, %15 : vector<8x128xf32>
    %cst_11 = arith.constant 5.000000e-01 : f32
    %17 = vector.broadcast %cst_11 : f32 to vector<8x128xf32>
    %18 = arith.mulf %17, %16 : vector<8x128xf32>
    %19 = vector.extract_strided_slice %10 {offsets = [0, 128], sizes = [8, 128], strides = [1, 1]} : vector<8x512xf32> to vector<8x128xf32>
    %cst_12 = arith.constant 5.000000e-01 : f32
    %20 = vector.broadcast %cst_12 : f32 to vector<8x128xf32>
    %21 = arith.mulf %20, %19 : vector<8x128xf32>
    %22 = math.tanh %21 : vector<8x128xf32>
    %cst_13 = arith.constant 1.000000e+00 : f32
    %23 = vector.broadcast %cst_13 : f32 to vector<8x128xf32>
    %24 = arith.addf %22, %23 : vector<8x128xf32>
    %cst_14 = arith.constant 5.000000e-01 : f32
    %25 = vector.broadcast %cst_14 : f32 to vector<8x128xf32>
    %26 = arith.mulf %25, %24 : vector<8x128xf32>
    %27 = vector.extract_strided_slice %10 {offsets = [0, 256], sizes = [8, 128], strides = [1, 1]} : vector<8x512xf32> to vector<8x128xf32>
    %28 = math.tanh %27 : vector<8x128xf32>
    %29 = vector.extract_strided_slice %10 {offsets = [0, 384], sizes = [8, 128], strides = [1, 1]} : vector<8x512xf32> to vector<8x128xf32>
    %cst_15 = arith.constant 5.000000e-01 : f32
    %30 = vector.broadcast %cst_15 : f32 to vector<8x128xf32>
    %31 = arith.mulf %30, %29 : vector<8x128xf32>
    %32 = math.tanh %31 : vector<8x128xf32>
    %cst_16 = arith.constant 1.000000e+00 : f32
    %33 = vector.broadcast %cst_16 : f32 to vector<8x128xf32>
    %34 = arith.addf %32, %33 : vector<8x128xf32>
    %cst_17 = arith.constant 5.000000e-01 : f32
    %35 = vector.broadcast %cst_17 : f32 to vector<8x128xf32>
    %36 = arith.mulf %35, %34 : vector<8x128xf32>
    %37 = arith.mulf %26, %4 : vector<8x128xf32>
    %38 = arith.mulf %18, %28 : vector<8x128xf32>
    %39 = arith.addf %37, %38 : vector<8x128xf32>
    %40 = math.tanh %39 : vector<8x128xf32>
    %41 = arith.mulf %36, %40 : vector<8x128xf32>
    %42 = arith.truncf %41 : vector<8x128xf32> to vector<8x128xbf16>
    %c0_18 = arith.constant 0 : index
    %c0_19 = arith.constant 0 : index
    %c0_20 = arith.constant 0 : index
    %43 = vector.load %arg4[%c0_18, %c0_19, %c0_20] : memref<8x8x128xbf16, #tpu.memory_space<vmem>>, vector<1x8x128xbf16>
    %44 = vector.shape_cast %43 : vector<1x8x128xbf16> to vector<8x128xbf16>
    %45 = vector.shape_cast %42 : vector<8x128xbf16> to vector<1x8x128xbf16>
    tpu.vector_store %arg4[%c0_18, %c0_19, %c0_20], %45 {strides = array<i32>} : memref<8x8x128xbf16, #tpu.memory_space<vmem>>, vector<1x8x128xbf16>,
    %c1 = arith.constant 1 : index
    %c0_21 = arith.constant 0 : index
    %c0_22 = arith.constant 0 : index
    %46 = vector.load %arg2[%c1, %c0_21, %c0_22] : memref<8x8x512xf32, #tpu.memory_space<vmem>>, vector<1x8x512xf32>
    %47 = vector.shape_cast %46 : vector<1x8x512xf32> to vector<8x512xf32>
    %48 = arith.truncf %41 : vector<8x128xf32> to vector<8x128xbf16>
    %c0_23 = arith.constant 0 : index
    %c0_24 = arith.constant 0 : index
    %49 = vector.load %arg7[%c0_23, %c0_24] : memref<128x512xbf16, #tpu.memory_space<vmem>>, vector<128x512xbf16>
    %cst_25 = arith.constant dense<0.000000e+00> : vector<8x512xf32>
    %50 = tpu.matmul %48, %49, %cst_25 {dimension_numbers = #tpu.dot_dimension_numbers<[1], [0], [0], [1], [0, 0, 1, 1], [], []>} : vector<8x128xbf16>, vector<128x512xbf16>, vector<8x512xf32> -> vector<8x512xf32>
    %51 = arith.addf %47, %50 : vector<8x512xf32>
    %52 = vector.extract_strided_slice %51 {offsets = [0, 0], sizes = [8, 128], strides = [1, 1]} : vector<8x512xf32> to vector<8x128xf32>
    %cst_26 = arith.constant 5.000000e-01 : f32
    %53 = vector.broadcast %cst_26 : f32 to vector<8x128xf32>
    %54 = arith.mulf %53, %52 : vector<8x128xf32>
    %55 = math.tanh %54 : vector<8x128xf32>
    %cst_27 = arith.constant 1.000000e+00 : f32
    %56 = vector.broadcast %cst_27 : f32 to vector<8x128xf32>
    %57 = arith.addf %55, %56 : vector<8x128xf32>
    %cst_28 = arith.constant 5.000000e-01 : f32
    %58 = vector.broadcast %cst_28 : f32 to vector<8x128xf32>
    %59 = arith.mulf %58, %57 : vector<8x128xf32>
    %60 = vector.extract_strided_slice %51 {offsets = [0, 128], sizes = [8, 128], strides = [1, 1]} : vector<8x512xf32> to vector<8x128xf32>
    %cst_29 = arith.constant 5.000000e-01 : f32
    %61 = vector.broadcast %cst_29 : f32 to vector<8x128xf32>
    %62 = arith.mulf %61, %60 : vector<8x128xf32>
    %63 = math.tanh %62 : vector<8x128xf32>
    %cst_30 = arith.constant 1.000000e+00 : f32
    %64 = vector.broadcast %cst_30 : f32 to vector<8x128xf32>
    %65 = arith.addf %63, %64 : vector<8x128xf32>
    %cst_31 = arith.constant 5.000000e-01 : f32
    %66 = vector.broadcast %cst_31 : f32 to vector<8x128xf32>
    %67 = arith.mulf %66, %65 : vector<8x128xf32>
    %68 = vector.extract_strided_slice %51 {offsets = [0, 256], sizes = [8, 128], strides = [1, 1]} : vector<8x512xf32> to vector<8x128xf32>
    %69 = math.tanh %68 : vector<8x128xf32>
    %70 = vector.extract_strided_slice %51 {offsets = [0, 384], sizes = [8, 128], strides = [1, 1]} : vector<8x512xf32> to vector<8x128xf32>
    %cst_32 = arith.constant 5.000000e-01 : f32
    %71 = vector.broadcast %cst_32 : f32 to vector<8x128xf32>
    %72 = arith.mulf %71, %70 : vector<8x128xf32>
    %73 = math.tanh %72 : vector<8x128xf32>
    %cst_33 = arith.constant 1.000000e+00 : f32
    %74 = vector.broadcast %cst_33 : f32 to vector<8x128xf32>
    %75 = arith.addf %73, %74 : vector<8x128xf32>
    %cst_34 = arith.constant 5.000000e-01 : f32
    %76 = vector.broadcast %cst_34 : f32 to vector<8x128xf32>
    %77 = arith.mulf %76, %75 : vector<8x128xf32>
    %78 = arith.mulf %67, %39 : vector<8x128xf32>
    %79 = arith.mulf %59, %69 : vector<8x128xf32>
    %80 = arith.addf %78, %79 : vector<8x128xf32>
    %81 = math.tanh %80 : vector<8x128xf32>
    %82 = arith.mulf %77, %81 : vector<8x128xf32>
    %83 = arith.truncf %82 : vector<8x128xf32> to vector<8x128xbf16>
    %c1_35 = arith.constant 1 : index
    %c0_36 = arith.constant 0 : index
    %c0_37 = arith.constant 0 : index
    %84 = vector.load %arg4[%c1_35, %c0_36, %c0_37] : memref<8x8x128xbf16, #tpu.memory_space<vmem>>, vector<1x8x128xbf16>
    %85 = vector.shape_cast %84 : vector<1x8x128xbf16> to vector<8x128xbf16>
    %86 = vector.shape_cast %83 : vector<8x128xbf16> to vector<1x8x128xbf16>
    tpu.vector_store %arg4[%c1_35, %c0_36, %c0_37], %86 {strides = array<i32>} : memref<8x8x128xbf16, #tpu.memory_space<vmem>>, vector<1x8x128xbf16>,
    %c2 = arith.constant 2 : index
    %c0_38 = arith.constant 0 : index
    %c0_39 = arith.constant 0 : index
    %87 = vector.load %arg2[%c2, %c0_38, %c0_39] : memref<8x8x512xf32, #tpu.memory_space<vmem>>, vector<1x8x512xf32>
    %88 = vector.shape_cast %87 : vector<1x8x512xf32> to vector<8x512xf32>
    %89 = arith.truncf %82 : vector<8x128xf32> to vector<8x128xbf16>
    %c0_40 = arith.constant 0 : index
    %c0_41 = arith.constant 0 : index
    %90 = vector.load %arg7[%c0_40, %c0_41] : memref<128x512xbf16, #tpu.memory_space<vmem>>, vector<128x512xbf16>
    %cst_42 = arith.constant dense<0.000000e+00> : vector<8x512xf32>
    %91 = tpu.matmul %89, %90, %cst_42 {dimension_numbers = #tpu.dot_dimension_numbers<[1], [0], [0], [1], [0, 0, 1, 1], [], []>} : vector<8x128xbf16>, vector<128x512xbf16>, vector<8x512xf32> -> vector<8x512xf32>
    %92 = arith.addf %88, %91 : vector<8x512xf32>
    %93 = vector.extract_strided_slice %92 {offsets = [0, 0], sizes = [8, 128], strides = [1, 1]} : vector<8x512xf32> to vector<8x128xf32>
    %cst_43 = arith.constant 5.000000e-01 : f32
    %94 = vector.broadcast %cst_43 : f32 to vector<8x128xf32>
    %95 = arith.mulf %94, %93 : vector<8x128xf32>
    %96 = math.tanh %95 : vector<8x128xf32>
    %cst_44 = arith.constant 1.000000e+00 : f32
    %97 = vector.broadcast %cst_44 : f32 to vector<8x128xf32>
    %98 = arith.addf %96, %97 : vector<8x128xf32>
    %cst_45 = arith.constant 5.000000e-01 : f32
    %99 = vector.broadcast %cst_45 : f32 to vector<8x128xf32>
    %100 = arith.mulf %99, %98 : vector<8x128xf32>
    %101 = vector.extract_strided_slice %92 {offsets = [0, 128], sizes = [8, 128], strides = [1, 1]} : vector<8x512xf32> to vector<8x128xf32>
    %cst_46 = arith.constant 5.000000e-01 : f32
    %102 = vector.broadcast %cst_46 : f32 to vector<8x128xf32>
    %103 = arith.mulf %102, %101 : vector<8x128xf32>
    %104 = math.tanh %103 : vector<8x128xf32>
    %cst_47 = arith.constant 1.000000e+00 : f32
    %105 = vector.broadcast %cst_47 : f32 to vector<8x128xf32>
    %106 = arith.addf %104, %105 : vector<8x128xf32>
    %cst_48 = arith.constant 5.000000e-01 : f32
    %107 = vector.broadcast %cst_48 : f32 to vector<8x128xf32>
    %108 = arith.mulf %107, %106 : vector<8x128xf32>
    %109 = vector.extract_strided_slice %92 {offsets = [0, 256], sizes = [8, 128], strides = [1, 1]} : vector<8x512xf32> to vector<8x128xf32>
    %110 = math.tanh %109 : vector<8x128xf32>
    %111 = vector.extract_strided_slice %92 {offsets = [0, 384], sizes = [8, 128], strides = [1, 1]} : vector<8x512xf32> to vector<8x128xf32>
    %cst_49 = arith.constant 5.000000e-01 : f32
    %112 = vector.broadcast %cst_49 : f32 to vector<8x128xf32>
    %113 = arith.mulf %112, %111 : vector<8x128xf32>
    %114 = math.tanh %113 : vector<8x128xf32>
    %cst_50 = arith.constant 1.000000e+00 : f32
    %115 = vector.broadcast %cst_50 : f32 to vector<8x128xf32>
    %116 = arith.addf %114, %115 : vector<8x128xf32>
    %cst_51 = arith.constant 5.000000e-01 : f32
    %117 = vector.broadcast %cst_51 : f32 to vector<8x128xf32>
    %118 = arith.mulf %117, %116 : vector<8x128xf32>
    %119 = arith.mulf %108, %80 : vector<8x128xf32>
    %120 = arith.mulf %100, %110 : vector<8x128xf32>
    %121 = arith.addf %119, %120 : vector<8x128xf32>
    %122 = math.tanh %121 : vector<8x128xf32>
    %123 = arith.mulf %118, %122 : vector<8x128xf32>
    %124 = arith.truncf %123 : vector<8x128xf32> to vector<8x128xbf16>
    %c2_52 = arith.constant 2 : index
    %c0_53 = arith.constant 0 : index
    %c0_54 = arith.constant 0 : index
    %125 = vector.load %arg4[%c2_52, %c0_53, %c0_54] : memref<8x8x128xbf16, #tpu.memory_space<vmem>>, vector<1x8x128xbf16>
    %126 = vector.shape_cast %125 : vector<1x8x128xbf16> to vector<8x128xbf16>
    %127 = vector.shape_cast %124 : vector<8x128xbf16> to vector<1x8x128xbf16>
    tpu.vector_store %arg4[%c2_52, %c0_53, %c0_54], %127 {strides = array<i32>} : memref<8x8x128xbf16, #tpu.memory_space<vmem>>, vector<1x8x128xbf16>,
    %c3 = arith.constant 3 : index
    %c0_55 = arith.constant 0 : index
    %c0_56 = arith.constant 0 : index
    %128 = vector.load %arg2[%c3, %c0_55, %c0_56] : memref<8x8x512xf32, #tpu.memory_space<vmem>>, vector<1x8x512xf32>
    %129 = vector.shape_cast %128 : vector<1x8x512xf32> to vector<8x512xf32>
    %130 = arith.truncf %123 : vector<8x128xf32> to vector<8x128xbf16>
    %c0_57 = arith.constant 0 : index
    %c0_58 = arith.constant 0 : index
    %131 = vector.load %arg7[%c0_57, %c0_58] : memref<128x512xbf16, #tpu.memory_space<vmem>>, vector<128x512xbf16>
    %cst_59 = arith.constant dense<0.000000e+00> : vector<8x512xf32>
    %132 = tpu.matmul %130, %131, %cst_59 {dimension_numbers = #tpu.dot_dimension_numbers<[1], [0], [0], [1], [0, 0, 1, 1], [], []>} : vector<8x128xbf16>, vector<128x512xbf16>, vector<8x512xf32> -> vector<8x512xf32>
    %133 = arith.addf %129, %132 : vector<8x512xf32>
    %134 = vector.extract_strided_slice %133 {offsets = [0, 0], sizes = [8, 128], strides = [1, 1]} : vector<8x512xf32> to vector<8x128xf32>
    %cst_60 = arith.constant 5.000000e-01 : f32
    %135 = vector.broadcast %cst_60 : f32 to vector<8x128xf32>
    %136 = arith.mulf %135, %134 : vector<8x128xf32>
    %137 = math.tanh %136 : vector<8x128xf32>
    %cst_61 = arith.constant 1.000000e+00 : f32
    %138 = vector.broadcast %cst_61 : f32 to vector<8x128xf32>
    %139 = arith.addf %137, %138 : vector<8x128xf32>
    %cst_62 = arith.constant 5.000000e-01 : f32
    %140 = vector.broadcast %cst_62 : f32 to vector<8x128xf32>
    %141 = arith.mulf %140, %139 : vector<8x128xf32>
    %142 = vector.extract_strided_slice %133 {offsets = [0, 128], sizes = [8, 128], strides = [1, 1]} : vector<8x512xf32> to vector<8x128xf32>
    %cst_63 = arith.constant 5.000000e-01 : f32
    %143 = vector.broadcast %cst_63 : f32 to vector<8x128xf32>
    %144 = arith.mulf %143, %142 : vector<8x128xf32>
    %145 = math.tanh %144 : vector<8x128xf32>
    %cst_64 = arith.constant 1.000000e+00 : f32
    %146 = vector.broadcast %cst_64 : f32 to vector<8x128xf32>
    %147 = arith.addf %145, %146 : vector<8x128xf32>
    %cst_65 = arith.constant 5.000000e-01 : f32
    %148 = vector.broadcast %cst_65 : f32 to vector<8x128xf32>
    %149 = arith.mulf %148, %147 : vector<8x128xf32>
    %150 = vector.extract_strided_slice %133 {offsets = [0, 256], sizes = [8, 128], strides = [1, 1]} : vector<8x512xf32> to vector<8x128xf32>
    %151 = math.tanh %150 : vector<8x128xf32>
    %152 = vector.extract_strided_slice %133 {offsets = [0, 384], sizes = [8, 128], strides = [1, 1]} : vector<8x512xf32> to vector<8x128xf32>
    %cst_66 = arith.constant 5.000000e-01 : f32
    %153 = vector.broadcast %cst_66 : f32 to vector<8x128xf32>
    %154 = arith.mulf %153, %152 : vector<8x128xf32>
    %155 = math.tanh %154 : vector<8x128xf32>
    %cst_67 = arith.constant 1.000000e+00 : f32
    %156 = vector.broadcast %cst_67 : f32 to vector<8x128xf32>
    %157 = arith.addf %155, %156 : vector<8x128xf32>
    %cst_68 = arith.constant 5.000000e-01 : f32
    %158 = vector.broadcast %cst_68 : f32 to vector<8x128xf32>
    %159 = arith.mulf %158, %157 : vector<8x128xf32>
    %160 = arith.mulf %149, %121 : vector<8x128xf32>
    %161 = arith.mulf %141, %151 : vector<8x128xf32>
    %162 = arith.addf %160, %161 : vector<8x128xf32>
    %163 = math.tanh %162 : vector<8x128xf32>
    %164 = arith.mulf %159, %163 : vector<8x128xf32>
    %165 = arith.truncf %164 : vector<8x128xf32> to vector<8x128xbf16>
    %c3_69 = arith.constant 3 : index
    %c0_70 = arith.constant 0 : index
    %c0_71 = arith.constant 0 : index
    %166 = vector.load %arg4[%c3_69, %c0_70, %c0_71] : memref<8x8x128xbf16, #tpu.memory_space<vmem>>, vector<1x8x128xbf16>
    %167 = vector.shape_cast %166 : vector<1x8x128xbf16> to vector<8x128xbf16>
    %168 = vector.shape_cast %165 : vector<8x128xbf16> to vector<1x8x128xbf16>
    tpu.vector_store %arg4[%c3_69, %c0_70, %c0_71], %168 {strides = array<i32>} : memref<8x8x128xbf16, #tpu.memory_space<vmem>>, vector<1x8x128xbf16>,
    %c4 = arith.constant 4 : index
    %c0_72 = arith.constant 0 : index
    %c0_73 = arith.constant 0 : index
    %169 = vector.load %arg2[%c4, %c0_72, %c0_73] : memref<8x8x512xf32, #tpu.memory_space<vmem>>, vector<1x8x512xf32>
    %170 = vector.shape_cast %169 : vector<1x8x512xf32> to vector<8x512xf32>
    %171 = arith.truncf %164 : vector<8x128xf32> to vector<8x128xbf16>
    %c0_74 = arith.constant 0 : index
    %c0_75 = arith.constant 0 : index
    %172 = vector.load %arg7[%c0_74, %c0_75] : memref<128x512xbf16, #tpu.memory_space<vmem>>, vector<128x512xbf16>
    %cst_76 = arith.constant dense<0.000000e+00> : vector<8x512xf32>
    %173 = tpu.matmul %171, %172, %cst_76 {dimension_numbers = #tpu.dot_dimension_numbers<[1], [0], [0], [1], [0, 0, 1, 1], [], []>} : vector<8x128xbf16>, vector<128x512xbf16>, vector<8x512xf32> -> vector<8x512xf32>
    %174 = arith.addf %170, %173 : vector<8x512xf32>
    %175 = vector.extract_strided_slice %174 {offsets = [0, 0], sizes = [8, 128], strides = [1, 1]} : vector<8x512xf32> to vector<8x128xf32>
    %cst_77 = arith.constant 5.000000e-01 : f32
    %176 = vector.broadcast %cst_77 : f32 to vector<8x128xf32>
    %177 = arith.mulf %176, %175 : vector<8x128xf32>
    %178 = math.tanh %177 : vector<8x128xf32>
    %cst_78 = arith.constant 1.000000e+00 : f32
    %179 = vector.broadcast %cst_78 : f32 to vector<8x128xf32>
    %180 = arith.addf %178, %179 : vector<8x128xf32>
    %cst_79 = arith.constant 5.000000e-01 : f32
    %181 = vector.broadcast %cst_79 : f32 to vector<8x128xf32>
    %182 = arith.mulf %181, %180 : vector<8x128xf32>
    %183 = vector.extract_strided_slice %174 {offsets = [0, 128], sizes = [8, 128], strides = [1, 1]} : vector<8x512xf32> to vector<8x128xf32>
    %cst_80 = arith.constant 5.000000e-01 : f32
    %184 = vector.broadcast %cst_80 : f32 to vector<8x128xf32>
    %185 = arith.mulf %184, %183 : vector<8x128xf32>
    %186 = math.tanh %185 : vector<8x128xf32>
    %cst_81 = arith.constant 1.000000e+00 : f32
    %187 = vector.broadcast %cst_81 : f32 to vector<8x128xf32>
    %188 = arith.addf %186, %187 : vector<8x128xf32>
    %cst_82 = arith.constant 5.000000e-01 : f32
    %189 = vector.broadcast %cst_82 : f32 to vector<8x128xf32>
    %190 = arith.mulf %189, %188 : vector<8x128xf32>
    %191 = vector.extract_strided_slice %174 {offsets = [0, 256], sizes = [8, 128], strides = [1, 1]} : vector<8x512xf32> to vector<8x128xf32>
    %192 = math.tanh %191 : vector<8x128xf32>
    %193 = vector.extract_strided_slice %174 {offsets = [0, 384], sizes = [8, 128], strides = [1, 1]} : vector<8x512xf32> to vector<8x128xf32>
    %cst_83 = arith.constant 5.000000e-01 : f32
    %194 = vector.broadcast %cst_83 : f32 to vector<8x128xf32>
    %195 = arith.mulf %194, %193 : vector<8x128xf32>
    %196 = math.tanh %195 : vector<8x128xf32>
    %cst_84 = arith.constant 1.000000e+00 : f32
    %197 = vector.broadcast %cst_84 : f32 to vector<8x128xf32>
    %198 = arith.addf %196, %197 : vector<8x128xf32>
    %cst_85 = arith.constant 5.000000e-01 : f32
    %199 = vector.broadcast %cst_85 : f32 to vector<8x128xf32>
    %200 = arith.mulf %199, %198 : vector<8x128xf32>
    %201 = arith.mulf %190, %162 : vector<8x128xf32>
    %202 = arith.mulf %182, %192 : vector<8x128xf32>
    %203 = arith.addf %201, %202 : vector<8x128xf32>
    %204 = math.tanh %203 : vector<8x128xf32>
    %205 = arith.mulf %200, %204 : vector<8x128xf32>
    %206 = arith.truncf %205 : vector<8x128xf32> to vector<8x128xbf16>
    %c4_86 = arith.constant 4 : index
    %c0_87 = arith.constant 0 : index
    %c0_88 = arith.constant 0 : index
    %207 = vector.load %arg4[%c4_86, %c0_87, %c0_88] : memref<8x8x128xbf16, #tpu.memory_space<vmem>>, vector<1x8x128xbf16>
    %208 = vector.shape_cast %207 : vector<1x8x128xbf16> to vector<8x128xbf16>
    %209 = vector.shape_cast %206 : vector<8x128xbf16> to vector<1x8x128xbf16>
    tpu.vector_store %arg4[%c4_86, %c0_87, %c0_88], %209 {strides = array<i32>} : memref<8x8x128xbf16, #tpu.memory_space<vmem>>, vector<1x8x128xbf16>,
    %c5 = arith.constant 5 : index
    %c0_89 = arith.constant 0 : index
    %c0_90 = arith.constant 0 : index
    %210 = vector.load %arg2[%c5, %c0_89, %c0_90] : memref<8x8x512xf32, #tpu.memory_space<vmem>>, vector<1x8x512xf32>
    %211 = vector.shape_cast %210 : vector<1x8x512xf32> to vector<8x512xf32>
    %212 = arith.truncf %205 : vector<8x128xf32> to vector<8x128xbf16>
    %c0_91 = arith.constant 0 : index
    %c0_92 = arith.constant 0 : index
    %213 = vector.load %arg7[%c0_91, %c0_92] : memref<128x512xbf16, #tpu.memory_space<vmem>>, vector<128x512xbf16>
    %cst_93 = arith.constant dense<0.000000e+00> : vector<8x512xf32>
    %214 = tpu.matmul %212, %213, %cst_93 {dimension_numbers = #tpu.dot_dimension_numbers<[1], [0], [0], [1], [0, 0, 1, 1], [], []>} : vector<8x128xbf16>, vector<128x512xbf16>, vector<8x512xf32> -> vector<8x512xf32>
    %215 = arith.addf %211, %214 : vector<8x512xf32>
    %216 = vector.extract_strided_slice %215 {offsets = [0, 0], sizes = [8, 128], strides = [1, 1]} : vector<8x512xf32> to vector<8x128xf32>
    %cst_94 = arith.constant 5.000000e-01 : f32
    %217 = vector.broadcast %cst_94 : f32 to vector<8x128xf32>
    %218 = arith.mulf %217, %216 : vector<8x128xf32>
    %219 = math.tanh %218 : vector<8x128xf32>
    %cst_95 = arith.constant 1.000000e+00 : f32
    %220 = vector.broadcast %cst_95 : f32 to vector<8x128xf32>
    %221 = arith.addf %219, %220 : vector<8x128xf32>
    %cst_96 = arith.constant 5.000000e-01 : f32
    %222 = vector.broadcast %cst_96 : f32 to vector<8x128xf32>
    %223 = arith.mulf %222, %221 : vector<8x128xf32>
    %224 = vector.extract_strided_slice %215 {offsets = [0, 128], sizes = [8, 128], strides = [1, 1]} : vector<8x512xf32> to vector<8x128xf32>
    %cst_97 = arith.constant 5.000000e-01 : f32
    %225 = vector.broadcast %cst_97 : f32 to vector<8x128xf32>
    %226 = arith.mulf %225, %224 : vector<8x128xf32>
    %227 = math.tanh %226 : vector<8x128xf32>
    %cst_98 = arith.constant 1.000000e+00 : f32
    %228 = vector.broadcast %cst_98 : f32 to vector<8x128xf32>
    %229 = arith.addf %227, %228 : vector<8x128xf32>
    %cst_99 = arith.constant 5.000000e-01 : f32
    %230 = vector.broadcast %cst_99 : f32 to vector<8x128xf32>
    %231 = arith.mulf %230, %229 : vector<8x128xf32>
    %232 = vector.extract_strided_slice %215 {offsets = [0, 256], sizes = [8, 128], strides = [1, 1]} : vector<8x512xf32> to vector<8x128xf32>
    %233 = math.tanh %232 : vector<8x128xf32>
    %234 = vector.extract_strided_slice %215 {offsets = [0, 384], sizes = [8, 128], strides = [1, 1]} : vector<8x512xf32> to vector<8x128xf32>
    %cst_100 = arith.constant 5.000000e-01 : f32
    %235 = vector.broadcast %cst_100 : f32 to vector<8x128xf32>
    %236 = arith.mulf %235, %234 : vector<8x128xf32>
    %237 = math.tanh %236 : vector<8x128xf32>
    %cst_101 = arith.constant 1.000000e+00 : f32
    %238 = vector.broadcast %cst_101 : f32 to vector<8x128xf32>
    %239 = arith.addf %237, %238 : vector<8x128xf32>
    %cst_102 = arith.constant 5.000000e-01 : f32
    %240 = vector.broadcast %cst_102 : f32 to vector<8x128xf32>
    %241 = arith.mulf %240, %239 : vector<8x128xf32>
    %242 = arith.mulf %231, %203 : vector<8x128xf32>
    %243 = arith.mulf %223, %233 : vector<8x128xf32>
    %244 = arith.addf %242, %243 : vector<8x128xf32>
    %245 = math.tanh %244 : vector<8x128xf32>
    %246 = arith.mulf %241, %245 : vector<8x128xf32>
    %247 = arith.truncf %246 : vector<8x128xf32> to vector<8x128xbf16>
    %c5_103 = arith.constant 5 : index
    %c0_104 = arith.constant 0 : index
    %c0_105 = arith.constant 0 : index
    %248 = vector.load %arg4[%c5_103, %c0_104, %c0_105] : memref<8x8x128xbf16, #tpu.memory_space<vmem>>, vector<1x8x128xbf16>
    %249 = vector.shape_cast %248 : vector<1x8x128xbf16> to vector<8x128xbf16>
    %250 = vector.shape_cast %247 : vector<8x128xbf16> to vector<1x8x128xbf16>
    tpu.vector_store %arg4[%c5_103, %c0_104, %c0_105], %250 {strides = array<i32>} : memref<8x8x128xbf16, #tpu.memory_space<vmem>>, vector<1x8x128xbf16>,
    %c6 = arith.constant 6 : index
    %c0_106 = arith.constant 0 : index
    %c0_107 = arith.constant 0 : index
    %251 = vector.load %arg2[%c6, %c0_106, %c0_107] : memref<8x8x512xf32, #tpu.memory_space<vmem>>, vector<1x8x512xf32>
    %252 = vector.shape_cast %251 : vector<1x8x512xf32> to vector<8x512xf32>
    %253 = arith.truncf %246 : vector<8x128xf32> to vector<8x128xbf16>
    %c0_108 = arith.constant 0 : index
    %c0_109 = arith.constant 0 : index
    %254 = vector.load %arg7[%c0_108, %c0_109] : memref<128x512xbf16, #tpu.memory_space<vmem>>, vector<128x512xbf16>
    %cst_110 = arith.constant dense<0.000000e+00> : vector<8x512xf32>
    %255 = tpu.matmul %253, %254, %cst_110 {dimension_numbers = #tpu.dot_dimension_numbers<[1], [0], [0], [1], [0, 0, 1, 1], [], []>} : vector<8x128xbf16>, vector<128x512xbf16>, vector<8x512xf32> -> vector<8x512xf32>
    %256 = arith.addf %252, %255 : vector<8x512xf32>
    %257 = vector.extract_strided_slice %256 {offsets = [0, 0], sizes = [8, 128], strides = [1, 1]} : vector<8x512xf32> to vector<8x128xf32>
    %cst_111 = arith.constant 5.000000e-01 : f32
    %258 = vector.broadcast %cst_111 : f32 to vector<8x128xf32>
    %259 = arith.mulf %258, %257 : vector<8x128xf32>
    %260 = math.tanh %259 : vector<8x128xf32>
    %cst_112 = arith.constant 1.000000e+00 : f32
    %261 = vector.broadcast %cst_112 : f32 to vector<8x128xf32>
    %262 = arith.addf %260, %261 : vector<8x128xf32>
    %cst_113 = arith.constant 5.000000e-01 : f32
    %263 = vector.broadcast %cst_113 : f32 to vector<8x128xf32>
    %264 = arith.mulf %263, %262 : vector<8x128xf32>
    %265 = vector.extract_strided_slice %256 {offsets = [0, 128], sizes = [8, 128], strides = [1, 1]} : vector<8x512xf32> to vector<8x128xf32>
    %cst_114 = arith.constant 5.000000e-01 : f32
    %266 = vector.broadcast %cst_114 : f32 to vector<8x128xf32>
    %267 = arith.mulf %266, %265 : vector<8x128xf32>
    %268 = math.tanh %267 : vector<8x128xf32>
    %cst_115 = arith.constant 1.000000e+00 : f32
    %269 = vector.broadcast %cst_115 : f32 to vector<8x128xf32>
    %270 = arith.addf %268, %269 : vector<8x128xf32>
    %cst_116 = arith.constant 5.000000e-01 : f32
    %271 = vector.broadcast %cst_116 : f32 to vector<8x128xf32>
    %272 = arith.mulf %271, %270 : vector<8x128xf32>
    %273 = vector.extract_strided_slice %256 {offsets = [0, 256], sizes = [8, 128], strides = [1, 1]} : vector<8x512xf32> to vector<8x128xf32>
    %274 = math.tanh %273 : vector<8x128xf32>
    %275 = vector.extract_strided_slice %256 {offsets = [0, 384], sizes = [8, 128], strides = [1, 1]} : vector<8x512xf32> to vector<8x128xf32>
    %cst_117 = arith.constant 5.000000e-01 : f32
    %276 = vector.broadcast %cst_117 : f32 to vector<8x128xf32>
    %277 = arith.mulf %276, %275 : vector<8x128xf32>
    %278 = math.tanh %277 : vector<8x128xf32>
    %cst_118 = arith.constant 1.000000e+00 : f32
    %279 = vector.broadcast %cst_118 : f32 to vector<8x128xf32>
    %280 = arith.addf %278, %279 : vector<8x128xf32>
    %cst_119 = arith.constant 5.000000e-01 : f32
    %281 = vector.broadcast %cst_119 : f32 to vector<8x128xf32>
    %282 = arith.mulf %281, %280 : vector<8x128xf32>
    %283 = arith.mulf %272, %244 : vector<8x128xf32>
    %284 = arith.mulf %264, %274 : vector<8x128xf32>
    %285 = arith.addf %283, %284 : vector<8x128xf32>
    %286 = math.tanh %285 : vector<8x128xf32>
    %287 = arith.mulf %282, %286 : vector<8x128xf32>
    %288 = arith.truncf %287 : vector<8x128xf32> to vector<8x128xbf16>
    %c6_120 = arith.constant 6 : index
    %c0_121 = arith.constant 0 : index
    %c0_122 = arith.constant 0 : index
    %289 = vector.load %arg4[%c6_120, %c0_121, %c0_122] : memref<8x8x128xbf16, #tpu.memory_space<vmem>>, vector<1x8x128xbf16>
    %290 = vector.shape_cast %289 : vector<1x8x128xbf16> to vector<8x128xbf16>
    %291 = vector.shape_cast %288 : vector<8x128xbf16> to vector<1x8x128xbf16>
    tpu.vector_store %arg4[%c6_120, %c0_121, %c0_122], %291 {strides = array<i32>} : memref<8x8x128xbf16, #tpu.memory_space<vmem>>, vector<1x8x128xbf16>,
    %c7 = arith.constant 7 : index
    %c0_123 = arith.constant 0 : index
    %c0_124 = arith.constant 0 : index
    %292 = vector.load %arg2[%c7, %c0_123, %c0_124] : memref<8x8x512xf32, #tpu.memory_space<vmem>>, vector<1x8x512xf32>
    %293 = vector.shape_cast %292 : vector<1x8x512xf32> to vector<8x512xf32>
    %294 = arith.truncf %287 : vector<8x128xf32> to vector<8x128xbf16>
    %c0_125 = arith.constant 0 : index
    %c0_126 = arith.constant 0 : index
    %295 = vector.load %arg7[%c0_125, %c0_126] : memref<128x512xbf16, #tpu.memory_space<vmem>>, vector<128x512xbf16>
    %cst_127 = arith.constant dense<0.000000e+00> : vector<8x512xf32>
    %296 = tpu.matmul %294, %295, %cst_127 {dimension_numbers = #tpu.dot_dimension_numbers<[1], [0], [0], [1], [0, 0, 1, 1], [], []>} : vector<8x128xbf16>, vector<128x512xbf16>, vector<8x512xf32> -> vector<8x512xf32>
    %297 = arith.addf %293, %296 : vector<8x512xf32>
    %298 = vector.extract_strided_slice %297 {offsets = [0, 0], sizes = [8, 128], strides = [1, 1]} : vector<8x512xf32> to vector<8x128xf32>
    %cst_128 = arith.constant 5.000000e-01 : f32
    %299 = vector.broadcast %cst_128 : f32 to vector<8x128xf32>
    %300 = arith.mulf %299, %298 : vector<8x128xf32>
    %301 = math.tanh %300 : vector<8x128xf32>
    %cst_129 = arith.constant 1.000000e+00 : f32
    %302 = vector.broadcast %cst_129 : f32 to vector<8x128xf32>
    %303 = arith.addf %301, %302 : vector<8x128xf32>
    %cst_130 = arith.constant 5.000000e-01 : f32
    %304 = vector.broadcast %cst_130 : f32 to vector<8x128xf32>
    %305 = arith.mulf %304, %303 : vector<8x128xf32>
    %306 = vector.extract_strided_slice %297 {offsets = [0, 128], sizes = [8, 128], strides = [1, 1]} : vector<8x512xf32> to vector<8x128xf32>
    %cst_131 = arith.constant 5.000000e-01 : f32
    %307 = vector.broadcast %cst_131 : f32 to vector<8x128xf32>
    %308 = arith.mulf %307, %306 : vector<8x128xf32>
    %309 = math.tanh %308 : vector<8x128xf32>
    %cst_132 = arith.constant 1.000000e+00 : f32
    %310 = vector.broadcast %cst_132 : f32 to vector<8x128xf32>
    %311 = arith.addf %309, %310 : vector<8x128xf32>
    %cst_133 = arith.constant 5.000000e-01 : f32
    %312 = vector.broadcast %cst_133 : f32 to vector<8x128xf32>
    %313 = arith.mulf %312, %311 : vector<8x128xf32>
    %314 = vector.extract_strided_slice %297 {offsets = [0, 256], sizes = [8, 128], strides = [1, 1]} : vector<8x512xf32> to vector<8x128xf32>
    %315 = math.tanh %314 : vector<8x128xf32>
    %316 = vector.extract_strided_slice %297 {offsets = [0, 384], sizes = [8, 128], strides = [1, 1]} : vector<8x512xf32> to vector<8x128xf32>
    %cst_134 = arith.constant 5.000000e-01 : f32
    %317 = vector.broadcast %cst_134 : f32 to vector<8x128xf32>
    %318 = arith.mulf %317, %316 : vector<8x128xf32>
    %319 = math.tanh %318 : vector<8x128xf32>
    %cst_135 = arith.constant 1.000000e+00 : f32
    %320 = vector.broadcast %cst_135 : f32 to vector<8x128xf32>
    %321 = arith.addf %319, %320 : vector<8x128xf32>
    %cst_136 = arith.constant 5.000000e-01 : f32
    %322 = vector.broadcast %cst_136 : f32 to vector<8x128xf32>
    %323 = arith.mulf %322, %321 : vector<8x128xf32>
    %324 = arith.mulf %313, %285 : vector<8x128xf32>
    %325 = arith.mulf %305, %315 : vector<8x128xf32>
    %326 = arith.addf %324, %325 : vector<8x128xf32>
    %327 = math.tanh %326 : vector<8x128xf32>
    %328 = arith.mulf %323, %327 : vector<8x128xf32>
    %329 = arith.truncf %328 : vector<8x128xf32> to vector<8x128xbf16>
    %c7_137 = arith.constant 7 : index
    %c0_138 = arith.constant 0 : index
    %c0_139 = arith.constant 0 : index
    %330 = vector.load %arg4[%c7_137, %c0_138, %c0_139] : memref<8x8x128xbf16, #tpu.memory_space<vmem>>, vector<1x8x128xbf16>
    %331 = vector.shape_cast %330 : vector<1x8x128xbf16> to vector<8x128xbf16>
    %332 = vector.shape_cast %329 : vector<8x128xbf16> to vector<1x8x128xbf16>
    tpu.vector_store %arg4[%c7_137, %c0_138, %c0_139], %332 {strides = array<i32>} : memref<8x8x128xbf16, #tpu.memory_space<vmem>>, vector<1x8x128xbf16>,
    %c0_140 = arith.constant 0 : index
    %c0_141 = arith.constant 0 : index
    %333 = vector.load %arg8[%c0_140, %c0_141] : memref<8x128xf32, #tpu.memory_space<vmem>>, vector<8x128xf32>
    tpu.vector_store %arg8[%c0_140, %c0_141], %328 {strides = array<i32>} : memref<8x128xf32, #tpu.memory_space<vmem>>, vector<8x128xf32>,
    %c0_142 = arith.constant 0 : index
    %c0_143 = arith.constant 0 : index
    %334 = vector.load %arg9[%c0_142, %c0_143] : memref<8x128xf32, #tpu.memory_space<vmem>>, vector<8x128xf32>
    tpu.vector_store %arg9[%c0_142, %c0_143], %326 {strides = array<i32>} : memref<8x128xf32, #tpu.memory_space<vmem>>, vector<8x128xf32>,
    %c0_144 = arith.constant 0 : index
    %c0_145 = arith.constant 0 : index
    %335 = vector.load %arg5[%c0_144, %c0_145] : memref<8x128xf32, #tpu.memory_space<vmem>>, vector<8x128xf32>
    tpu.vector_store %arg5[%c0_144, %c0_145], %328 {strides = array<i32>} : memref<8x128xf32, #tpu.memory_space<vmem>>, vector<8x128xf32>,
    %c0_146 = arith.constant 0 : index
    %c0_147 = arith.constant 0 : index
    %336 = vector.load %arg6[%c0_146, %c0_147] : memref<8x128xf32, #tpu.memory_space<vmem>>, vector<8x128xf32>
    tpu.vector_store %arg6[%c0_146, %c0_147], %326 {strides = array<i32>} : memref<8x128xf32, #tpu.memory_space<vmem>>, vector<8x128xf32>,
    return
  }
  func.func @transform_0(%arg0: i32, %arg1: i32) -> (i32, i32, i32) {
    %c0_i32 = arith.constant 0 : i32
    %c0_i32_0 = arith.constant 0 : i32
    return %arg1, %arg0, %c0_i32 : i32, i32, i32
  }
  func.func @transform_2(%arg0: i32, %arg1: i32) -> (i32, i32, i32) {
    %c0_i32 = arith.constant 0 : i32
    %c0_i32_0 = arith.constant 0 : i32
    return %arg1, %arg0, %c0_i32 : i32, i32, i32
  }
  func.func @transform_3(%arg0: i32, %arg1: i32) -> (i32, i32) {
    %c0_i32 = arith.constant 0 : i32
    %c0_i32_0 = arith.constant 0 : i32
    return %arg0, %c0_i32 : i32, i32
  }
  func.func @transform_4(%arg0: i32, %arg1: i32) -> (i32, i32) {
    %c0_i32 = arith.constant 0 : i32
    %c0_i32_0 = arith.constant 0 : i32
    return %arg0, %c0_i32 : i32, i32
  }
}

</mosaic_0001>

<llo_original>
// kernel: stacked_lstm.4
$region0: #{stacked_lstm.4}
  #allocation0 [shape = 'u32[]', space=smem, size = 0x4, offset = 0x4, fixed_abs, tag = 'smem constant byte address 0x4 - core index']
  #allocation1 [shape = 'u32[72,128]{1,0:T(1,128)}', space=vmem, size = 0x9000, scoped, tag = 'internal scratch']
  #allocation2 [shape = 'bf16[128,512]{1,0:T(8,128)(2,1)}', space=vmem, size = 0x20000, scoped, tag = 'scratch operand']
  #allocation3 [shape = 's32[1]{0}', space=sflag, size = 0x4, scoped, tag = 'scratch operand']
  #allocation4 [shape = 's32[]', space=sflag, size = 0x4, offset = 0, fixed_abs, tag = 'sflag constant byte address 0x0 - dummy sync flag']
  %s0 = inlined_call_operand.vmem [shape: bf16[8,8,128], index: 0, kind: input, shape index: {}]
  %s1 = inlined_call_operand.vmem [shape: bf16[128,512], index: 1, kind: input, shape index: {}]
  %s2 = inlined_call_operand.vmem [shape: f32[1,512], index: 2, kind: input, shape index: {}]
  %s3 = inlined_call_operand.vmem [shape: f32[8,8,512], index: 3, kind: output, shape index: {}]
  %s4 = sld [smem:[#allocation0]]
  $region41: #{stacked_lstm.4} parent=0
    _
  %s6 = ssub.s32 1, %s4
  %s7 = scalar_select 0, %s6, %s4
  // Predicated region
  $region2: #{stacked_lstm.4} parent=0 // pred_check
    _
  $region3: #{stacked_lstm.4} parent=0 // pred_check_branch
    %9 = sbr.rel (0) target = $region5
  $region4: #{stacked_lstm.4} parent=0 // pred_region
    _
  $region5: #{stacked_lstm.4} parent=0 // pred_fallthru
    _
  // Predicated region
  $region6: #{stacked_lstm.4} parent=0 // pred_check
    _
  $region7: #{stacked_lstm.4} parent=0 // pred_check_branch
    %11 = sbr.rel (0) target = $region9
  $region8: #{stacked_lstm.4} parent=0 // pred_region
    _
  $region9: #{stacked_lstm.4} parent=0 // pred_fallthru
    _
  %p12 = scmp.eq.s32.totalorder 0, 0
  // Predicated region
  $region10: #{stacked_lstm.4} parent=0 // pred_check
    %p13 = pneg %p12
  $region11: #{stacked_lstm.4} parent=0 // pred_check_branch
    %15 = sbr.rel (%p13) target = $region13
  $region12: #{stacked_lstm.4} parent=0 // pred_region
    // Predicated region
    $region14: #{stacked_lstm.4} parent=12 // pred_check
      _
    $region15: #{stacked_lstm.4} parent=12 // pred_check_branch
      %17 = sbr.rel (0) target = $region17
    $region16: #{stacked_lstm.4} parent=12 // pred_region
      loop: start=0, step=1, limit=1
      $region18: #{stacked_lstm.4} parent=16 // loop_pre_header
        _
      $region19: #{stacked_lstm.4} parent=16 // loop_header
        %s19 = sphi 0, %s23
        %p20 = scmp.ge.s32.totalorder %s19, 1
        %s24 = sphi %s1, %s1
        %s25 = sphi [#allocation2], [#allocation2]
      $region20: #{stacked_lstm.4} parent=16 // loop_header_branch
        %22 = sbr.rel (%p20) target = $region24
      $region21: #{stacked_lstm.4} parent=16 // loop_body
        %v26 = vld [vmem:[%s24] sm:$0xff]
        %27 = vst [vmem:[%s25] sm:$0xff] %v26
        %v28 = vld [vmem:[%s24 + $0x8] sm:$0xff]
        %29 = vst [vmem:[%s25 + $0x8] sm:$0xff] %v28
        %v30 = vld [vmem:[%s24 + $0x10] sm:$0xff]
        %31 = vst [vmem:[%s25 + $0x10] sm:$0xff] %v30
        %v32 = vld [vmem:[%s24 + $0x18] sm:$0xff]
        %33 = vst [vmem:[%s25 + $0x18] sm:$0xff] %v32
        %v34 = vld [vmem:[%s24 + $0x20] sm:$0xff]
        %35 = vst [vmem:[%s25 + $0x20] sm:$0xff] %v34
        %v36 = vld [vmem:[%s24 + $0x28] sm:$0xff]
        %37 = vst [vmem:[%s25 + $0x28] sm:$0xff] %v36
        %v38 = vld [vmem:[%s24 + $0x30] sm:$0xff]
        %39 = vst [vmem:[%s25 + $0x30] sm:$0xff] %v38
        %v40 = vld [vmem:[%s24 + $0x38] sm:$0xff]
        %41 = vst [vmem:[%s25 + $0x38] sm:$0xff] %v40
        %v42 = vld [vmem:[%s24 + $0x40] sm:$0xff]
        %43 = vst [vmem:[%s25 + $0x40] sm:$0xff] %v42
        %v44 = vld [vmem:[%s24 + $0x48] sm:$0xff]
        %45 = vst [vmem:[%s25 + $0x48] sm:$0xff] %v44
        %v46 = vld [vmem:[%s24 + $0x50] sm:$0xff]
        %47 = vst [vmem:[%s25 + $0x50] sm:$0xff] %v46
        %v48 = vld [vmem:[%s24 + $0x58] sm:$0xff]
        %49 = vst [vmem:[%s25 + $0x58] sm:$0xff] %v48
        %v50 = vld [vmem:[%s24 + $0x60] sm:$0xff]
        %51 = vst [vmem:[%s25 + $0x60] sm:$0xff] %v50
        %v52 = vld [vmem:[%s24 + $0x68] sm:$0xff]
        %53 = vst [vmem:[%s25 + $0x68] sm:$0xff] %v52
        %v54 = vld [vmem:[%s24 + $0x70] sm:$0xff]
        %55 = vst [vmem:[%s25 + $0x70] sm:$0xff] %v54
        %v56 = vld [vmem:[%s24 + $0x78] sm:$0xff]
        %57 = vst [vmem:[%s25 + $0x78] sm:$0xff] %v56
        %v58 = vld [vmem:[%s24 + $0x80] sm:$0xff]
        %59 = vst [vmem:[%s25 + $0x80] sm:$0xff] %v58
        %v60 = vld [vmem:[%s24 + $0x88] sm:$0xff]
        %61 = vst [vmem:[%s25 + $0x88] sm:$0xff] %v60
        %v62 = vld [vmem:[%s24 + $0x90] sm:$0xff]
        %63 = vst [vmem:[%s25 + $0x90] sm:$0xff] %v62
        %v64 = vld [vmem:[%s24 + $0x98] sm:$0xff]
        %65 = vst [vmem:[%s25 + $0x98] sm:$0xff] %v64
        %v66 = vld [vmem:[%s24 + $0xa0] sm:$0xff]
        %67 = vst [vmem:[%s25 + $0xa0] sm:$0xff] %v66
        %v68 = vld [vmem:[%s24 + $0xa8] sm:$0xff]
        %69 = vst [vmem:[%s25 + $0xa8] sm:$0xff] %v68
        %v70 = vld [vmem:[%s24 + $0xb0] sm:$0xff]
        %71 = vst [vmem:[%s25 + $0xb0] sm:$0xff] %v70
        %v72 = vld [vmem:[%s24 + $0xb8] sm:$0xff]
        %73 = vst [vmem:[%s25 + $0xb8] sm:$0xff] %v72
        %v74 = vld [vmem:[%s24 + $0xc0] sm:$0xff]
        %75 = vst [vmem:[%s25 + $0xc0] sm:$0xff] %v74
        %v76 = vld [vmem:[%s24 + $0xc8] sm:$0xff]
        %77 = vst [vmem:[%s25 + $0xc8] sm:$0xff] %v76
        %v78 = vld [vmem:[%s24 + $0xd0] sm:$0xff]
        %79 = vst [vmem:[%s25 + $0xd0] sm:$0xff] %v78
        %v80 = vld [vmem:[%s24 + $0xd8] sm:$0xff]
        %81 = vst [vmem:[%s25 + $0xd8] sm:$0xff] %v80
        %v82 = vld [vmem:[%s24 + $0xe0] sm:$0xff]
        %83 = vst [vmem:[%s25 + $0xe0] sm:$0xff] %v82
        %v84 = vld [vmem:[%s24 + $0xe8] sm:$0xff]
        %85 = vst [vmem:[%s25 + $0xe8] sm:$0xff] %v84
        %v86 = vld [vmem:[%s24 + $0xf0] sm:$0xff]
        %87 = vst [vmem:[%s25 + $0xf0] sm:$0xff] %v86
        %v88 = vld [vmem:[%s24 + $0xf8] sm:$0xff]
        %89 = vst [vmem:[%s25 + $0xf8] sm:$0xff] %v88
      $region22: #{stacked_lstm.4} parent=16 // loop_footer
        %s23 = sadd.s32 1, %s19
      $region23: #{stacked_lstm.4} parent=16 // loop_footer_branch
        %18 = sbr.rel target = $region19
      $region24: #{stacked_lstm.4} parent=16 // loop_exit
        _
    $region17: #{stacked_lstm.4} parent=12 // pred_fallthru
      _
    // Predicated region
    $region25: #{stacked_lstm.4} parent=12 // pred_check
      _
    $region26: #{stacked_lstm.4} parent=12 // pred_check_branch
      %91 = sbr.rel target = $region28
    $region27: #{stacked_lstm.4} parent=12 // pred_region
      _
    $region28: #{stacked_lstm.4} parent=12 // pred_fallthru
      _
    // Predicated region
    $region29: #{stacked_lstm.4} parent=12 // pred_check
      _
    $region30: #{stacked_lstm.4} parent=12 // pred_check_branch
      %94 = sbr.rel (0) target = $region32
    $region31: #{stacked_lstm.4} parent=12 // pred_region
      %95 = vsyncadd [#allocation3], 4096
    $region32: #{stacked_lstm.4} parent=12 // pred_fallthru
      _
    %s96 = smul.u32 4, 16
    %s97 = smul.u32 %s96, 4
    %s98 = sshll.u32 %s97, 4
    %99 = dma.done [#allocation3], %s98
  $region13: #{stacked_lstm.4} parent=0 // pred_fallthru
    _
  %v100 = vld [vmem:[%s0] sm:$0xf]
  %v101 = vld [vmem:[%s0 + $0x4] sm:$0xf]
  %v102 = vld [vmem:[%s0 + $0x8] sm:$0xf]
  %v103 = vld [vmem:[%s0 + $0xc] sm:$0xf]
  %v104 = vld [vmem:[%s0 + $0x10] sm:$0xf]
  %v105 = vld [vmem:[%s0 + $0x14] sm:$0xf]
  %v106 = vld [vmem:[%s0 + $0x18] sm:$0xf]
  %v107 = vld [vmem:[%s0 + $0x1c] sm:$0xf]
  %v108 = vld [vmem:[#allocation2] sm:$0xff]
  %v109 = vld [vmem:[#allocation2 + $0x8] sm:$0xff]
  %v110 = vld [vmem:[#allocation2 + $0x10] sm:$0xff]
  %v111 = vld [vmem:[#allocation2 + $0x18] sm:$0xff]
  %v112 = vld [vmem:[#allocation2 + $0x20] sm:$0xff]
  %v113 = vld [vmem:[#allocation2 + $0x28] sm:$0xff]
  %v114 = vld [vmem:[#allocation2 + $0x30] sm:$0xff]
  %v115 = vld [vmem:[#allocation2 + $0x38] sm:$0xff]
  %v116 = vld [vmem:[#allocation2 + $0x40] sm:$0xff]
  %v117 = vld [vmem:[#allocation2 + $0x48] sm:$0xff]
  %v118 = vld [vmem:[#allocation2 + $0x50] sm:$0xff]
  %v119 = vld [vmem:[#allocation2 + $0x58] sm:$0xff]
  %v120 = vld [vmem:[#allocation2 + $0x60] sm:$0xff]
  %v121 = vld [vmem:[#allocation2 + $0x68] sm:$0xff]
  %v122 = vld [vmem:[#allocation2 + $0x70] sm:$0xff]
  %v123 = vld [vmem:[#allocation2 + $0x78] sm:$0xff]
  %v124 = vld [vmem:[#allocation2 + $0x80] sm:$0xff]
  %v125 = vld [vmem:[#allocation2 + $0x88] sm:$0xff]
  %v126 = vld [vmem:[#allocation2 + $0x90] sm:$0xff]
  %v127 = vld [vmem:[#allocation2 + $0x98] sm:$0xff]
  %v128 = vld [vmem:[#allocation2 + $0xa0] sm:$0xff]
  %v129 = vld [vmem:[#allocation2 + $0xa8] sm:$0xff]
  %v130 = vld [vmem:[#allocation2 + $0xb0] sm:$0xff]
  %v131 = vld [vmem:[#allocation2 + $0xb8] sm:$0xff]
  %v132 = vld [vmem:[#allocation2 + $0xc0] sm:$0xff]
  %v133 = vld [vmem:[#allocation2 + $0xc8] sm:$0xff]
  %v134 = vld [vmem:[#allocation2 + $0xd0] sm:$0xff]
  %v135 = vld [vmem:[#allocation2 + $0xd8] sm:$0xff]
  %v136 = vld [vmem:[#allocation2 + $0xe0] sm:$0xff]
  %v137 = vld [vmem:[#allocation2 + $0xe8] sm:$0xff]
  %v138 = vld [vmem:[#allocation2 + $0xf0] sm:$0xff]
  %v139 = vld [vmem:[#allocation2 + $0xf8] sm:$0xff]
  %v140 = vld [vmem:[%s2] sm:$0xf]
  %v142 = vperm.slane %v140, 0
  %v143 = vperm.slane %v140, 1
  %v144 = vperm.slane %v140, 2
  %v145 = vperm.slane %v140, 3
  %v158 = vunpack.c.l.b16 %v100
  %v159 = vunpack.c.l.b16 %v101
  %v160 = vunpack.c.l.b16 %v102
  %v161 = vunpack.c.l.b16 %v103
  %v162 = vunpack.c.l.b16 %v104
  %v163 = vunpack.c.l.b16 %v105
  %v164 = vunpack.c.l.b16 %v106
  %v165 = vunpack.c.l.b16 %v107
  %v166 = vpack.c.b16 %v159, %v158
  %v167 = vpack.c.b16 %v161, %v160
  %v168 = vpack.c.b16 %v163, %v162
  %v169 = vpack.c.b16 %v165, %v164
  %v206 = vunpack.c.l.b16 %v108
  %v207 = vunpack.c.h.b16 %v108
  %v208 = vunpack.c.l.b16 %v109
  %v209 = vunpack.c.h.b16 %v109
  %v210 = vunpack.c.l.b16 %v110
  %v211 = vunpack.c.h.b16 %v110
  %v212 = vunpack.c.l.b16 %v111
  %v213 = vunpack.c.h.b16 %v111
  %v214 = vunpack.c.l.b16 %v112
  %v215 = vunpack.c.h.b16 %v112
  %v216 = vunpack.c.l.b16 %v113
  %v217 = vunpack.c.h.b16 %v113
  %v218 = vunpack.c.l.b16 %v114
  %v219 = vunpack.c.h.b16 %v114
  %v220 = vunpack.c.l.b16 %v115
  %v221 = vunpack.c.h.b16 %v115
  %v222 = vunpack.c.l.b16 %v116
  %v223 = vunpack.c.h.b16 %v116
  %v224 = vunpack.c.l.b16 %v117
  %v225 = vunpack.c.h.b16 %v117
  %v226 = vunpack.c.l.b16 %v118
  %v227 = vunpack.c.h.b16 %v118
  %v228 = vunpack.c.l.b16 %v119
  %v229 = vunpack.c.h.b16 %v119
  %v230 = vunpack.c.l.b16 %v120
  %v231 = vunpack.c.h.b16 %v120
  %v232 = vunpack.c.l.b16 %v121
  %v233 = vunpack.c.h.b16 %v121
  %v234 = vunpack.c.l.b16 %v122
  %v235 = vunpack.c.h.b16 %v122
  %v236 = vunpack.c.l.b16 %v123
  %v237 = vunpack.c.h.b16 %v123
  %v238 = vunpack.c.l.b16 %v124
  %v239 = vunpack.c.h.b16 %v124
  %v240 = vunpack.c.l.b16 %v125
  %v241 = vunpack.c.h.b16 %v125
  %v242 = vunpack.c.l.b16 %v126
  %v243 = vunpack.c.h.b16 %v126
  %v244 = vunpack.c.l.b16 %v127
  %v245 = vunpack.c.h.b16 %v127
  %v246 = vunpack.c.l.b16 %v128
  %v247 = vunpack.c.h.b16 %v128
  %v248 = vunpack.c.l.b16 %v129
  %v249 = vunpack.c.h.b16 %v129
  %v250 = vunpack.c.l.b16 %v130
  %v251 = vunpack.c.h.b16 %v130
  %v252 = vunpack.c.l.b16 %v131
  %v253 = vunpack.c.h.b16 %v131
  %v254 = vunpack.c.l.b16 %v132
  %v255 = vunpack.c.h.b16 %v132
  %v256 = vunpack.c.l.b16 %v133
  %v257 = vunpack.c.h.b16 %v133
  %v258 = vunpack.c.l.b16 %v134
  %v259 = vunpack.c.h.b16 %v134
  %v260 = vunpack.c.l.b16 %v135
  %v261 = vunpack.c.h.b16 %v135
  %v262 = vunpack.c.l.b16 %v136
  %v263 = vunpack.c.h.b16 %v136
  %v264 = vunpack.c.l.b16 %v137
  %v265 = vunpack.c.h.b16 %v137
  %v266 = vunpack.c.l.b16 %v138
  %v267 = vunpack.c.h.b16 %v138
  %v268 = vunpack.c.l.b16 %v139
  %v269 = vunpack.c.h.b16 %v139
  %v270 = vpack.c.b16 %v210, %v206
  %v271 = vpack.c.b16 %v211, %v207
  %v272 = vpack.c.b16 %v212, %v208
  %v273 = vpack.c.b16 %v213, %v209
  %v274 = vpack.c.b16 %v218, %v214
  %v275 = vpack.c.b16 %v219, %v215
  %v276 = vpack.c.b16 %v220, %v216
  %v277 = vpack.c.b16 %v221, %v217
  %v278 = vpack.c.b16 %v226, %v222
  %v279 = vpack.c.b16 %v227, %v223
  %v280 = vpack.c.b16 %v228, %v224
  %v281 = vpack.c.b16 %v229, %v225
  %v282 = vpack.c.b16 %v234, %v230
  %v283 = vpack.c.b16 %v235, %v231
  %v284 = vpack.c.b16 %v236, %v232
  %v285 = vpack.c.b16 %v237, %v233
  %v286 = vpack.c.b16 %v242, %v238
  %v287 = vpack.c.b16 %v243, %v239
  %v288 = vpack.c.b16 %v244, %v240
  %v289 = vpack.c.b16 %v245, %v241
  %v290 = vpack.c.b16 %v250, %v246
  %v291 = vpack.c.b16 %v251, %v247
  %v292 = vpack.c.b16 %v252, %v248
  %v293 = vpack.c.b16 %v253, %v249
  %v294 = vpack.c.b16 %v258, %v254
  %v295 = vpack.c.b16 %v259, %v255
  %v296 = vpack.c.b16 %v260, %v256
  %v297 = vpack.c.b16 %v261, %v257
  %v298 = vpack.c.b16 %v266, %v262
  %v299 = vpack.c.b16 %v267, %v263
  %v300 = vpack.c.b16 %v268, %v264
  %v301 = vpack.c.b16 %v269, %v265
  %334 = vmatpush.bf16.msra.mxu0 %v298
  %335 = vmatpush.bf16.msra.mxu0 %v294
  %336 = vmatpush.bf16.msra.mxu0 %v290
  %337 = vmatpush.bf16.msra.mxu0 %v286
  %338 = vmatpush.bf16.msra.mxu0 %v282
  %339 = vmatpush.bf16.msra.mxu0 %v278
  %340 = vmatpush.bf16.msra.mxu0 %v274
  %341 = vmatpush.bf16.msra.mxu0 %v270
  %342 = vmatmul.bf16.gmra.mxu0 %v166
  %v343 = vpop.f32.mrf.mxu0
  %v344 = vadd.f32 %v142, %v343
  %v345 = vpop.f32.mrf.mxu0
  %v346 = vadd.f32 %v142, %v345
  %347 = vmatmul.bf16.gmra.mxu0 %v167
  %v348 = vpop.f32.mrf.mxu0
  %v349 = vadd.f32 %v142, %v348
  %v350 = vpop.f32.mrf.mxu0
  %v351 = vadd.f32 %v142, %v350
  %352 = vmatmul.bf16.gmra.mxu0 %v168
  %v353 = vpop.f32.mrf.mxu0
  %v354 = vadd.f32 %v142, %v353
  %v355 = vpop.f32.mrf.mxu0
  %v356 = vadd.f32 %v142, %v355
  %357 = vmatmul.bf16.gmra.mxu0 %v169
  %v358 = vpop.f32.mrf.mxu0
  %v359 = vadd.f32 %v142, %v358
  %v360 = vpop.f32.mrf.mxu0
  %v361 = vadd.f32 %v142, %v360
  %362 = vdwg.mxu0
  %363 = vmatpush.bf16.msra.mxu0 %v299
  %364 = vmatpush.bf16.msra.mxu0 %v295
  %365 = vmatpush.bf16.msra.mxu0 %v291
  %366 = vmatpush.bf16.msra.mxu0 %v287
  %367 = vmatpush.bf16.msra.mxu0 %v283
  %368 = vmatpush.bf16.msra.mxu0 %v279
  %369 = vmatpush.bf16.msra.mxu0 %v275
  %370 = vmatpush.bf16.msra.mxu0 %v271
  %371 = vmatmul.bf16.gmra.mxu0 %v166
  %v372 = vpop.f32.mrf.mxu0
  %v373 = vadd.f32 %v143, %v372
  %v374 = vpop.f32.mrf.mxu0
  %v375 = vadd.f32 %v143, %v374
  %376 = vmatmul.bf16.gmra.mxu0 %v167
  %v377 = vpop.f32.mrf.mxu0
  %v378 = vadd.f32 %v143, %v377
  %v379 = vpop.f32.mrf.mxu0
  %v380 = vadd.f32 %v143, %v379
  %381 = vmatmul.bf16.gmra.mxu0 %v168
  %v382 = vpop.f32.mrf.mxu0
  %v383 = vadd.f32 %v143, %v382
  %v384 = vpop.f32.mrf.mxu0
  %v385 = vadd.f32 %v143, %v384
  %386 = vmatmul.bf16.gmra.mxu0 %v169
  %v387 = vpop.f32.mrf.mxu0
  %v388 = vadd.f32 %v143, %v387
  %v389 = vpop.f32.mrf.mxu0
  %v390 = vadd.f32 %v143, %v389
  %391 = vdwg.mxu0
  %392 = vmatpush.bf16.msra.mxu0 %v300
  %393 = vmatpush.bf16.msra.mxu0 %v296
  %394 = vmatpush.bf16.msra.mxu0 %v292
  %395 = vmatpush.bf16.msra.mxu0 %v288
  %396 = vmatpush.bf16.msra.mxu0 %v284
  %397 = vmatpush.bf16.msra.mxu0 %v280
  %398 = vmatpush.bf16.msra.mxu0 %v276
  %399 = vmatpush.bf16.msra.mxu0 %v272
  %400 = vmatmul.bf16.gmra.mxu0 %v166
  %v401 = vpop.f32.mrf.mxu0
  %v402 = vadd.f32 %v144, %v401
  %v403 = vpop.f32.mrf.mxu0
  %v404 = vadd.f32 %v144, %v403
  %405 = vmatmul.bf16.gmra.mxu0 %v167
  %v406 = vpop.f32.mrf.mxu0
  %v407 = vadd.f32 %v144, %v406
  %v408 = vpop.f32.mrf.mxu0
  %v409 = vadd.f32 %v144, %v408
  %410 = vmatmul.bf16.gmra.mxu0 %v168
  %v411 = vpop.f32.mrf.mxu0
  %v412 = vadd.f32 %v144, %v411
  %v413 = vpop.f32.mrf.mxu0
  %v414 = vadd.f32 %v144, %v413
  %415 = vmatmul.bf16.gmra.mxu0 %v169
  %v416 = vpop.f32.mrf.mxu0
  %v417 = vadd.f32 %v144, %v416
  %v418 = vpop.f32.mrf.mxu0
  %v419 = vadd.f32 %v144, %v418
  %420 = vdwg.mxu0
  %421 = vmatpush.bf16.msra.mxu0 %v301
  %422 = vmatpush.bf16.msra.mxu0 %v297
  %423 = vmatpush.bf16.msra.mxu0 %v293
  %424 = vmatpush.bf16.msra.mxu0 %v289
  %425 = vmatpush.bf16.msra.mxu0 %v285
  %426 = vmatpush.bf16.msra.mxu0 %v281
  %427 = vmatpush.bf16.msra.mxu0 %v277
  %428 = vmatpush.bf16.msra.mxu0 %v273
  %429 = vmatmul.bf16.gmra.mxu0 %v166
  %v430 = vpop.f32.mrf.mxu0
  %v431 = vadd.f32 %v145, %v430
  %v432 = vpop.f32.mrf.mxu0
  %v433 = vadd.f32 %v145, %v432
  %434 = vmatmul.bf16.gmra.mxu0 %v167
  %v435 = vpop.f32.mrf.mxu0
  %v436 = vadd.f32 %v145, %v435
  %v437 = vpop.f32.mrf.mxu0
  %v438 = vadd.f32 %v145, %v437
  %439 = vmatmul.bf16.gmra.mxu0 %v168
  %v440 = vpop.f32.mrf.mxu0
  %v441 = vadd.f32 %v145, %v440
  %v442 = vpop.f32.mrf.mxu0
  %v443 = vadd.f32 %v145, %v442
  %444 = vmatmul.bf16.gmra.mxu0 %v169
  %v445 = vpop.f32.mrf.mxu0
  %v446 = vadd.f32 %v145, %v445
  %v447 = vpop.f32.mrf.mxu0
  %v448 = vadd.f32 %v145, %v447
  %449 = vdwg.mxu0
  %450 = vst [vmem:[%s3] sm:$0xff] %v344
  %451 = vst [vmem:[%s3 + $0x8] sm:$0xff] %v373
  %452 = vst [vmem:[%s3 + $0x10] sm:$0xff] %v402
  %453 = vst [vmem:[%s3 + $0x18] sm:$0xff] %v431
  %454 = vst [vmem:[%s3 + $0x20] sm:$0xff] %v346
  %455 = vst [vmem:[%s3 + $0x28] sm:$0xff] %v375
  %456 = vst [vmem:[%s3 + $0x30] sm:$0xff] %v404
  %457 = vst [vmem:[%s3 + $0x38] sm:$0xff] %v433
  %458 = vst [vmem:[%s3 + $0x40] sm:$0xff] %v349
  %459 = vst [vmem:[%s3 + $0x48] sm:$0xff] %v378
  %460 = vst [vmem:[%s3 + $0x50] sm:$0xff] %v407
  %461 = vst [vmem:[%s3 + $0x58] sm:$0xff] %v436
  %462 = vst [vmem:[%s3 + $0x60] sm:$0xff] %v351
  %463 = vst [vmem:[%s3 + $0x68] sm:$0xff] %v380
  %464 = vst [vmem:[%s3 + $0x70] sm:$0xff] %v409
  %465 = vst [vmem:[%s3 + $0x78] sm:$0xff] %v438
  %466 = vst [vmem:[%s3 + $0x80] sm:$0xff] %v354
  %467 = vst [vmem:[%s3 + $0x88] sm:$0xff] %v383
  %468 = vst [vmem:[%s3 + $0x90] sm:$0xff] %v412
  %469 = vst [vmem:[%s3 + $0x98] sm:$0xff] %v441
  %470 = vst [vmem:[%s3 + $0xa0] sm:$0xff] %v356
  %471 = vst [vmem:[%s3 + $0xa8] sm:$0xff] %v385
  %472 = vst [vmem:[%s3 + $0xb0] sm:$0xff] %v414
  %473 = vst [vmem:[%s3 + $0xb8] sm:$0xff] %v443
  %474 = vst [vmem:[%s3 + $0xc0] sm:$0xff] %v359
  %475 = vst [vmem:[%s3 + $0xc8] sm:$0xff] %v388
  %476 = vst [vmem:[%s3 + $0xd0] sm:$0xff] %v417
  %477 = vst [vmem:[%s3 + $0xd8] sm:$0xff] %v446
  %478 = vst [vmem:[%s3 + $0xe0] sm:$0xff] %v361
  %479 = vst [vmem:[%s3 + $0xe8] sm:$0xff] %v390
  %480 = vst [vmem:[%s3 + $0xf0] sm:$0xff] %v419
  %481 = vst [vmem:[%s3 + $0xf8] sm:$0xff] %v448
  // Predicated region
  $region33: #{stacked_lstm.4} parent=0 // pred_check
    _
  $region34: #{stacked_lstm.4} parent=0 // pred_check_branch
    %483 = sbr.rel (0) target = $region36
  $region35: #{stacked_lstm.4} parent=0 // pred_region
    _
  $region36: #{stacked_lstm.4} parent=0 // pred_fallthru
    _
  // Predicated region
  $region37: #{stacked_lstm.4} parent=0 // pred_check
    _
  $region38: #{stacked_lstm.4} parent=0 // pred_check_branch
    %485 = sbr.rel (0) target = $region40
  $region39: #{stacked_lstm.4} parent=0 // pred_region
    _
  $region40: #{stacked_lstm.4} parent=0 // pred_fallthru
    _
  %486 = vsyncmov [#allocation3]
  %s487 = vpop.sfrf %486
  %p488 = scmp.eq.s32.totalorder %s487, 0
  %p489 = pneg %p488
  %491 = shalt.err (%p489)

// kernel: stacked_lstm.5
$region0: #{stacked_lstm.5}
  #allocation0 [shape = 'u32[]', space=smem, size = 0x4, offset = 0x4, fixed_abs, tag = 'smem constant byte address 0x4 - core index']
  #allocation1 [shape = 'u32[72,128]{1,0:T(1,128)}', space=vmem, size = 0x9000, scoped, tag = 'internal scratch']
  #allocation2 [shape = 'bf16[128,512]{1,0:T(8,128)(2,1)}', space=vmem, size = 0x20000, scoped, tag = 'scratch operand']
  #allocation3 [shape = 'f32[8,128]{1,0:T(8,128)}', space=vmem, size = 0x1000, scoped, tag = 'scratch operand']
  #allocation4 [shape = 'f32[8,128]{1,0:T(8,128)}', space=vmem, size = 0x1000, scoped, tag = 'scratch operand']
  #allocation5 [shape = 's32[1]{0}', space=sflag, size = 0x4, scoped, tag = 'scratch operand']
  #allocation10 [shape = 's32[]', space=sflag, size = 0x4, offset = 0, fixed_abs, tag = 'sflag constant byte address 0x0 - dummy sync flag']
  %s0 = inlined_call_operand.vmem [shape: f32[8,8,512], index: 0, kind: input, shape index: {}]
  %s1 = inlined_call_operand.vmem [shape: bf16[128,512], index: 1, kind: input, shape index: {}]
  %s2 = inlined_call_operand.vmem [shape: bf16[8,8,128], index: 2, kind: output, shape index: {0}]
  %s3 = inlined_call_operand.hbm [shape: f32[8,128], index: 3, kind: output, shape index: {1}]
  %s4 = inlined_call_operand.hbm [shape: f32[8,128], index: 4, kind: output, shape index: {2}]
  %5 = xla_tuple %s2, %s3, %s4
  %s6 = sld [smem:[#allocation0]]
  $region53: #{stacked_lstm.5} parent=0
    _
  %s8 = ssub.s32 1, %s6
  %s9 = scalar_select 0, %s8, %s6
  $region1: #{stacked_lstm.5} parent=0
    #allocation6 [shape = 'u8[4096]{0}', space=vmem, size = 0x1000, scoped, tag = 'output window, operand 1, single buffered']
    #allocation7 [shape = 's32[1]{0}', space=sflag, size = 0x4, scoped, tag = 'scoped memory for stacked_lstm.5']
    #allocation8 [shape = 'u8[4096]{0}', space=vmem, size = 0x1000, scoped, tag = 'output window, operand 2, single buffered']
    #allocation9 [shape = 's32[1]{0}', space=sflag, size = 0x4, scoped, tag = 'scoped memory for stacked_lstm.5']
    %10 = vsyncpa [#allocation7], 0
    %11 = vsyncpa [#allocation9], 0
    // Predicated region
    $region2: #{stacked_lstm.5} parent=1 // pred_check
      _
    $region3: #{stacked_lstm.5} parent=1 // pred_check_branch
      %13 = sbr.rel (0) target = $region5
    $region4: #{stacked_lstm.5} parent=1 // pred_region
      _
    $region5: #{stacked_lstm.5} parent=1 // pred_fallthru
      _
    %p14 = scmp.eq.s32.totalorder 0, 0
    // Predicated region
    $region6: #{stacked_lstm.5} parent=1 // pred_check
      %p15 = pneg %p14
    $region7: #{stacked_lstm.5} parent=1 // pred_check_branch
      %17 = sbr.rel (%p15) target = $region9
    $region8: #{stacked_lstm.5} parent=1 // pred_region
      // Predicated region
      $region10: #{stacked_lstm.5} parent=8 // pred_check
        _
      $region11: #{stacked_lstm.5} parent=8 // pred_check_branch
        %19 = sbr.rel (0) target = $region13
      $region12: #{stacked_lstm.5} parent=8 // pred_region
        loop: start=0, step=1, limit=1
        $region14: #{stacked_lstm.5} parent=12 // loop_pre_header
          _
        $region15: #{stacked_lstm.5} parent=12 // loop_header
          %s21 = sphi 0, %s25
          %p22 = scmp.ge.s32.totalorder %s21, 1
          %s26 = sphi %s1, %s1
          %s27 = sphi [#allocation2], [#allocation2]
        $region16: #{stacked_lstm.5} parent=12 // loop_header_branch
          %24 = sbr.rel (%p22) target = $region20
        $region17: #{stacked_lstm.5} parent=12 // loop_body
          %v28 = vld [vmem:[%s26] sm:$0xff]
          %29 = vst [vmem:[%s27] sm:$0xff] %v28
          %v30 = vld [vmem:[%s26 + $0x8] sm:$0xff]
          %31 = vst [vmem:[%s27 + $0x8] sm:$0xff] %v30
          %v32 = vld [vmem:[%s26 + $0x10] sm:$0xff]
          %33 = vst [vmem:[%s27 + $0x10] sm:$0xff] %v32
          %v34 = vld [vmem:[%s26 + $0x18] sm:$0xff]
          %35 = vst [vmem:[%s27 + $0x18] sm:$0xff] %v34
          %v36 = vld [vmem:[%s26 + $0x20] sm:$0xff]
          %37 = vst [vmem:[%s27 + $0x20] sm:$0xff] %v36
          %v38 = vld [vmem:[%s26 + $0x28] sm:$0xff]
          %39 = vst [vmem:[%s27 + $0x28] sm:$0xff] %v38
          %v40 = vld [vmem:[%s26 + $0x30] sm:$0xff]
          %41 = vst [vmem:[%s27 + $0x30] sm:$0xff] %v40
          %v42 = vld [vmem:[%s26 + $0x38] sm:$0xff]
          %43 = vst [vmem:[%s27 + $0x38] sm:$0xff] %v42
          %v44 = vld [vmem:[%s26 + $0x40] sm:$0xff]
          %45 = vst [vmem:[%s27 + $0x40] sm:$0xff] %v44
          %v46 = vld [vmem:[%s26 + $0x48] sm:$0xff]
          %47 = vst [vmem:[%s27 + $0x48] sm:$0xff] %v46
          %v48 = vld [vmem:[%s26 + $0x50] sm:$0xff]
          %49 = vst [vmem:[%s27 + $0x50] sm:$0xff] %v48
          %v50 = vld [vmem:[%s26 + $0x58] sm:$0xff]
          %51 = vst [vmem:[%s27 + $0x58] sm:$0xff] %v50
          %v52 = vld [vmem:[%s26 + $0x60] sm:$0xff]
          %53 = vst [vmem:[%s27 + $0x60] sm:$0xff] %v52
          %v54 = vld [vmem:[%s26 + $0x68] sm:$0xff]
          %55 = vst [vmem:[%s27 + $0x68] sm:$0xff] %v54
          %v56 = vld [vmem:[%s26 + $0x70] sm:$0xff]
          %57 = vst [vmem:[%s27 + $0x70] sm:$0xff] %v56
          %v58 = vld [vmem:[%s26 + $0x78] sm:$0xff]
          %59 = vst [vmem:[%s27 + $0x78] sm:$0xff] %v58
          %v60 = vld [vmem:[%s26 + $0x80] sm:$0xff]
          %61 = vst [vmem:[%s27 + $0x80] sm:$0xff] %v60
          %v62 = vld [vmem:[%s26 + $0x88] sm:$0xff]
          %63 = vst [vmem:[%s27 + $0x88] sm:$0xff] %v62
          %v64 = vld [vmem:[%s26 + $0x90] sm:$0xff]
          %65 = vst [vmem:[%s27 + $0x90] sm:$0xff] %v64
          %v66 = vld [vmem:[%s26 + $0x98] sm:$0xff]
          %67 = vst [vmem:[%s27 + $0x98] sm:$0xff] %v66
          %v68 = vld [vmem:[%s26 + $0xa0] sm:$0xff]
          %69 = vst [vmem:[%s27 + $0xa0] sm:$0xff] %v68
          %v70 = vld [vmem:[%s26 + $0xa8] sm:$0xff]
          %71 = vst [vmem:[%s27 + $0xa8] sm:$0xff] %v70
          %v72 = vld [vmem:[%s26 + $0xb0] sm:$0xff]
          %73 = vst [vmem:[%s27 + $0xb0] sm:$0xff] %v72
          %v74 = vld [vmem:[%s26 + $0xb8] sm:$0xff]
          %75 = vst [vmem:[%s27 + $0xb8] sm:$0xff] %v74
          %v76 = vld [vmem:[%s26 + $0xc0] sm:$0xff]
          %77 = vst [vmem:[%s27 + $0xc0] sm:$0xff] %v76
          %v78 = vld [vmem:[%s26 + $0xc8] sm:$0xff]
          %79 = vst [vmem:[%s27 + $0xc8] sm:$0xff] %v78
          %v80 = vld [vmem:[%s26 + $0xd0] sm:$0xff]
          %81 = vst [vmem:[%s27 + $0xd0] sm:$0xff] %v80
          %v82 = vld [vmem:[%s26 + $0xd8] sm:$0xff]
          %83 = vst [vmem:[%s27 + $0xd8] sm:$0xff] %v82
          %v84 = vld [vmem:[%s26 + $0xe0] sm:$0xff]
          %85 = vst [vmem:[%s27 + $0xe0] sm:$0xff] %v84
          %v86 = vld [vmem:[%s26 + $0xe8] sm:$0xff]
          %87 = vst [vmem:[%s27 + $0xe8] sm:$0xff] %v86
          %v88 = vld [vmem:[%s26 + $0xf0] sm:$0xff]
          %89 = vst [vmem:[%s27 + $0xf0] sm:$0xff] %v88
          %v90 = vld [vmem:[%s26 + $0xf8] sm:$0xff]
          %91 = vst [vmem:[%s27 + $0xf8] sm:$0xff] %v90
        $region18: #{stacked_lstm.5} parent=12 // loop_footer
          %s25 = sadd.s32 1, %s21
        $region19: #{stacked_lstm.5} parent=12 // loop_footer_branch
          %20 = sbr.rel target = $region15
        $region20: #{stacked_lstm.5} parent=12 // loop_exit
          _
      $region13: #{stacked_lstm.5} parent=8 // pred_fallthru
        _
      // Predicated region
      $region21: #{stacked_lstm.5} parent=8 // pred_check
        _
      $region22: #{stacked_lstm.5} parent=8 // pred_check_branch
        %93 = sbr.rel target = $region24
      $region23: #{stacked_lstm.5} parent=8 // pred_region
        _
      $region24: #{stacked_lstm.5} parent=8 // pred_fallthru
        _
      // Predicated region
      $region25: #{stacked_lstm.5} parent=8 // pred_check
        _
      $region26: #{stacked_lstm.5} parent=8 // pred_check_branch
        %96 = sbr.rel (0) target = $region28
      $region27: #{stacked_lstm.5} parent=8 // pred_region
        %97 = vsyncadd [#allocation5], 4096
      $region28: #{stacked_lstm.5} parent=8 // pred_fallthru
        _
      %s98 = smul.u32 4, 16
      %s99 = smul.u32 %s98, 4
      %s100 = sshll.u32 %s99, 4
      %101 = dma.done [#allocation5], %s100
      %102 = vst [vmem:[#allocation3] sm:$0xff] 0.0
      %103 = vst [vmem:[#allocation4] sm:$0xff] 0.0
    $region9: #{stacked_lstm.5} parent=1 // pred_fallthru
      _
    %v104 = vld [vmem:[#allocation3] sm:$0xff]
    %v105 = vld [vmem:[#allocation4] sm:$0xff]
    %v106 = vld [vmem:[%s0] sm:$0xff]
    %v107 = vld [vmem:[%s0 + $0x8] sm:$0xff]
    %v108 = vld [vmem:[%s0 + $0x10] sm:$0xff]
    %v109 = vld [vmem:[%s0 + $0x18] sm:$0xff]
    %v110 = vpack.c.bf16 %v104, %v104
    %v111 = vld [vmem:[#allocation2] sm:$0xff]
    %v112 = vld [vmem:[#allocation2 + $0x8] sm:$0xff]
    %v113 = vld [vmem:[#allocation2 + $0x10] sm:$0xff]
    %v114 = vld [vmem:[#allocation2 + $0x18] sm:$0xff]
    %v115 = vld [vmem:[#allocation2 + $0x20] sm:$0xff]
    %v116 = vld [vmem:[#allocation2 + $0x28] sm:$0xff]
    %v117 = vld [vmem:[#allocation2 + $0x30] sm:$0xff]
    %v118 = vld [vmem:[#allocation2 + $0x38] sm:$0xff]
    %v119 = vld [vmem:[#allocation2 + $0x40] sm:$0xff]
    %v120 = vld [vmem:[#allocation2 + $0x48] sm:$0xff]
    %v121 = vld [vmem:[#allocation2 + $0x50] sm:$0xff]
    %v122 = vld [vmem:[#allocation2 + $0x58] sm:$0xff]
    %v123 = vld [vmem:[#allocation2 + $0x60] sm:$0xff]
    %v124 = vld [vmem:[#allocation2 + $0x68] sm:$0xff]
    %v125 = vld [vmem:[#allocation2 + $0x70] sm:$0xff]
    %v126 = vld [vmem:[#allocation2 + $0x78] sm:$0xff]
    %v127 = vld [vmem:[#allocation2 + $0x80] sm:$0xff]
    %v128 = vld [vmem:[#allocation2 + $0x88] sm:$0xff]
    %v129 = vld [vmem:[#allocation2 + $0x90] sm:$0xff]
    %v130 = vld [vmem:[#allocation2 + $0x98] sm:$0xff]
    %v131 = vld [vmem:[#allocation2 + $0xa0] sm:$0xff]
    %v132 = vld [vmem:[#allocation2 + $0xa8] sm:$0xff]
    %v133 = vld [vmem:[#allocation2 + $0xb0] sm:$0xff]
    %v134 = vld [vmem:[#allocation2 + $0xb8] sm:$0xff]
    %v135 = vld [vmem:[#allocation2 + $0xc0] sm:$0xff]
    %v136 = vld [vmem:[#allocation2 + $0xc8] sm:$0xff]
    %v137 = vld [vmem:[#allocation2 + $0xd0] sm:$0xff]
    %v138 = vld [vmem:[#allocation2 + $0xd8] sm:$0xff]
    %v139 = vld [vmem:[#allocation2 + $0xe0] sm:$0xff]
    %v140 = vld [vmem:[#allocation2 + $0xe8] sm:$0xff]
    %v141 = vld [vmem:[#allocation2 + $0xf0] sm:$0xff]
    %v142 = vld [vmem:[#allocation2 + $0xf8] sm:$0xff]
    %v175 = vunpack.c.l.b16 %v111
    %v176 = vunpack.c.h.b16 %v111
    %v177 = vunpack.c.l.b16 %v112
    %v178 = vunpack.c.h.b16 %v112
    %v179 = vunpack.c.l.b16 %v113
    %v180 = vunpack.c.h.b16 %v113
    %v181 = vunpack.c.l.b16 %v114
    %v182 = vunpack.c.h.b16 %v114
    %v183 = vunpack.c.l.b16 %v115
    %v184 = vunpack.c.h.b16 %v115
    %v185 = vunpack.c.l.b16 %v116
    %v186 = vunpack.c.h.b16 %v116
    %v187 = vunpack.c.l.b16 %v117
    %v188 = vunpack.c.h.b16 %v117
    %v189 = vunpack.c.l.b16 %v118
    %v190 = vunpack.c.h.b16 %v118
    %v191 = vunpack.c.l.b16 %v119
    %v192 = vunpack.c.h.b16 %v119
    %v193 = vunpack.c.l.b16 %v120
    %v194 = vunpack.c.h.b16 %v120
    %v195 = vunpack.c.l.b16 %v121
    %v196 = vunpack.c.h.b16 %v121
    %v197 = vunpack.c.l.b16 %v122
    %v198 = vunpack.c.h.b16 %v122
    %v199 = vunpack.c.l.b16 %v123
    %v200 = vunpack.c.h.b16 %v123
    %v201 = vunpack.c.l.b16 %v124
    %v202 = vunpack.c.h.b16 %v124
    %v203 = vunpack.c.l.b16 %v125
    %v204 = vunpack.c.h.b16 %v125
    %v205 = vunpack.c.l.b16 %v126
    %v206 = vunpack.c.h.b16 %v126
    %v207 = vunpack.c.l.b16 %v127
    %v208 = vunpack.c.h.b16 %v127
    %v209 = vunpack.c.l.b16 %v128
    %v210 = vunpack.c.h.b16 %v128
    %v211 = vunpack.c.l.b16 %v129
    %v212 = vunpack.c.h.b16 %v129
    %v213 = vunpack.c.l.b16 %v130
    %v214 = vunpack.c.h.b16 %v130
    %v215 = vunpack.c.l.b16 %v131
    %v216 = vunpack.c.h.b16 %v131
    %v217 = vunpack.c.l.b16 %v132
    %v218 = vunpack.c.h.b16 %v132
    %v219 = vunpack.c.l.b16 %v133
    %v220 = vunpack.c.h.b16 %v133
    %v221 = vunpack.c.l.b16 %v134
    %v222 = vunpack.c.h.b16 %v134
    %v223 = vunpack.c.l.b16 %v135
    %v224 = vunpack.c.h.b16 %v135
    %v225 = vunpack.c.l.b16 %v136
    %v226 = vunpack.c.h.b16 %v136
    %v227 = vunpack.c.l.b16 %v137
    %v228 = vunpack.c.h.b16 %v137
    %v229 = vunpack.c.l.b16 %v138
    %v230 = vunpack.c.h.b16 %v138
    %v231 = vunpack.c.l.b16 %v139
    %v232 = vunpack.c.h.b16 %v139
    %v233 = vunpack.c.l.b16 %v140
    %v234 = vunpack.c.h.b16 %v140
    %v235 = vunpack.c.l.b16 %v141
    %v236 = vunpack.c.h.b16 %v141
    %v237 = vunpack.c.l.b16 %v142
    %v238 = vunpack.c.h.b16 %v142
    %v239 = vpack.c.b16 %v179, %v175
    %v240 = vpack.c.b16 %v180, %v176
    %v241 = vpack.c.b16 %v181, %v177
    %v242 = vpack.c.b16 %v182, %v178
    %v243 = vpack.c.b16 %v187, %v183
    %v244 = vpack.c.b16 %v188, %v184
    %v245 = vpack.c.b16 %v189, %v185
    %v246 = vpack.c.b16 %v190, %v186
    %v247 = vpack.c.b16 %v195, %v191
    %v248 = vpack.c.b16 %v196, %v192
    %v249 = vpack.c.b16 %v197, %v193
    %v250 = vpack.c.b16 %v198, %v194
    %v251 = vpack.c.b16 %v203, %v199
    %v252 = vpack.c.b16 %v204, %v200
    %v253 = vpack.c.b16 %v205, %v201
    %v254 = vpack.c.b16 %v206, %v202
    %v255 = vpack.c.b16 %v211, %v207
    %v256 = vpack.c.b16 %v212, %v208
    %v257 = vpack.c.b16 %v213, %v209
    %v258 = vpack.c.b16 %v214, %v210
    %v259 = vpack.c.b16 %v219, %v215
    %v260 = vpack.c.b16 %v220, %v216
    %v261 = vpack.c.b16 %v221, %v217
    %v262 = vpack.c.b16 %v222, %v218
    %v263 = vpack.c.b16 %v227, %v223
    %v264 = vpack.c.b16 %v228, %v224
    %v265 = vpack.c.b16 %v229, %v225
    %v266 = vpack.c.b16 %v230, %v226
    %v267 = vpack.c.b16 %v235, %v231
    %v268 = vpack.c.b16 %v236, %v232
    %v269 = vpack.c.b16 %v237, %v233
    %v270 = vpack.c.b16 %v238, %v234
    %303 = vmatpush.bf16.msra.mxu0 %v267
    %304 = vmatpush.bf16.msra.mxu0 %v263
    %305 = vmatpush.bf16.msra.mxu0 %v259
    %306 = vmatpush.bf16.msra.mxu0 %v255
    %307 = vmatpush.bf16.msra.mxu0 %v251
    %308 = vmatpush.bf16.msra.mxu0 %v247
    %309 = vmatpush.bf16.msra.mxu0 %v243
    %310 = vmatpush.bf16.msra.mxu0 %v239
    %311 = vmatmul.bf16.gmra.mxu0 %v110
    %v312 = vpop.f32.mrf.mxu0
    %v313 = vadd.f32 0.0, %v312
    %v314 = vpop.f32.mrf.mxu0
    %315 = vdwg.mxu0
    %316 = vmatpush.bf16.msra.mxu0 %v268
    %317 = vmatpush.bf16.msra.mxu0 %v264
    %318 = vmatpush.bf16.msra.mxu0 %v260
    %319 = vmatpush.bf16.msra.mxu0 %v256
    %320 = vmatpush.bf16.msra.mxu0 %v252
    %321 = vmatpush.bf16.msra.mxu0 %v248
    %322 = vmatpush.bf16.msra.mxu0 %v244
    %323 = vmatpush.bf16.msra.mxu0 %v240
    %324 = vmatmul.bf16.gmra.mxu0 %v110
    %v325 = vpop.f32.mrf.mxu0
    %v326 = vadd.f32 0.0, %v325
    %v327 = vpop.f32.mrf.mxu0
    %328 = vdwg.mxu0
    %329 = vmatpush.bf16.msra.mxu0 %v269
    %330 = vmatpush.bf16.msra.mxu0 %v265
    %331 = vmatpush.bf16.msra.mxu0 %v261
    %332 = vmatpush.bf16.msra.mxu0 %v257
    %333 = vmatpush.bf16.msra.mxu0 %v253
    %334 = vmatpush.bf16.msra.mxu0 %v249
    %335 = vmatpush.bf16.msra.mxu0 %v245
    %336 = vmatpush.bf16.msra.mxu0 %v241
    %337 = vmatmul.bf16.gmra.mxu0 %v110
    %v338 = vpop.f32.mrf.mxu0
    %v339 = vadd.f32 0.0, %v338
    %v340 = vpop.f32.mrf.mxu0
    %341 = vdwg.mxu0
    %342 = vmatpush.bf16.msra.mxu0 %v270
    %343 = vmatpush.bf16.msra.mxu0 %v266
    %344 = vmatpush.bf16.msra.mxu0 %v262
    %345 = vmatpush.bf16.msra.mxu0 %v258
    %346 = vmatpush.bf16.msra.mxu0 %v254
    %347 = vmatpush.bf16.msra.mxu0 %v250
    %348 = vmatpush.bf16.msra.mxu0 %v246
    %349 = vmatpush.bf16.msra.mxu0 %v242
    %350 = vmatmul.bf16.gmra.mxu0 %v110
    %v351 = vpop.f32.mrf.mxu0
    %v352 = vadd.f32 0.0, %v351
    %v353 = vpop.f32.mrf.mxu0
    %354 = vdwg.mxu0
    %v355 = vadd.f32 %v106, %v313
    %v356 = vadd.f32 %v107, %v326
    %v357 = vadd.f32 %v108, %v339
    %v358 = vadd.f32 %v109, %v352
    %v359 = vmul.f32 %v355, 0.5
    %v360 = vtanh.pop %v359
    %v361 = vadd.f32 %v360, 1.0
    %v362 = vmul.f32 %v361, 0.5
    %v363 = vmul.f32 %v356, 0.5
    %v364 = vtanh.pop %v363
    %v365 = vadd.f32 %v364, 1.0
    %v366 = vmul.f32 %v365, 0.5
    %v367 = vtanh.pop %v357
    %v368 = vmul.f32 %v358, 0.5
    %v369 = vtanh.pop %v368
    %v370 = vadd.f32 %v369, 1.0
    %v371 = vmul.f32 %v370, 0.5
    %v372 = vmul.f32 %v366, %v105
    %v373 = vmul.f32 %v362, %v367
    %v374 = vadd.f32 %v372, %v373
    %v375 = vtanh.pop %v374
    %v376 = vmul.f32 %v371, %v375
    %v377 = vpack.c.bf16 %v376, %v376
    %378 = vst [vmem:[%s2] sm:$0xf] %v377
    %s379 = scalar_lea.vmem %s0, 32
    %v380 = vld [vmem:[%s379] sm:$0xff]
    %v381 = vld [vmem:[%s379 + $0x8] sm:$0xff]
    %v382 = vld [vmem:[%s379 + $0x10] sm:$0xff]
    %v383 = vld [vmem:[%s379 + $0x18] sm:$0xff]
    %v384 = vld [vmem:[#allocation2] sm:$0xff]
    %v385 = vld [vmem:[#allocation2 + $0x8] sm:$0xff]
    %v386 = vld [vmem:[#allocation2 + $0x10] sm:$0xff]
    %v387 = vld [vmem:[#allocation2 + $0x18] sm:$0xff]
    %v388 = vld [vmem:[#allocation2 + $0x20] sm:$0xff]
    %v389 = vld [vmem:[#allocation2 + $0x28] sm:$0xff]
    %v390 = vld [vmem:[#allocation2 + $0x30] sm:$0xff]
    %v391 = vld [vmem:[#allocation2 + $0x38] sm:$0xff]
    %v392 = vld [vmem:[#allocation2 + $0x40] sm:$0xff]
    %v393 = vld [vmem:[#allocation2 + $0x48] sm:$0xff]
    %v394 = vld [vmem:[#allocation2 + $0x50] sm:$0xff]
    %v395 = vld [vmem:[#allocation2 + $0x58] sm:$0xff]
    %v396 = vld [vmem:[#allocation2 + $0x60] sm:$0xff]
    %v397 = vld [vmem:[#allocation2 + $0x68] sm:$0xff]
    %v398 = vld [vmem:[#allocation2 + $0x70] sm:$0xff]
    %v399 = vld [vmem:[#allocation2 + $0x78] sm:$0xff]
    %v400 = vld [vmem:[#allocation2 + $0x80] sm:$0xff]
    %v401 = vld [vmem:[#allocation2 + $0x88] sm:$0xff]
    %v402 = vld [vmem:[#allocation2 + $0x90] sm:$0xff]
    %v403 = vld [vmem:[#allocation2 + $0x98] sm:$0xff]
    %v404 = vld [vmem:[#allocation2 + $0xa0] sm:$0xff]
    %v405 = vld [vmem:[#allocation2 + $0xa8] sm:$0xff]
    %v406 = vld [vmem:[#allocation2 + $0xb0] sm:$0xff]
    %v407 = vld [vmem:[#allocation2 + $0xb8] sm:$0xff]
    %v408 = vld [vmem:[#allocation2 + $0xc0] sm:$0xff]
    %v409 = vld [vmem:[#allocation2 + $0xc8] sm:$0xff]
    %v410 = vld [vmem:[#allocation2 + $0xd0] sm:$0xff]
    %v411 = vld [vmem:[#allocation2 + $0xd8] sm:$0xff]
    %v412 = vld [vmem:[#allocation2 + $0xe0] sm:$0xff]
    %v413 = vld [vmem:[#allocation2 + $0xe8] sm:$0xff]
    %v414 = vld [vmem:[#allocation2 + $0xf0] sm:$0xff]
    %v415 = vld [vmem:[#allocation2 + $0xf8] sm:$0xff]
    %v448 = vunpack.c.l.b16 %v384
    %v449 = vunpack.c.h.b16 %v384
    %v450 = vunpack.c.l.b16 %v385
    %v451 = vunpack.c.h.b16 %v385
    %v452 = vunpack.c.l.b16 %v386
    %v453 = vunpack.c.h.b16 %v386
    %v454 = vunpack.c.l.b16 %v387
    %v455 = vunpack.c.h.b16 %v387
    %v456 = vunpack.c.l.b16 %v388
    %v457 = vunpack.c.h.b16 %v388
    %v458 = vunpack.c.l.b16 %v389
    %v459 = vunpack.c.h.b16 %v389
    %v460 = vunpack.c.l.b16 %v390
    %v461 = vunpack.c.h.b16 %v390
    %v462 = vunpack.c.l.b16 %v391
    %v463 = vunpack.c.h.b16 %v391
    %v464 = vunpack.c.l.b16 %v392
    %v465 = vunpack.c.h.b16 %v392
    %v466 = vunpack.c.l.b16 %v393
    %v467 = vunpack.c.h.b16 %v393
    %v468 = vunpack.c.l.b16 %v394
    %v469 = vunpack.c.h.b16 %v394
    %v470 = vunpack.c.l.b16 %v395
    %v471 = vunpack.c.h.b16 %v395
    %v472 = vunpack.c.l.b16 %v396
    %v473 = vunpack.c.h.b16 %v396
    %v474 = vunpack.c.l.b16 %v397
    %v475 = vunpack.c.h.b16 %v397
    %v476 = vunpack.c.l.b16 %v398
    %v477 = vunpack.c.h.b16 %v398
    %v478 = vunpack.c.l.b16 %v399
    %v479 = vunpack.c.h.b16 %v399
    %v480 = vunpack.c.l.b16 %v400
    %v481 = vunpack.c.h.b16 %v400
    %v482 = vunpack.c.l.b16 %v401
    %v483 = vunpack.c.h.b16 %v401
    %v484 = vunpack.c.l.b16 %v402
    %v485 = vunpack.c.h.b16 %v402
    %v486 = vunpack.c.l.b16 %v403
    %v487 = vunpack.c.h.b16 %v403
    %v488 = vunpack.c.l.b16 %v404
    %v489 = vunpack.c.h.b16 %v404
    %v490 = vunpack.c.l.b16 %v405
    %v491 = vunpack.c.h.b16 %v405
    %v492 = vunpack.c.l.b16 %v406
    %v493 = vunpack.c.h.b16 %v406
    %v494 = vunpack.c.l.b16 %v407
    %v495 = vunpack.c.h.b16 %v407
    %v496 = vunpack.c.l.b16 %v408
    %v497 = vunpack.c.h.b16 %v408
    %v498 = vunpack.c.l.b16 %v409
    %v499 = vunpack.c.h.b16 %v409
    %v500 = vunpack.c.l.b16 %v410
    %v501 = vunpack.c.h.b16 %v410
    %v502 = vunpack.c.l.b16 %v411
    %v503 = vunpack.c.h.b16 %v411
    %v504 = vunpack.c.l.b16 %v412
    %v505 = vunpack.c.h.b16 %v412
    %v506 = vunpack.c.l.b16 %v413
    %v507 = vunpack.c.h.b16 %v413
    %v508 = vunpack.c.l.b16 %v414
    %v509 = vunpack.c.h.b16 %v414
    %v510 = vunpack.c.l.b16 %v415
    %v511 = vunpack.c.h.b16 %v415
    %v512 = vpack.c.b16 %v452, %v448
    %v513 = vpack.c.b16 %v453, %v449
    %v514 = vpack.c.b16 %v454, %v450
    %v515 = vpack.c.b16 %v455, %v451
    %v516 = vpack.c.b16 %v460, %v456
    %v517 = vpack.c.b16 %v461, %v457
    %v518 = vpack.c.b16 %v462, %v458
    %v519 = vpack.c.b16 %v463, %v459
    %v520 = vpack.c.b16 %v468, %v464
    %v521 = vpack.c.b16 %v469, %v465
    %v522 = vpack.c.b16 %v470, %v466
    %v523 = vpack.c.b16 %v471, %v467
    %v524 = vpack.c.b16 %v476, %v472
    %v525 = vpack.c.b16 %v477, %v473
    %v526 = vpack.c.b16 %v478, %v474
    %v527 = vpack.c.b16 %v479, %v475
    %v528 = vpack.c.b16 %v484, %v480
    %v529 = vpack.c.b16 %v485, %v481
    %v530 = vpack.c.b16 %v486, %v482
    %v531 = vpack.c.b16 %v487, %v483
    %v532 = vpack.c.b16 %v492, %v488
    %v533 = vpack.c.b16 %v493, %v489
    %v534 = vpack.c.b16 %v494, %v490
    %v535 = vpack.c.b16 %v495, %v491
    %v536 = vpack.c.b16 %v500, %v496
    %v537 = vpack.c.b16 %v501, %v497
    %v538 = vpack.c.b16 %v502, %v498
    %v539 = vpack.c.b16 %v503, %v499
    %v540 = vpack.c.b16 %v508, %v504
    %v541 = vpack.c.b16 %v509, %v505
    %v542 = vpack.c.b16 %v510, %v506
    %v543 = vpack.c.b16 %v511, %v507
    %576 = vmatpush.bf16.msra.mxu0 %v540
    %577 = vmatpush.bf16.msra.mxu0 %v536
    %578 = vmatpush.bf16.msra.mxu0 %v532
    %579 = vmatpush.bf16.msra.mxu0 %v528
    %580 = vmatpush.bf16.msra.mxu0 %v524
    %581 = vmatpush.bf16.msra.mxu0 %v520
    %582 = vmatpush.bf16.msra.mxu0 %v516
    %583 = vmatpush.bf16.msra.mxu0 %v512
    %584 = vmatmul.bf16.gmra.mxu0 %v377
    %v585 = vpop.f32.mrf.mxu0
    %v586 = vadd.f32 0.0, %v585
    %v587 = vpop.f32.mrf.mxu0
    %588 = vdwg.mxu0
    %589 = vmatpush.bf16.msra.mxu0 %v541
    %590 = vmatpush.bf16.msra.mxu0 %v537
    %591 = vmatpush.bf16.msra.mxu0 %v533
    %592 = vmatpush.bf16.msra.mxu0 %v529
    %593 = vmatpush.bf16.msra.mxu0 %v525
    %594 = vmatpush.bf16.msra.mxu0 %v521
    %595 = vmatpush.bf16.msra.mxu0 %v517
    %596 = vmatpush.bf16.msra.mxu0 %v513
    %597 = vmatmul.bf16.gmra.mxu0 %v377
    %v598 = vpop.f32.mrf.mxu0
    %v599 = vadd.f32 0.0, %v598
    %v600 = vpop.f32.mrf.mxu0
    %601 = vdwg.mxu0
    %602 = vmatpush.bf16.msra.mxu0 %v542
    %603 = vmatpush.bf16.msra.mxu0 %v538
    %604 = vmatpush.bf16.msra.mxu0 %v534
    %605 = vmatpush.bf16.msra.mxu0 %v530
    %606 = vmatpush.bf16.msra.mxu0 %v526
    %607 = vmatpush.bf16.msra.mxu0 %v522
    %608 = vmatpush.bf16.msra.mxu0 %v518
    %609 = vmatpush.bf16.msra.mxu0 %v514
    %610 = vmatmul.bf16.gmra.mxu0 %v377
    %v611 = vpop.f32.mrf.mxu0
    %v612 = vadd.f32 0.0, %v611
    %v613 = vpop.f32.mrf.mxu0
    %614 = vdwg.mxu0
    %615 = vmatpush.bf16.msra.mxu0 %v543
    %616 = vmatpush.bf16.msra.mxu0 %v539
    %617 = vmatpush.bf16.msra.mxu0 %v535
    %618 = vmatpush.bf16.msra.mxu0 %v531
    %619 = vmatpush.bf16.msra.mxu0 %v527
    %620 = vmatpush.bf16.msra.mxu0 %v523
    %621 = vmatpush.bf16.msra.mxu0 %v519
    %622 = vmatpush.bf16.msra.mxu0 %v515
    %623 = vmatmul.bf16.gmra.mxu0 %v377
    %v624 = vpop.f32.mrf.mxu0
    %v625 = vadd.f32 0.0, %v624
    %v626 = vpop.f32.mrf.mxu0
    %627 = vdwg.mxu0
    %v628 = vadd.f32 %v380, %v586
    %v629 = vadd.f32 %v381, %v599
    %v630 = vadd.f32 %v382, %v612
    %v631 = vadd.f32 %v383, %v625
    %v632 = vmul.f32 %v628, 0.5
    %v633 = vtanh.pop %v632
    %v634 = vadd.f32 %v633, 1.0
    %v635 = vmul.f32 %v634, 0.5
    %v636 = vmul.f32 %v629, 0.5
    %v637 = vtanh.pop %v636
    %v638 = vadd.f32 %v637, 1.0
    %v639 = vmul.f32 %v638, 0.5
    %v640 = vtanh.pop %v630
    %v641 = vmul.f32 %v631, 0.5
    %v642 = vtanh.pop %v641
    %v643 = vadd.f32 %v642, 1.0
    %v644 = vmul.f32 %v643, 0.5
    %v645 = vmul.f32 %v639, %v374
    %v646 = vmul.f32 %v635, %v640
    %v647 = vadd.f32 %v645, %v646
    %v648 = vtanh.pop %v647
    %v649 = vmul.f32 %v644, %v648
    %v650 = vpack.c.bf16 %v649, %v649
    %s651 = scalar_lea.vmem %s2, 4
    %652 = vst [vmem:[%s651] sm:$0xf] %v650
    %s653 = scalar_lea.vmem %s0, 64
    %v654 = vld [vmem:[%s653] sm:$0xff]
    %v655 = vld [vmem:[%s653 + $0x8] sm:$0xff]
    %v656 = vld [vmem:[%s653 + $0x10] sm:$0xff]
    %v657 = vld [vmem:[%s653 + $0x18] sm:$0xff]
    %v658 = vld [vmem:[#allocation2] sm:$0xff]
    %v659 = vld [vmem:[#allocation2 + $0x8] sm:$0xff]
    %v660 = vld [vmem:[#allocation2 + $0x10] sm:$0xff]
    %v661 = vld [vmem:[#allocation2 + $0x18] sm:$0xff]
    %v662 = vld [vmem:[#allocation2 + $0x20] sm:$0xff]
    %v663 = vld [vmem:[#allocation2 + $0x28] sm:$0xff]
    %v664 = vld [vmem:[#allocation2 + $0x30] sm:$0xff]
    %v665 = vld [vmem:[#allocation2 + $0x38] sm:$0xff]
    %v666 = vld [vmem:[#allocation2 + $0x40] sm:$0xff]
    %v667 = vld [vmem:[#allocation2 + $0x48] sm:$0xff]
    %v668 = vld [vmem:[#allocation2 + $0x50] sm:$0xff]
    %v669 = vld [vmem:[#allocation2 + $0x58] sm:$0xff]
    %v670 = vld [vmem:[#allocation2 + $0x60] sm:$0xff]
    %v671 = vld [vmem:[#allocation2 + $0x68] sm:$0xff]
    %v672 = vld [vmem:[#allocation2 + $0x70] sm:$0xff]
    %v673 = vld [vmem:[#allocation2 + $0x78] sm:$0xff]
    %v674 = vld [vmem:[#allocation2 + $0x80] sm:$0xff]
    %v675 = vld [vmem:[#allocation2 + $0x88] sm:$0xff]
    %v676 = vld [vmem:[#allocation2 + $0x90] sm:$0xff]
    %v677 = vld [vmem:[#allocation2 + $0x98] sm:$0xff]
    %v678 = vld [vmem:[#allocation2 + $0xa0] sm:$0xff]
    %v679 = vld [vmem:[#allocation2 + $0xa8] sm:$0xff]
    %v680 = vld [vmem:[#allocation2 + $0xb0] sm:$0xff]
    %v681 = vld [vmem:[#allocation2 + $0xb8] sm:$0xff]
    %v682 = vld [vmem:[#allocation2 + $0xc0] sm:$0xff]
    %v683 = vld [vmem:[#allocation2 + $0xc8] sm:$0xff]
    %v684 = vld [vmem:[#allocation2 + $0xd0] sm:$0xff]
    %v685 = vld [vmem:[#allocation2 + $0xd8] sm:$0xff]
    %v686 = vld [vmem:[#allocation2 + $0xe0] sm:$0xff]
    %v687 = vld [vmem:[#allocation2 + $0xe8] sm:$0xff]
    %v688 = vld [vmem:[#allocation2 + $0xf0] sm:$0xff]
    %v689 = vld [vmem:[#allocation2 + $0xf8] sm:$0xff]
    %v722 = vunpack.c.l.b16 %v658
    %v723 = vunpack.c.h.b16 %v658
    %v724 = vunpack.c.l.b16 %v659
    %v725 = vunpack.c.h.b16 %v659
    %v726 = vunpack.c.l.b16 %v660
    %v727 = vunpack.c.h.b16 %v660
    %v728 = vunpack.c.l.b16 %v661
    %v729 = vunpack.c.h.b16 %v661
    %v730 = vunpack.c.l.b16 %v662
    %v731 = vunpack.c.h.b16 %v662
    %v732 = vunpack.c.l.b16 %v663
    %v733 = vunpack.c.h.b16 %v663
    %v734 = vunpack.c.l.b16 %v664
    %v735 = vunpack.c.h.b16 %v664
    %v736 = vunpack.c.l.b16 %v665
    %v737 = vunpack.c.h.b16 %v665
    %v738 = vunpack.c.l.b16 %v666
    %v739 = vunpack.c.h.b16 %v666
    %v740 = vunpack.c.l.b16 %v667
    %v741 = vunpack.c.h.b16 %v667
    %v742 = vunpack.c.l.b16 %v668
    %v743 = vunpack.c.h.b16 %v668
    %v744 = vunpack.c.l.b16 %v669
    %v745 = vunpack.c.h.b16 %v669
    %v746 = vunpack.c.l.b16 %v670
    %v747 = vunpack.c.h.b16 %v670
    %v748 = vunpack.c.l.b16 %v671
    %v749 = vunpack.c.h.b16 %v671
    %v750 = vunpack.c.l.b16 %v672
    %v751 = vunpack.c.h.b16 %v672
    %v752 = vunpack.c.l.b16 %v673
    %v753 = vunpack.c.h.b16 %v673
    %v754 = vunpack.c.l.b16 %v674
    %v755 = vunpack.c.h.b16 %v674
    %v756 = vunpack.c.l.b16 %v675
    %v757 = vunpack.c.h.b16 %v675
    %v758 = vunpack.c.l.b16 %v676
    %v759 = vunpack.c.h.b16 %v676
    %v760 = vunpack.c.l.b16 %v677
    %v761 = vunpack.c.h.b16 %v677
    %v762 = vunpack.c.l.b16 %v678
    %v763 = vunpack.c.h.b16 %v678
    %v764 = vunpack.c.l.b16 %v679
    %v765 = vunpack.c.h.b16 %v679
    %v766 = vunpack.c.l.b16 %v680
    %v767 = vunpack.c.h.b16 %v680
    %v768 = vunpack.c.l.b16 %v681
    %v769 = vunpack.c.h.b16 %v681
    %v770 = vunpack.c.l.b16 %v682
    %v771 = vunpack.c.h.b16 %v682
    %v772 = vunpack.c.l.b16 %v683
    %v773 = vunpack.c.h.b16 %v683
    %v774 = vunpack.c.l.b16 %v684
    %v775 = vunpack.c.h.b16 %v684
    %v776 = vunpack.c.l.b16 %v685
    %v777 = vunpack.c.h.b16 %v685
    %v778 = vunpack.c.l.b16 %v686
    %v779 = vunpack.c.h.b16 %v686
    %v780 = vunpack.c.l.b16 %v687
    %v781 = vunpack.c.h.b16 %v687
    %v782 = vunpack.c.l.b16 %v688
    %v783 = vunpack.c.h.b16 %v688
    %v784 = vunpack.c.l.b16 %v689
    %v785 = vunpack.c.h.b16 %v689
    %v786 = vpack.c.b16 %v726, %v722
    %v787 = vpack.c.b16 %v727, %v723
    %v788 = vpack.c.b16 %v728, %v724
    %v789 = vpack.c.b16 %v729, %v725
    %v790 = vpack.c.b16 %v734, %v730
    %v791 = vpack.c.b16 %v735, %v731
    %v792 = vpack.c.b16 %v736, %v732
    %v793 = vpack.c.b16 %v737, %v733
    %v794 = vpack.c.b16 %v742, %v738
    %v795 = vpack.c.b16 %v743, %v739
    %v796 = vpack.c.b16 %v744, %v740
    %v797 = vpack.c.b16 %v745, %v741
    %v798 = vpack.c.b16 %v750, %v746
    %v799 = vpack.c.b16 %v751, %v747
    %v800 = vpack.c.b16 %v752, %v748
    %v801 = vpack.c.b16 %v753, %v749
    %v802 = vpack.c.b16 %v758, %v754
    %v803 = vpack.c.b16 %v759, %v755
    %v804 = vpack.c.b16 %v760, %v756
    %v805 = vpack.c.b16 %v761, %v757
    %v806 = vpack.c.b16 %v766, %v762
    %v807 = vpack.c.b16 %v767, %v763
    %v808 = vpack.c.b16 %v768, %v764
    %v809 = vpack.c.b16 %v769, %v765
    %v810 = vpack.c.b16 %v774, %v770
    %v811 = vpack.c.b16 %v775, %v771
    %v812 = vpack.c.b16 %v776, %v772
    %v813 = vpack.c.b16 %v777, %v773
    %v814 = vpack.c.b16 %v782, %v778
    %v815 = vpack.c.b16 %v783, %v779
    %v816 = vpack.c.b16 %v784, %v780
    %v817 = vpack.c.b16 %v785, %v781
    %850 = vmatpush.bf16.msra.mxu0 %v814
    %851 = vmatpush.bf16.msra.mxu0 %v810
    %852 = vmatpush.bf16.msra.mxu0 %v806
    %853 = vmatpush.bf16.msra.mxu0 %v802
    %854 = vmatpush.bf16.msra.mxu0 %v798
    %855 = vmatpush.bf16.msra.mxu0 %v794
    %856 = vmatpush.bf16.msra.mxu0 %v790
    %857 = vmatpush.bf16.msra.mxu0 %v786
    %858 = vmatmul.bf16.gmra.mxu0 %v650
    %v859 = vpop.f32.mrf.mxu0
    %v860 = vadd.f32 0.0, %v859
    %v861 = vpop.f32.mrf.mxu0
    %862 = vdwg.mxu0
    %863 = vmatpush.bf16.msra.mxu0 %v815
    %864 = vmatpush.bf16.msra.mxu0 %v811
    %865 = vmatpush.bf16.msra.mxu0 %v807
    %866 = vmatpush.bf16.msra.mxu0 %v803
    %867 = vmatpush.bf16.msra.mxu0 %v799
    %868 = vmatpush.bf16.msra.mxu0 %v795
    %869 = vmatpush.bf16.msra.mxu0 %v791
    %870 = vmatpush.bf16.msra.mxu0 %v787
    %871 = vmatmul.bf16.gmra.mxu0 %v650
    %v872 = vpop.f32.mrf.mxu0
    %v873 = vadd.f32 0.0, %v872
    %v874 = vpop.f32.mrf.mxu0
    %875 = vdwg.mxu0
    %876 = vmatpush.bf16.msra.mxu0 %v816
    %877 = vmatpush.bf16.msra.mxu0 %v812
    %878 = vmatpush.bf16.msra.mxu0 %v808
    %879 = vmatpush.bf16.msra.mxu0 %v804
    %880 = vmatpush.bf16.msra.mxu0 %v800
    %881 = vmatpush.bf16.msra.mxu0 %v796
    %882 = vmatpush.bf16.msra.mxu0 %v792
    %883 = vmatpush.bf16.msra.mxu0 %v788
    %884 = vmatmul.bf16.gmra.mxu0 %v650
    %v885 = vpop.f32.mrf.mxu0
    %v886 = vadd.f32 0.0, %v885
    %v887 = vpop.f32.mrf.mxu0
    %888 = vdwg.mxu0
    %889 = vmatpush.bf16.msra.mxu0 %v817
    %890 = vmatpush.bf16.msra.mxu0 %v813
    %891 = vmatpush.bf16.msra.mxu0 %v809
    %892 = vmatpush.bf16.msra.mxu0 %v805
    %893 = vmatpush.bf16.msra.mxu0 %v801
    %894 = vmatpush.bf16.msra.mxu0 %v797
    %895 = vmatpush.bf16.msra.mxu0 %v793
    %896 = vmatpush.bf16.msra.mxu0 %v789
    %897 = vmatmul.bf16.gmra.mxu0 %v650
    %v898 = vpop.f32.mrf.mxu0
    %v899 = vadd.f32 0.0, %v898
    %v900 = vpop.f32.mrf.mxu0
    %901 = vdwg.mxu0
    %v902 = vadd.f32 %v654, %v860
    %v903 = vadd.f32 %v655, %v873
    %v904 = vadd.f32 %v656, %v886
    %v905 = vadd.f32 %v657, %v899
    %v906 = vmul.f32 %v902, 0.5
    %v907 = vtanh.pop %v906
    %v908 = vadd.f32 %v907, 1.0
    %v909 = vmul.f32 %v908, 0.5
    %v910 = vmul.f32 %v903, 0.5
    %v911 = vtanh.pop %v910
    %v912 = vadd.f32 %v911, 1.0
    %v913 = vmul.f32 %v912, 0.5
    %v914 = vtanh.pop %v904
    %v915 = vmul.f32 %v905, 0.5
    %v916 = vtanh.pop %v915
    %v917 = vadd.f32 %v916, 1.0
    %v918 = vmul.f32 %v917, 0.5
    %v919 = vmul.f32 %v913, %v647
    %v920 = vmul.f32 %v909, %v914
    %v921 = vadd.f32 %v919, %v920
    %v922 = vtanh.pop %v921
    %v923 = vmul.f32 %v918, %v922
    %v924 = vpack.c.bf16 %v923, %v923
    %s925 = scalar_lea.vmem %s2, 8
    %926 = vst [vmem:[%s925] sm:$0xf] %v924
    %s927 = scalar_lea.vmem %s0, 96
    %v928 = vld [vmem:[%s927] sm:$0xff]
    %v929 = vld [vmem:[%s927 + $0x8] sm:$0xff]
    %v930 = vld [vmem:[%s927 + $0x10] sm:$0xff]
    %v931 = vld [vmem:[%s927 + $0x18] sm:$0xff]
    %v932 = vld [vmem:[#allocation2] sm:$0xff]
    %v933 = vld [vmem:[#allocation2 + $0x8] sm:$0xff]
    %v934 = vld [vmem:[#allocation2 + $0x10] sm:$0xff]
    %v935 = vld [vmem:[#allocation2 + $0x18] sm:$0xff]
    %v936 = vld [vmem:[#allocation2 + $0x20] sm:$0xff]
    %v937 = vld [vmem:[#allocation2 + $0x28] sm:$0xff]
    %v938 = vld [vmem:[#allocation2 + $0x30] sm:$0xff]
    %v939 = vld [vmem:[#allocation2 + $0x38] sm:$0xff]
    %v940 = vld [vmem:[#allocation2 + $0x40] sm:$0xff]
    %v941 = vld [vmem:[#allocation2 + $0x48] sm:$0xff]
    %v942 = vld [vmem:[#allocation2 + $0x50] sm:$0xff]
    %v943 = vld [vmem:[#allocation2 + $0x58] sm:$0xff]
    %v944 = vld [vmem:[#allocation2 + $0x60] sm:$0xff]
    %v945 = vld [vmem:[#allocation2 + $0x68] sm:$0xff]
    %v946 = vld [vmem:[#allocation2 + $0x70] sm:$0xff]
    %v947 = vld [vmem:[#allocation2 + $0x78] sm:$0xff]
    %v948 = vld [vmem:[#allocation2 + $0x80] sm:$0xff]
    %v949 = vld [vmem:[#allocation2 + $0x88] sm:$0xff]
    %v950 = vld [vmem:[#allocation2 + $0x90] sm:$0xff]
    %v951 = vld [vmem:[#allocation2 + $0x98] sm:$0xff]
    %v952 = vld [vmem:[#allocation2 + $0xa0] sm:$0xff]
    %v953 = vld [vmem:[#allocation2 + $0xa8] sm:$0xff]
    %v954 = vld [vmem:[#allocation2 + $0xb0] sm:$0xff]
    %v955 = vld [vmem:[#allocation2 + $0xb8] sm:$0xff]
    %v956 = vld [vmem:[#allocation2 + $0xc0] sm:$0xff]
    %v957 = vld [vmem:[#allocation2 + $0xc8] sm:$0xff]
    %v958 = vld [vmem:[#allocation2 + $0xd0] sm:$0xff]
    %v959 = vld [vmem:[#allocation2 + $0xd8] sm:$0xff]
    %v960 = vld [vmem:[#allocation2 + $0xe0] sm:$0xff]
    %v961 = vld [vmem:[#allocation2 + $0xe8] sm:$0xff]
    %v962 = vld [vmem:[#allocation2 + $0xf0] sm:$0xff]
    %v963 = vld [vmem:[#allocation2 + $0xf8] sm:$0xff]
    %v996 = vunpack.c.l.b16 %v932
    %v997 = vunpack.c.h.b16 %v932
    %v998 = vunpack.c.l.b16 %v933
    %v999 = vunpack.c.h.b16 %v933
    %v1000 = vunpack.c.l.b16 %v934
    %v1001 = vunpack.c.h.b16 %v934
    %v1002 = vunpack.c.l.b16 %v935
    %v1003 = vunpack.c.h.b16 %v935
    %v1004 = vunpack.c.l.b16 %v936
    %v1005 = vunpack.c.h.b16 %v936
    %v1006 = vunpack.c.l.b16 %v937
    %v1007 = vunpack.c.h.b16 %v937
    %v1008 = vunpack.c.l.b16 %v938
    %v1009 = vunpack.c.h.b16 %v938
    %v1010 = vunpack.c.l.b16 %v939
    %v1011 = vunpack.c.h.b16 %v939
    %v1012 = vunpack.c.l.b16 %v940
    %v1013 = vunpack.c.h.b16 %v940
    %v1014 = vunpack.c.l.b16 %v941
    %v1015 = vunpack.c.h.b16 %v941
    %v1016 = vunpack.c.l.b16 %v942
    %v1017 = vunpack.c.h.b16 %v942
    %v1018 = vunpack.c.l.b16 %v943
    %v1019 = vunpack.c.h.b16 %v943
    %v1020 = vunpack.c.l.b16 %v944
    %v1021 = vunpack.c.h.b16 %v944
    %v1022 = vunpack.c.l.b16 %v945
    %v1023 = vunpack.c.h.b16 %v945
    %v1024 = vunpack.c.l.b16 %v946
    %v1025 = vunpack.c.h.b16 %v946
    %v1026 = vunpack.c.l.b16 %v947
    %v1027 = vunpack.c.h.b16 %v947
    %v1028 = vunpack.c.l.b16 %v948
    %v1029 = vunpack.c.h.b16 %v948
    %v1030 = vunpack.c.l.b16 %v949
    %v1031 = vunpack.c.h.b16 %v949
    %v1032 = vunpack.c.l.b16 %v950
    %v1033 = vunpack.c.h.b16 %v950
    %v1034 = vunpack.c.l.b16 %v951
    %v1035 = vunpack.c.h.b16 %v951
    %v1036 = vunpack.c.l.b16 %v952
    %v1037 = vunpack.c.h.b16 %v952
    %v1038 = vunpack.c.l.b16 %v953
    %v1039 = vunpack.c.h.b16 %v953
    %v1040 = vunpack.c.l.b16 %v954
    %v1041 = vunpack.c.h.b16 %v954
    %v1042 = vunpack.c.l.b16 %v955
    %v1043 = vunpack.c.h.b16 %v955
    %v1044 = vunpack.c.l.b16 %v956
    %v1045 = vunpack.c.h.b16 %v956
    %v1046 = vunpack.c.l.b16 %v957
    %v1047 = vunpack.c.h.b16 %v957
    %v1048 = vunpack.c.l.b16 %v958
    %v1049 = vunpack.c.h.b16 %v958
    %v1050 = vunpack.c.l.b16 %v959
    %v1051 = vunpack.c.h.b16 %v959
    %v1052 = vunpack.c.l.b16 %v960
    %v1053 = vunpack.c.h.b16 %v960
    %v1054 = vunpack.c.l.b16 %v961
    %v1055 = vunpack.c.h.b16 %v961
    %v1056 = vunpack.c.l.b16 %v962
    %v1057 = vunpack.c.h.b16 %v962
    %v1058 = vunpack.c.l.b16 %v963
    %v1059 = vunpack.c.h.b16 %v963
    %v1060 = vpack.c.b16 %v1000, %v996
    %v1061 = vpack.c.b16 %v1001, %v997
    %v1062 = vpack.c.b16 %v1002, %v998
    %v1063 = vpack.c.b16 %v1003, %v999
    %v1064 = vpack.c.b16 %v1008, %v1004
    %v1065 = vpack.c.b16 %v1009, %v1005
    %v1066 = vpack.c.b16 %v1010, %v1006
    %v1067 = vpack.c.b16 %v1011, %v1007
    %v1068 = vpack.c.b16 %v1016, %v1012
    %v1069 = vpack.c.b16 %v1017, %v1013
    %v1070 = vpack.c.b16 %v1018, %v1014
    %v1071 = vpack.c.b16 %v1019, %v1015
    %v1072 = vpack.c.b16 %v1024, %v1020
    %v1073 = vpack.c.b16 %v1025, %v1021
    %v1074 = vpack.c.b16 %v1026, %v1022
    %v1075 = vpack.c.b16 %v1027, %v1023
    %v1076 = vpack.c.b16 %v1032, %v1028
    %v1077 = vpack.c.b16 %v1033, %v1029
    %v1078 = vpack.c.b16 %v1034, %v1030
    %v1079 = vpack.c.b16 %v1035, %v1031
    %v1080 = vpack.c.b16 %v1040, %v1036
    %v1081 = vpack.c.b16 %v1041, %v1037
    %v1082 = vpack.c.b16 %v1042, %v1038
    %v1083 = vpack.c.b16 %v1043, %v1039
    %v1084 = vpack.c.b16 %v1048, %v1044
    %v1085 = vpack.c.b16 %v1049, %v1045
    %v1086 = vpack.c.b16 %v1050, %v1046
    %v1087 = vpack.c.b16 %v1051, %v1047
    %v1088 = vpack.c.b16 %v1056, %v1052
    %v1089 = vpack.c.b16 %v1057, %v1053
    %v1090 = vpack.c.b16 %v1058, %v1054
    %v1091 = vpack.c.b16 %v1059, %v1055
    %1124 = vmatpush.bf16.msra.mxu0 %v1088
    %1125 = vmatpush.bf16.msra.mxu0 %v1084
    %1126 = vmatpush.bf16.msra.mxu0 %v1080
    %1127 = vmatpush.bf16.msra.mxu0 %v1076
    %1128 = vmatpush.bf16.msra.mxu0 %v1072
    %1129 = vmatpush.bf16.msra.mxu0 %v1068
    %1130 = vmatpush.bf16.msra.mxu0 %v1064
    %1131 = vmatpush.bf16.msra.mxu0 %v1060
    %1132 = vmatmul.bf16.gmra.mxu0 %v924
    %v1133 = vpop.f32.mrf.mxu0
    %v1134 = vadd.f32 0.0, %v1133
    %v1135 = vpop.f32.mrf.mxu0
    %1136 = vdwg.mxu0
    %1137 = vmatpush.bf16.msra.mxu0 %v1089
    %1138 = vmatpush.bf16.msra.mxu0 %v1085
    %1139 = vmatpush.bf16.msra.mxu0 %v1081
    %1140 = vmatpush.bf16.msra.mxu0 %v1077
    %1141 = vmatpush.bf16.msra.mxu0 %v1073
    %1142 = vmatpush.bf16.msra.mxu0 %v1069
    %1143 = vmatpush.bf16.msra.mxu0 %v1065
    %1144 = vmatpush.bf16.msra.mxu0 %v1061
    %1145 = vmatmul.bf16.gmra.mxu0 %v924
    %v1146 = vpop.f32.mrf.mxu0
    %v1147 = vadd.f32 0.0, %v1146
    %v1148 = vpop.f32.mrf.mxu0
    %1149 = vdwg.mxu0
    %1150 = vmatpush.bf16.msra.mxu0 %v1090
    %1151 = vmatpush.bf16.msra.mxu0 %v1086
    %1152 = vmatpush.bf16.msra.mxu0 %v1082
    %1153 = vmatpush.bf16.msra.mxu0 %v1078
    %1154 = vmatpush.bf16.msra.mxu0 %v1074
    %1155 = vmatpush.bf16.msra.mxu0 %v1070
    %1156 = vmatpush.bf16.msra.mxu0 %v1066
    %1157 = vmatpush.bf16.msra.mxu0 %v1062
    %1158 = vmatmul.bf16.gmra.mxu0 %v924
    %v1159 = vpop.f32.mrf.mxu0
    %v1160 = vadd.f32 0.0, %v1159
    %v1161 = vpop.f32.mrf.mxu0
    %1162 = vdwg.mxu0
    %1163 = vmatpush.bf16.msra.mxu0 %v1091
    %1164 = vmatpush.bf16.msra.mxu0 %v1087
    %1165 = vmatpush.bf16.msra.mxu0 %v1083
    %1166 = vmatpush.bf16.msra.mxu0 %v1079
    %1167 = vmatpush.bf16.msra.mxu0 %v1075
    %1168 = vmatpush.bf16.msra.mxu0 %v1071
    %1169 = vmatpush.bf16.msra.mxu0 %v1067
    %1170 = vmatpush.bf16.msra.mxu0 %v1063
    %1171 = vmatmul.bf16.gmra.mxu0 %v924
    %v1172 = vpop.f32.mrf.mxu0
    %v1173 = vadd.f32 0.0, %v1172
    %v1174 = vpop.f32.mrf.mxu0
    %1175 = vdwg.mxu0
    %v1176 = vadd.f32 %v928, %v1134
    %v1177 = vadd.f32 %v929, %v1147
    %v1178 = vadd.f32 %v930, %v1160
    %v1179 = vadd.f32 %v931, %v1173
    %v1180 = vmul.f32 %v1176, 0.5
    %v1181 = vtanh.pop %v1180
    %v1182 = vadd.f32 %v1181, 1.0
    %v1183 = vmul.f32 %v1182, 0.5
    %v1184 = vmul.f32 %v1177, 0.5
    %v1185 = vtanh.pop %v1184
    %v1186 = vadd.f32 %v1185, 1.0
    %v1187 = vmul.f32 %v1186, 0.5
    %v1188 = vtanh.pop %v1178
    %v1189 = vmul.f32 %v1179, 0.5
    %v1190 = vtanh.pop %v1189
    %v1191 = vadd.f32 %v1190, 1.0
    %v1192 = vmul.f32 %v1191, 0.5
    %v1193 = vmul.f32 %v1187, %v921
    %v1194 = vmul.f32 %v1183, %v1188
    %v1195 = vadd.f32 %v1193, %v1194
    %v1196 = vtanh.pop %v1195
    %v1197 = vmul.f32 %v1192, %v1196
    %v1198 = vpack.c.bf16 %v1197, %v1197
    %s1199 = scalar_lea.vmem %s2, 12
    %1200 = vst [vmem:[%s1199] sm:$0xf] %v1198
    %s1201 = scalar_lea.vmem %s0, 128
    %v1202 = vld [vmem:[%s1201] sm:$0xff]
    %v1203 = vld [vmem:[%s1201 + $0x8] sm:$0xff]
    %v1204 = vld [vmem:[%s1201 + $0x10] sm:$0xff]
    %v1205 = vld [vmem:[%s1201 + $0x18] sm:$0xff]
    %v1206 = vld [vmem:[#allocation2] sm:$0xff]
    %v1207 = vld [vmem:[#allocation2 + $0x8] sm:$0xff]
    %v1208 = vld [vmem:[#allocation2 + $0x10] sm:$0xff]
    %v1209 = vld [vmem:[#allocation2 + $0x18] sm:$0xff]
    %v1210 = vld [vmem:[#allocation2 + $0x20] sm:$0xff]
    %v1211 = vld [vmem:[#allocation2 + $0x28] sm:$0xff]
    %v1212 = vld [vmem:[#allocation2 + $0x30] sm:$0xff]
    %v1213 = vld [vmem:[#allocation2 + $0x38] sm:$0xff]
    %v1214 = vld [vmem:[#allocation2 + $0x40] sm:$0xff]
    %v1215 = vld [vmem:[#allocation2 + $0x48] sm:$0xff]
    %v1216 = vld [vmem:[#allocation2 + $0x50] sm:$0xff]
    %v1217 = vld [vmem:[#allocation2 + $0x58] sm:$0xff]
    %v1218 = vld [vmem:[#allocation2 + $0x60] sm:$0xff]
    %v1219 = vld [vmem:[#allocation2 + $0x68] sm:$0xff]
    %v1220 = vld [vmem:[#allocation2 + $0x70] sm:$0xff]
    %v1221 = vld [vmem:[#allocation2 + $0x78] sm:$0xff]
    %v1222 = vld [vmem:[#allocation2 + $0x80] sm:$0xff]
    %v1223 = vld [vmem:[#allocation2 + $0x88] sm:$0xff]
    %v1224 = vld [vmem:[#allocation2 + $0x90] sm:$0xff]
    %v1225 = vld [vmem:[#allocation2 + $0x98] sm:$0xff]
    %v1226 = vld [vmem:[#allocation2 + $0xa0] sm:$0xff]
    %v1227 = vld [vmem:[#allocation2 + $0xa8] sm:$0xff]
    %v1228 = vld [vmem:[#allocation2 + $0xb0] sm:$0xff]
    %v1229 = vld [vmem:[#allocation2 + $0xb8] sm:$0xff]
    %v1230 = vld [vmem:[#allocation2 + $0xc0] sm:$0xff]
    %v1231 = vld [vmem:[#allocation2 + $0xc8] sm:$0xff]
    %v1232 = vld [vmem:[#allocation2 + $0xd0] sm:$0xff]
    %v1233 = vld [vmem:[#allocation2 + $0xd8] sm:$0xff]
    %v1234 = vld [vmem:[#allocation2 + $0xe0] sm:$0xff]
    %v1235 = vld [vmem:[#allocation2 + $0xe8] sm:$0xff]
    %v1236 = vld [vmem:[#allocation2 + $0xf0] sm:$0xff]
    %v1237 = vld [vmem:[#allocation2 + $0xf8] sm:$0xff]
    %v1270 = vunpack.c.l.b16 %v1206
    %v1271 = vunpack.c.h.b16 %v1206
    %v1272 = vunpack.c.l.b16 %v1207
    %v1273 = vunpack.c.h.b16 %v1207
    %v1274 = vunpack.c.l.b16 %v1208
    %v1275 = vunpack.c.h.b16 %v1208
    %v1276 = vunpack.c.l.b16 %v1209
    %v1277 = vunpack.c.h.b16 %v1209
    %v1278 = vunpack.c.l.b16 %v1210
    %v1279 = vunpack.c.h.b16 %v1210
    %v1280 = vunpack.c.l.b16 %v1211
    %v1281 = vunpack.c.h.b16 %v1211
    %v1282 = vunpack.c.l.b16 %v1212
    %v1283 = vunpack.c.h.b16 %v1212
    %v1284 = vunpack.c.l.b16 %v1213
    %v1285 = vunpack.c.h.b16 %v1213
    %v1286 = vunpack.c.l.b16 %v1214
    %v1287 = vunpack.c.h.b16 %v1214
    %v1288 = vunpack.c.l.b16 %v1215
    %v1289 = vunpack.c.h.b16 %v1215
    %v1290 = vunpack.c.l.b16 %v1216
    %v1291 = vunpack.c.h.b16 %v1216
    %v1292 = vunpack.c.l.b16 %v1217
    %v1293 = vunpack.c.h.b16 %v1217
    %v1294 = vunpack.c.l.b16 %v1218
    %v1295 = vunpack.c.h.b16 %v1218
    %v1296 = vunpack.c.l.b16 %v1219
    %v1297 = vunpack.c.h.b16 %v1219
    %v1298 = vunpack.c.l.b16 %v1220
    %v1299 = vunpack.c.h.b16 %v1220
    %v1300 = vunpack.c.l.b16 %v1221
    %v1301 = vunpack.c.h.b16 %v1221
    %v1302 = vunpack.c.l.b16 %v1222
    %v1303 = vunpack.c.h.b16 %v1222
    %v1304 = vunpack.c.l.b16 %v1223
    %v1305 = vunpack.c.h.b16 %v1223
    %v1306 = vunpack.c.l.b16 %v1224
    %v1307 = vunpack.c.h.b16 %v1224
    %v1308 = vunpack.c.l.b16 %v1225
    %v1309 = vunpack.c.h.b16 %v1225
    %v1310 = vunpack.c.l.b16 %v1226
    %v1311 = vunpack.c.h.b16 %v1226
    %v1312 = vunpack.c.l.b16 %v1227
    %v1313 = vunpack.c.h.b16 %v1227
    %v1314 = vunpack.c.l.b16 %v1228
    %v1315 = vunpack.c.h.b16 %v1228
    %v1316 = vunpack.c.l.b16 %v1229
    %v1317 = vunpack.c.h.b16 %v1229
    %v1318 = vunpack.c.l.b16 %v1230
    %v1319 = vunpack.c.h.b16 %v1230
    %v1320 = vunpack.c.l.b16 %v1231
    %v1321 = vunpack.c.h.b16 %v1231
    %v1322 = vunpack.c.l.b16 %v1232
    %v1323 = vunpack.c.h.b16 %v1232
    %v1324 = vunpack.c.l.b16 %v1233
    %v1325 = vunpack.c.h.b16 %v1233
    %v1326 = vunpack.c.l.b16 %v1234
    %v1327 = vunpack.c.h.b16 %v1234
    %v1328 = vunpack.c.l.b16 %v1235
    %v1329 = vunpack.c.h.b16 %v1235
    %v1330 = vunpack.c.l.b16 %v1236
    %v1331 = vunpack.c.h.b16 %v1236
    %v1332 = vunpack.c.l.b16 %v1237
    %v1333 = vunpack.c.h.b16 %v1237
    %v1334 = vpack.c.b16 %v1274, %v1270
    %v1335 = vpack.c.b16 %v1275, %v1271
    %v1336 = vpack.c.b16 %v1276, %v1272
    %v1337 = vpack.c.b16 %v1277, %v1273
    %v1338 = vpack.c.b16 %v1282, %v1278
    %v1339 = vpack.c.b16 %v1283, %v1279
    %v1340 = vpack.c.b16 %v1284, %v1280
    %v1341 = vpack.c.b16 %v1285, %v1281
    %v1342 = vpack.c.b16 %v1290, %v1286
    %v1343 = vpack.c.b16 %v1291, %v1287
    %v1344 = vpack.c.b16 %v1292, %v1288
    %v1345 = vpack.c.b16 %v1293, %v1289
    %v1346 = vpack.c.b16 %v1298, %v1294
    %v1347 = vpack.c.b16 %v1299, %v1295
    %v1348 = vpack.c.b16 %v1300, %v1296
    %v1349 = vpack.c.b16 %v1301, %v1297
    %v1350 = vpack.c.b16 %v1306, %v1302
    %v1351 = vpack.c.b16 %v1307, %v1303
    %v1352 = vpack.c.b16 %v1308, %v1304
    %v1353 = vpack.c.b16 %v1309, %v1305
    %v1354 = vpack.c.b16 %v1314, %v1310
    %v1355 = vpack.c.b16 %v1315, %v1311
    %v1356 = vpack.c.b16 %v1316, %v1312
    %v1357 = vpack.c.b16 %v1317, %v1313
    %v1358 = vpack.c.b16 %v1322, %v1318
    %v1359 = vpack.c.b16 %v1323, %v1319
    %v1360 = vpack.c.b16 %v1324, %v1320
    %v1361 = vpack.c.b16 %v1325, %v1321
    %v1362 = vpack.c.b16 %v1330, %v1326
    %v1363 = vpack.c.b16 %v1331, %v1327
    %v1364 = vpack.c.b16 %v1332, %v1328
    %v1365 = vpack.c.b16 %v1333, %v1329
    %1398 = vmatpush.bf16.msra.mxu0 %v1362
    %1399 = vmatpush.bf16.msra.mxu0 %v1358
    %1400 = vmatpush.bf16.msra.mxu0 %v1354
    %1401 = vmatpush.bf16.msra.mxu0 %v1350
    %1402 = vmatpush.bf16.msra.mxu0 %v1346
    %1403 = vmatpush.bf16.msra.mxu0 %v1342
    %1404 = vmatpush.bf16.msra.mxu0 %v1338
    %1405 = vmatpush.bf16.msra.mxu0 %v1334
    %1406 = vmatmul.bf16.gmra.mxu0 %v1198
    %v1407 = vpop.f32.mrf.mxu0
    %v1408 = vadd.f32 0.0, %v1407
    %v1409 = vpop.f32.mrf.mxu0
    %1410 = vdwg.mxu0
    %1411 = vmatpush.bf16.msra.mxu0 %v1363
    %1412 = vmatpush.bf16.msra.mxu0 %v1359
    %1413 = vmatpush.bf16.msra.mxu0 %v1355
    %1414 = vmatpush.bf16.msra.mxu0 %v1351
    %1415 = vmatpush.bf16.msra.mxu0 %v1347
    %1416 = vmatpush.bf16.msra.mxu0 %v1343
    %1417 = vmatpush.bf16.msra.mxu0 %v1339
    %1418 = vmatpush.bf16.msra.mxu0 %v1335
    %1419 = vmatmul.bf16.gmra.mxu0 %v1198
    %v1420 = vpop.f32.mrf.mxu0
    %v1421 = vadd.f32 0.0, %v1420
    %v1422 = vpop.f32.mrf.mxu0
    %1423 = vdwg.mxu0
    %1424 = vmatpush.bf16.msra.mxu0 %v1364
    %1425 = vmatpush.bf16.msra.mxu0 %v1360
    %1426 = vmatpush.bf16.msra.mxu0 %v1356
    %1427 = vmatpush.bf16.msra.mxu0 %v1352
    %1428 = vmatpush.bf16.msra.mxu0 %v1348
    %1429 = vmatpush.bf16.msra.mxu0 %v1344
    %1430 = vmatpush.bf16.msra.mxu0 %v1340
    %1431 = vmatpush.bf16.msra.mxu0 %v1336
    %1432 = vmatmul.bf16.gmra.mxu0 %v1198
    %v1433 = vpop.f32.mrf.mxu0
    %v1434 = vadd.f32 0.0, %v1433
    %v1435 = vpop.f32.mrf.mxu0
    %1436 = vdwg.mxu0
    %1437 = vmatpush.bf16.msra.mxu0 %v1365
    %1438 = vmatpush.bf16.msra.mxu0 %v1361
    %1439 = vmatpush.bf16.msra.mxu0 %v1357
    %1440 = vmatpush.bf16.msra.mxu0 %v1353
    %1441 = vmatpush.bf16.msra.mxu0 %v1349
    %1442 = vmatpush.bf16.msra.mxu0 %v1345
    %1443 = vmatpush.bf16.msra.mxu0 %v1341
    %1444 = vmatpush.bf16.msra.mxu0 %v1337
    %1445 = vmatmul.bf16.gmra.mxu0 %v1198
    %v1446 = vpop.f32.mrf.mxu0
    %v1447 = vadd.f32 0.0, %v1446
    %v1448 = vpop.f32.mrf.mxu0
    %1449 = vdwg.mxu0
    %v1450 = vadd.f32 %v1202, %v1408
    %v1451 = vadd.f32 %v1203, %v1421
    %v1452 = vadd.f32 %v1204, %v1434
    %v1453 = vadd.f32 %v1205, %v1447
    %v1454 = vmul.f32 %v1450, 0.5
    %v1455 = vtanh.pop %v1454
    %v1456 = vadd.f32 %v1455, 1.0
    %v1457 = vmul.f32 %v1456, 0.5
    %v1458 = vmul.f32 %v1451, 0.5
    %v1459 = vtanh.pop %v1458
    %v1460 = vadd.f32 %v1459, 1.0
    %v1461 = vmul.f32 %v1460, 0.5
    %v1462 = vtanh.pop %v1452
    %v1463 = vmul.f32 %v1453, 0.5
    %v1464 = vtanh.pop %v1463
    %v1465 = vadd.f32 %v1464, 1.0
    %v1466 = vmul.f32 %v1465, 0.5
    %v1467 = vmul.f32 %v1461, %v1195
    %v1468 = vmul.f32 %v1457, %v1462
    %v1469 = vadd.f32 %v1467, %v1468
    %v1470 = vtanh.pop %v1469
    %v1471 = vmul.f32 %v1466, %v1470
    %v1472 = vpack.c.bf16 %v1471, %v1471
    %s1473 = scalar_lea.vmem %s2, 16
    %1474 = vst [vmem:[%s1473] sm:$0xf] %v1472
    %s1475 = scalar_lea.vmem %s0, 160
    %v1476 = vld [vmem:[%s1475] sm:$0xff]
    %v1477 = vld [vmem:[%s1475 + $0x8] sm:$0xff]
    %v1478 = vld [vmem:[%s1475 + $0x10] sm:$0xff]
    %v1479 = vld [vmem:[%s1475 + $0x18] sm:$0xff]
    %v1480 = vld [vmem:[#allocation2] sm:$0xff]
    %v1481 = vld [vmem:[#allocation2 + $0x8] sm:$0xff]
    %v1482 = vld [vmem:[#allocation2 + $0x10] sm:$0xff]
    %v1483 = vld [vmem:[#allocation2 + $0x18] sm:$0xff]
    %v1484 = vld [vmem:[#allocation2 + $0x20] sm:$0xff]
    %v1485 = vld [vmem:[#allocation2 + $0x28] sm:$0xff]
    %v1486 = vld [vmem:[#allocation2 + $0x30] sm:$0xff]
    %v1487 = vld [vmem:[#allocation2 + $0x38] sm:$0xff]
    %v1488 = vld [vmem:[#allocation2 + $0x40] sm:$0xff]
    %v1489 = vld [vmem:[#allocation2 + $0x48] sm:$0xff]
    %v1490 = vld [vmem:[#allocation2 + $0x50] sm:$0xff]
    %v1491 = vld [vmem:[#allocation2 + $0x58] sm:$0xff]
    %v1492 = vld [vmem:[#allocation2 + $0x60] sm:$0xff]
    %v1493 = vld [vmem:[#allocation2 + $0x68] sm:$0xff]
    %v1494 = vld [vmem:[#allocation2 + $0x70] sm:$0xff]
    %v1495 = vld [vmem:[#allocation2 + $0x78] sm:$0xff]
    %v1496 = vld [vmem:[#allocation2 + $0x80] sm:$0xff]
    %v1497 = vld [vmem:[#allocation2 + $0x88] sm:$0xff]
    %v1498 = vld [vmem:[#allocation2 + $0x90] sm:$0xff]
    %v1499 = vld [vmem:[#allocation2 + $0x98] sm:$0xff]
    %v1500 = vld [vmem:[#allocation2 + $0xa0] sm:$0xff]
    %v1501 = vld [vmem:[#allocation2 + $0xa8] sm:$0xff]
    %v1502 = vld [vmem:[#allocation2 + $0xb0] sm:$0xff]
    %v1503 = vld [vmem:[#allocation2 + $0xb8] sm:$0xff]
    %v1504 = vld [vmem:[#allocation2 + $0xc0] sm:$0xff]
    %v1505 = vld [vmem:[#allocation2 + $0xc8] sm:$0xff]
    %v1506 = vld [vmem:[#allocation2 + $0xd0] sm:$0xff]
    %v1507 = vld [vmem:[#allocation2 + $0xd8] sm:$0xff]
    %v1508 = vld [vmem:[#allocation2 + $0xe0] sm:$0xff]
    %v1509 = vld [vmem:[#allocation2 + $0xe8] sm:$0xff]
    %v1510 = vld [vmem:[#allocation2 + $0xf0] sm:$0xff]
    %v1511 = vld [vmem:[#allocation2 + $0xf8] sm:$0xff]
    %v1544 = vunpack.c.l.b16 %v1480
    %v1545 = vunpack.c.h.b16 %v1480
    %v1546 = vunpack.c.l.b16 %v1481
    %v1547 = vunpack.c.h.b16 %v1481
    %v1548 = vunpack.c.l.b16 %v1482
    %v1549 = vunpack.c.h.b16 %v1482
    %v1550 = vunpack.c.l.b16 %v1483
    %v1551 = vunpack.c.h.b16 %v1483
    %v1552 = vunpack.c.l.b16 %v1484
    %v1553 = vunpack.c.h.b16 %v1484
    %v1554 = vunpack.c.l.b16 %v1485
    %v1555 = vunpack.c.h.b16 %v1485
    %v1556 = vunpack.c.l.b16 %v1486
    %v1557 = vunpack.c.h.b16 %v1486
    %v1558 = vunpack.c.l.b16 %v1487
    %v1559 = vunpack.c.h.b16 %v1487
    %v1560 = vunpack.c.l.b16 %v1488
    %v1561 = vunpack.c.h.b16 %v1488
    %v1562 = vunpack.c.l.b16 %v1489
    %v1563 = vunpack.c.h.b16 %v1489
    %v1564 = vunpack.c.l.b16 %v1490
    %v1565 = vunpack.c.h.b16 %v1490
    %v1566 = vunpack.c.l.b16 %v1491
    %v1567 = vunpack.c.h.b16 %v1491
    %v1568 = vunpack.c.l.b16 %v1492
    %v1569 = vunpack.c.h.b16 %v1492
    %v1570 = vunpack.c.l.b16 %v1493
    %v1571 = vunpack.c.h.b16 %v1493
    %v1572 = vunpack.c.l.b16 %v1494
    %v1573 = vunpack.c.h.b16 %v1494
    %v1574 = vunpack.c.l.b16 %v1495
    %v1575 = vunpack.c.h.b16 %v1495
    %v1576 = vunpack.c.l.b16 %v1496
    %v1577 = vunpack.c.h.b16 %v1496
    %v1578 = vunpack.c.l.b16 %v1497
    %v1579 = vunpack.c.h.b16 %v1497
    %v1580 = vunpack.c.l.b16 %v1498
    %v1581 = vunpack.c.h.b16 %v1498
    %v1582 = vunpack.c.l.b16 %v1499
    %v1583 = vunpack.c.h.b16 %v1499
    %v1584 = vunpack.c.l.b16 %v1500
    %v1585 = vunpack.c.h.b16 %v1500
    %v1586 = vunpack.c.l.b16 %v1501
    %v1587 = vunpack.c.h.b16 %v1501
    %v1588 = vunpack.c.l.b16 %v1502
    %v1589 = vunpack.c.h.b16 %v1502
    %v1590 = vunpack.c.l.b16 %v1503
    %v1591 = vunpack.c.h.b16 %v1503
    %v1592 = vunpack.c.l.b16 %v1504
    %v1593 = vunpack.c.h.b16 %v1504
    %v1594 = vunpack.c.l.b16 %v1505
    %v1595 = vunpack.c.h.b16 %v1505
    %v1596 = vunpack.c.l.b16 %v1506
    %v1597 = vunpack.c.h.b16 %v1506
    %v1598 = vunpack.c.l.b16 %v1507
    %v1599 = vunpack.c.h.b16 %v1507
    %v1600 = vunpack.c.l.b16 %v1508
    %v1601 = vunpack.c.h.b16 %v1508
    %v1602 = vunpack.c.l.b16 %v1509
    %v1603 = vunpack.c.h.b16 %v1509
    %v1604 = vunpack.c.l.b16 %v1510
    %v1605 = vunpack.c.h.b16 %v1510
    %v1606 = vunpack.c.l.b16 %v1511
    %v1607 = vunpack.c.h.b16 %v1511
    %v1608 = vpack.c.b16 %v1548, %v1544
    %v1609 = vpack.c.b16 %v1549, %v1545
    %v1610 = vpack.c.b16 %v1550, %v1546
    %v1611 = vpack.c.b16 %v1551, %v1547
    %v1612 = vpack.c.b16 %v1556, %v1552
    %v1613 = vpack.c.b16 %v1557, %v1553
    %v1614 = vpack.c.b16 %v1558, %v1554
    %v1615 = vpack.c.b16 %v1559, %v1555
    %v1616 = vpack.c.b16 %v1564, %v1560
    %v1617 = vpack.c.b16 %v1565, %v1561
    %v1618 = vpack.c.b16 %v1566, %v1562
    %v1619 = vpack.c.b16 %v1567, %v1563
    %v1620 = vpack.c.b16 %v1572, %v1568
    %v1621 = vpack.c.b16 %v1573, %v1569
    %v1622 = vpack.c.b16 %v1574, %v1570
    %v1623 = vpack.c.b16 %v1575, %v1571
    %v1624 = vpack.c.b16 %v1580, %v1576
    %v1625 = vpack.c.b16 %v1581, %v1577
    %v1626 = vpack.c.b16 %v1582, %v1578
    %v1627 = vpack.c.b16 %v1583, %v1579
    %v1628 = vpack.c.b16 %v1588, %v1584
    %v1629 = vpack.c.b16 %v1589, %v1585
    %v1630 = vpack.c.b16 %v1590, %v1586
    %v1631 = vpack.c.b16 %v1591, %v1587
    %v1632 = vpack.c.b16 %v1596, %v1592
    %v1633 = vpack.c.b16 %v1597, %v1593
    %v1634 = vpack.c.b16 %v1598, %v1594
    %v1635 = vpack.c.b16 %v1599, %v1595
    %v1636 = vpack.c.b16 %v1604, %v1600
    %v1637 = vpack.c.b16 %v1605, %v1601
    %v1638 = vpack.c.b16 %v1606, %v1602
    %v1639 = vpack.c.b16 %v1607, %v1603
    %1672 = vmatpush.bf16.msra.mxu0 %v1636
    %1673 = vmatpush.bf16.msra.mxu0 %v1632
    %1674 = vmatpush.bf16.msra.mxu0 %v1628
    %1675 = vmatpush.bf16.msra.mxu0 %v1624
    %1676 = vmatpush.bf16.msra.mxu0 %v1620
    %1677 = vmatpush.bf16.msra.mxu0 %v1616
    %1678 = vmatpush.bf16.msra.mxu0 %v1612
    %1679 = vmatpush.bf16.msra.mxu0 %v1608
    %1680 = vmatmul.bf16.gmra.mxu0 %v1472
    %v1681 = vpop.f32.mrf.mxu0
    %v1682 = vadd.f32 0.0, %v1681
    %v1683 = vpop.f32.mrf.mxu0
    %1684 = vdwg.mxu0
    %1685 = vmatpush.bf16.msra.mxu0 %v1637
    %1686 = vmatpush.bf16.msra.mxu0 %v1633
    %1687 = vmatpush.bf16.msra.mxu0 %v1629
    %1688 = vmatpush.bf16.msra.mxu0 %v1625
    %1689 = vmatpush.bf16.msra.mxu0 %v1621
    %1690 = vmatpush.bf16.msra.mxu0 %v1617
    %1691 = vmatpush.bf16.msra.mxu0 %v1613
    %1692 = vmatpush.bf16.msra.mxu0 %v1609
    %1693 = vmatmul.bf16.gmra.mxu0 %v1472
    %v1694 = vpop.f32.mrf.mxu0
    %v1695 = vadd.f32 0.0, %v1694
    %v1696 = vpop.f32.mrf.mxu0
    %1697 = vdwg.mxu0
    %1698 = vmatpush.bf16.msra.mxu0 %v1638
    %1699 = vmatpush.bf16.msra.mxu0 %v1634
    %1700 = vmatpush.bf16.msra.mxu0 %v1630
    %1701 = vmatpush.bf16.msra.mxu0 %v1626
    %1702 = vmatpush.bf16.msra.mxu0 %v1622
    %1703 = vmatpush.bf16.msra.mxu0 %v1618
    %1704 = vmatpush.bf16.msra.mxu0 %v1614
    %1705 = vmatpush.bf16.msra.mxu0 %v1610
    %1706 = vmatmul.bf16.gmra.mxu0 %v1472
    %v1707 = vpop.f32.mrf.mxu0
    %v1708 = vadd.f32 0.0, %v1707
    %v1709 = vpop.f32.mrf.mxu0
    %1710 = vdwg.mxu0
    %1711 = vmatpush.bf16.msra.mxu0 %v1639
    %1712 = vmatpush.bf16.msra.mxu0 %v1635
    %1713 = vmatpush.bf16.msra.mxu0 %v1631
    %1714 = vmatpush.bf16.msra.mxu0 %v1627
    %1715 = vmatpush.bf16.msra.mxu0 %v1623
    %1716 = vmatpush.bf16.msra.mxu0 %v1619
    %1717 = vmatpush.bf16.msra.mxu0 %v1615
    %1718 = vmatpush.bf16.msra.mxu0 %v1611
    %1719 = vmatmul.bf16.gmra.mxu0 %v1472
    %v1720 = vpop.f32.mrf.mxu0
    %v1721 = vadd.f32 0.0, %v1720
    %v1722 = vpop.f32.mrf.mxu0
    %1723 = vdwg.mxu0
    %v1724 = vadd.f32 %v1476, %v1682
    %v1725 = vadd.f32 %v1477, %v1695
    %v1726 = vadd.f32 %v1478, %v1708
    %v1727 = vadd.f32 %v1479, %v1721
    %v1728 = vmul.f32 %v1724, 0.5
    %v1729 = vtanh.pop %v1728
    %v1730 = vadd.f32 %v1729, 1.0
    %v1731 = vmul.f32 %v1730, 0.5
    %v1732 = vmul.f32 %v1725, 0.5
    %v1733 = vtanh.pop %v1732
    %v1734 = vadd.f32 %v1733, 1.0
    %v1735 = vmul.f32 %v1734, 0.5
    %v1736 = vtanh.pop %v1726
    %v1737 = vmul.f32 %v1727, 0.5
    %v1738 = vtanh.pop %v1737
    %v1739 = vadd.f32 %v1738, 1.0
    %v1740 = vmul.f32 %v1739, 0.5
    %v1741 = vmul.f32 %v1735, %v1469
    %v1742 = vmul.f32 %v1731, %v1736
    %v1743 = vadd.f32 %v1741, %v1742
    %v1744 = vtanh.pop %v1743
    %v1745 = vmul.f32 %v1740, %v1744
    %v1746 = vpack.c.bf16 %v1745, %v1745
    %s1747 = scalar_lea.vmem %s2, 20
    %1748 = vst [vmem:[%s1747] sm:$0xf] %v1746
    %s1749 = scalar_lea.vmem %s0, 192
    %v1750 = vld [vmem:[%s1749] sm:$0xff]
    %v1751 = vld [vmem:[%s1749 + $0x8] sm:$0xff]
    %v1752 = vld [vmem:[%s1749 + $0x10] sm:$0xff]
    %v1753 = vld [vmem:[%s1749 + $0x18] sm:$0xff]
    %v1754 = vld [vmem:[#allocation2] sm:$0xff]
    %v1755 = vld [vmem:[#allocation2 + $0x8] sm:$0xff]
    %v1756 = vld [vmem:[#allocation2 + $0x10] sm:$0xff]
    %v1757 = vld [vmem:[#allocation2 + $0x18] sm:$0xff]
    %v1758 = vld [vmem:[#allocation2 + $0x20] sm:$0xff]
    %v1759 = vld [vmem:[#allocation2 + $0x28] sm:$0xff]
    %v1760 = vld [vmem:[#allocation2 + $0x30] sm:$0xff]
    %v1761 = vld [vmem:[#allocation2 + $0x38] sm:$0xff]
    %v1762 = vld [vmem:[#allocation2 + $0x40] sm:$0xff]
    %v1763 = vld [vmem:[#allocation2 + $0x48] sm:$0xff]
    %v1764 = vld [vmem:[#allocation2 + $0x50] sm:$0xff]
    %v1765 = vld [vmem:[#allocation2 + $0x58] sm:$0xff]
    %v1766 = vld [vmem:[#allocation2 + $0x60] sm:$0xff]
    %v1767 = vld [vmem:[#allocation2 + $0x68] sm:$0xff]
    %v1768 = vld [vmem:[#allocation2 + $0x70] sm:$0xff]
    %v1769 = vld [vmem:[#allocation2 + $0x78] sm:$0xff]
    %v1770 = vld [vmem:[#allocation2 + $0x80] sm:$0xff]
    %v1771 = vld [vmem:[#allocation2 + $0x88] sm:$0xff]
    %v1772 = vld [vmem:[#allocation2 + $0x90] sm:$0xff]
    %v1773 = vld [vmem:[#allocation2 + $0x98] sm:$0xff]
    %v1774 = vld [vmem:[#allocation2 + $0xa0] sm:$0xff]
    %v1775 = vld [vmem:[#allocation2 + $0xa8] sm:$0xff]
    %v1776 = vld [vmem:[#allocation2 + $0xb0] sm:$0xff]
    %v1777 = vld [vmem:[#allocation2 + $0xb8] sm:$0xff]
    %v1778 = vld [vmem:[#allocation2 + $0xc0] sm:$0xff]
    %v1779 = vld [vmem:[#allocation2 + $0xc8] sm:$0xff]
    %v1780 = vld [vmem:[#allocation2 + $0xd0] sm:$0xff]
    %v1781 = vld [vmem:[#allocation2 + $0xd8] sm:$0xff]
    %v1782 = vld [vmem:[#allocation2 + $0xe0] sm:$0xff]
    %v1783 = vld [vmem:[#allocation2 + $0xe8] sm:$0xff]
    %v1784 = vld [vmem:[#allocation2 + $0xf0] sm:$0xff]
    %v1785 = vld [vmem:[#allocation2 + $0xf8] sm:$0xff]
    %v1818 = vunpack.c.l.b16 %v1754
    %v1819 = vunpack.c.h.b16 %v1754
    %v1820 = vunpack.c.l.b16 %v1755
    %v1821 = vunpack.c.h.b16 %v1755
    %v1822 = vunpack.c.l.b16 %v1756
    %v1823 = vunpack.c.h.b16 %v1756
    %v1824 = vunpack.c.l.b16 %v1757
    %v1825 = vunpack.c.h.b16 %v1757
    %v1826 = vunpack.c.l.b16 %v1758
    %v1827 = vunpack.c.h.b16 %v1758
    %v1828 = vunpack.c.l.b16 %v1759
    %v1829 = vunpack.c.h.b16 %v1759
    %v1830 = vunpack.c.l.b16 %v1760
    %v1831 = vunpack.c.h.b16 %v1760
    %v1832 = vunpack.c.l.b16 %v1761
    %v1833 = vunpack.c.h.b16 %v1761
    %v1834 = vunpack.c.l.b16 %v1762
    %v1835 = vunpack.c.h.b16 %v1762
    %v1836 = vunpack.c.l.b16 %v1763
    %v1837 = vunpack.c.h.b16 %v1763
    %v1838 = vunpack.c.l.b16 %v1764
    %v1839 = vunpack.c.h.b16 %v1764
    %v1840 = vunpack.c.l.b16 %v1765
    %v1841 = vunpack.c.h.b16 %v1765
    %v1842 = vunpack.c.l.b16 %v1766
    %v1843 = vunpack.c.h.b16 %v1766
    %v1844 = vunpack.c.l.b16 %v1767
    %v1845 = vunpack.c.h.b16 %v1767
    %v1846 = vunpack.c.l.b16 %v1768
    %v1847 = vunpack.c.h.b16 %v1768
    %v1848 = vunpack.c.l.b16 %v1769
    %v1849 = vunpack.c.h.b16 %v1769
    %v1850 = vunpack.c.l.b16 %v1770
    %v1851 = vunpack.c.h.b16 %v1770
    %v1852 = vunpack.c.l.b16 %v1771
    %v1853 = vunpack.c.h.b16 %v1771
    %v1854 = vunpack.c.l.b16 %v1772
    %v1855 = vunpack.c.h.b16 %v1772
    %v1856 = vunpack.c.l.b16 %v1773
    %v1857 = vunpack.c.h.b16 %v1773
    %v1858 = vunpack.c.l.b16 %v1774
    %v1859 = vunpack.c.h.b16 %v1774
    %v1860 = vunpack.c.l.b16 %v1775
    %v1861 = vunpack.c.h.b16 %v1775
    %v1862 = vunpack.c.l.b16 %v1776
    %v1863 = vunpack.c.h.b16 %v1776
    %v1864 = vunpack.c.l.b16 %v1777
    %v1865 = vunpack.c.h.b16 %v1777
    %v1866 = vunpack.c.l.b16 %v1778
    %v1867 = vunpack.c.h.b16 %v1778
    %v1868 = vunpack.c.l.b16 %v1779
    %v1869 = vunpack.c.h.b16 %v1779
    %v1870 = vunpack.c.l.b16 %v1780
    %v1871 = vunpack.c.h.b16 %v1780
    %v1872 = vunpack.c.l.b16 %v1781
    %v1873 = vunpack.c.h.b16 %v1781
    %v1874 = vunpack.c.l.b16 %v1782
    %v1875 = vunpack.c.h.b16 %v1782
    %v1876 = vunpack.c.l.b16 %v1783
    %v1877 = vunpack.c.h.b16 %v1783
    %v1878 = vunpack.c.l.b16 %v1784
    %v1879 = vunpack.c.h.b16 %v1784
    %v1880 = vunpack.c.l.b16 %v1785
    %v1881 = vunpack.c.h.b16 %v1785
    %v1882 = vpack.c.b16 %v1822, %v1818
    %v1883 = vpack.c.b16 %v1823, %v1819
    %v1884 = vpack.c.b16 %v1824, %v1820
    %v1885 = vpack.c.b16 %v1825, %v1821
    %v1886 = vpack.c.b16 %v1830, %v1826
    %v1887 = vpack.c.b16 %v1831, %v1827
    %v1888 = vpack.c.b16 %v1832, %v1828
    %v1889 = vpack.c.b16 %v1833, %v1829
    %v1890 = vpack.c.b16 %v1838, %v1834
    %v1891 = vpack.c.b16 %v1839, %v1835
    %v1892 = vpack.c.b16 %v1840, %v1836
    %v1893 = vpack.c.b16 %v1841, %v1837
    %v1894 = vpack.c.b16 %v1846, %v1842
    %v1895 = vpack.c.b16 %v1847, %v1843
    %v1896 = vpack.c.b16 %v1848, %v1844
    %v1897 = vpack.c.b16 %v1849, %v1845
    %v1898 = vpack.c.b16 %v1854, %v1850
    %v1899 = vpack.c.b16 %v1855, %v1851
    %v1900 = vpack.c.b16 %v1856, %v1852
    %v1901 = vpack.c.b16 %v1857, %v1853
    %v1902 = vpack.c.b16 %v1862, %v1858
    %v1903 = vpack.c.b16 %v1863, %v1859
    %v1904 = vpack.c.b16 %v1864, %v1860
    %v1905 = vpack.c.b16 %v1865, %v1861
    %v1906 = vpack.c.b16 %v1870, %v1866
    %v1907 = vpack.c.b16 %v1871, %v1867
    %v1908 = vpack.c.b16 %v1872, %v1868
    %v1909 = vpack.c.b16 %v1873, %v1869
    %v1910 = vpack.c.b16 %v1878, %v1874
    %v1911 = vpack.c.b16 %v1879, %v1875
    %v1912 = vpack.c.b16 %v1880, %v1876
    %v1913 = vpack.c.b16 %v1881, %v1877
    %1946 = vmatpush.bf16.msra.mxu0 %v1910
    %1947 = vmatpush.bf16.msra.mxu0 %v1906
    %1948 = vmatpush.bf16.msra.mxu0 %v1902
    %1949 = vmatpush.bf16.msra.mxu0 %v1898
    %1950 = vmatpush.bf16.msra.mxu0 %v1894
    %1951 = vmatpush.bf16.msra.mxu0 %v1890
    %1952 = vmatpush.bf16.msra.mxu0 %v1886
    %1953 = vmatpush.bf16.msra.mxu0 %v1882
    %1954 = vmatmul.bf16.gmra.mxu0 %v1746
    %v1955 = vpop.f32.mrf.mxu0
    %v1956 = vadd.f32 0.0, %v1955
    %v1957 = vpop.f32.mrf.mxu0
    %1958 = vdwg.mxu0
    %1959 = vmatpush.bf16.msra.mxu0 %v1911
    %1960 = vmatpush.bf16.msra.mxu0 %v1907
    %1961 = vmatpush.bf16.msra.mxu0 %v1903
    %1962 = vmatpush.bf16.msra.mxu0 %v1899
    %1963 = vmatpush.bf16.msra.mxu0 %v1895
    %1964 = vmatpush.bf16.msra.mxu0 %v1891
    %1965 = vmatpush.bf16.msra.mxu0 %v1887
    %1966 = vmatpush.bf16.msra.mxu0 %v1883
    %1967 = vmatmul.bf16.gmra.mxu0 %v1746
    %v1968 = vpop.f32.mrf.mxu0
    %v1969 = vadd.f32 0.0, %v1968
    %v1970 = vpop.f32.mrf.mxu0
    %1971 = vdwg.mxu0
    %1972 = vmatpush.bf16.msra.mxu0 %v1912
    %1973 = vmatpush.bf16.msra.mxu0 %v1908
    %1974 = vmatpush.bf16.msra.mxu0 %v1904
    %1975 = vmatpush.bf16.msra.mxu0 %v1900
    %1976 = vmatpush.bf16.msra.mxu0 %v1896
    %1977 = vmatpush.bf16.msra.mxu0 %v1892
    %1978 = vmatpush.bf16.msra.mxu0 %v1888
    %1979 = vmatpush.bf16.msra.mxu0 %v1884
    %1980 = vmatmul.bf16.gmra.mxu0 %v1746
    %v1981 = vpop.f32.mrf.mxu0
    %v1982 = vadd.f32 0.0, %v1981
    %v1983 = vpop.f32.mrf.mxu0
    %1984 = vdwg.mxu0
    %1985 = vmatpush.bf16.msra.mxu0 %v1913
    %1986 = vmatpush.bf16.msra.mxu0 %v1909
    %1987 = vmatpush.bf16.msra.mxu0 %v1905
    %1988 = vmatpush.bf16.msra.mxu0 %v1901
    %1989 = vmatpush.bf16.msra.mxu0 %v1897
    %1990 = vmatpush.bf16.msra.mxu0 %v1893
    %1991 = vmatpush.bf16.msra.mxu0 %v1889
    %1992 = vmatpush.bf16.msra.mxu0 %v1885
    %1993 = vmatmul.bf16.gmra.mxu0 %v1746
    %v1994 = vpop.f32.mrf.mxu0
    %v1995 = vadd.f32 0.0, %v1994
    %v1996 = vpop.f32.mrf.mxu0
    %1997 = vdwg.mxu0
    %v1998 = vadd.f32 %v1750, %v1956
    %v1999 = vadd.f32 %v1751, %v1969
    %v2000 = vadd.f32 %v1752, %v1982
    %v2001 = vadd.f32 %v1753, %v1995
    %v2002 = vmul.f32 %v1998, 0.5
    %v2003 = vtanh.pop %v2002
    %v2004 = vadd.f32 %v2003, 1.0
    %v2005 = vmul.f32 %v2004, 0.5
    %v2006 = vmul.f32 %v1999, 0.5
    %v2007 = vtanh.pop %v2006
    %v2008 = vadd.f32 %v2007, 1.0
    %v2009 = vmul.f32 %v2008, 0.5
    %v2010 = vtanh.pop %v2000
    %v2011 = vmul.f32 %v2001, 0.5
    %v2012 = vtanh.pop %v2011
    %v2013 = vadd.f32 %v2012, 1.0
    %v2014 = vmul.f32 %v2013, 0.5
    %v2015 = vmul.f32 %v2009, %v1743
    %v2016 = vmul.f32 %v2005, %v2010
    %v2017 = vadd.f32 %v2015, %v2016
    %v2018 = vtanh.pop %v2017
    %v2019 = vmul.f32 %v2014, %v2018
    %v2020 = vpack.c.bf16 %v2019, %v2019
    %s2021 = scalar_lea.vmem %s2, 24
    %2022 = vst [vmem:[%s2021] sm:$0xf] %v2020
    %s2023 = scalar_lea.vmem %s0, 224
    %v2024 = vld [vmem:[%s2023] sm:$0xff]
    %v2025 = vld [vmem:[%s2023 + $0x8] sm:$0xff]
    %v2026 = vld [vmem:[%s2023 + $0x10] sm:$0xff]
    %v2027 = vld [vmem:[%s2023 + $0x18] sm:$0xff]
    %v2028 = vld [vmem:[#allocation2] sm:$0xff]
    %v2029 = vld [vmem:[#allocation2 + $0x8] sm:$0xff]
    %v2030 = vld [vmem:[#allocation2 + $0x10] sm:$0xff]
    %v2031 = vld [vmem:[#allocation2 + $0x18] sm:$0xff]
    %v2032 = vld [vmem:[#allocation2 + $0x20] sm:$0xff]
    %v2033 = vld [vmem:[#allocation2 + $0x28] sm:$0xff]
    %v2034 = vld [vmem:[#allocation2 + $0x30] sm:$0xff]
    %v2035 = vld [vmem:[#allocation2 + $0x38] sm:$0xff]
    %v2036 = vld [vmem:[#allocation2 + $0x40] sm:$0xff]
    %v2037 = vld [vmem:[#allocation2 + $0x48] sm:$0xff]
    %v2038 = vld [vmem:[#allocation2 + $0x50] sm:$0xff]
    %v2039 = vld [vmem:[#allocation2 + $0x58] sm:$0xff]
    %v2040 = vld [vmem:[#allocation2 + $0x60] sm:$0xff]
    %v2041 = vld [vmem:[#allocation2 + $0x68] sm:$0xff]
    %v2042 = vld [vmem:[#allocation2 + $0x70] sm:$0xff]
    %v2043 = vld [vmem:[#allocation2 + $0x78] sm:$0xff]
    %v2044 = vld [vmem:[#allocation2 + $0x80] sm:$0xff]
    %v2045 = vld [vmem:[#allocation2 + $0x88] sm:$0xff]
    %v2046 = vld [vmem:[#allocation2 + $0x90] sm:$0xff]
    %v2047 = vld [vmem:[#allocation2 + $0x98] sm:$0xff]
    %v2048 = vld [vmem:[#allocation2 + $0xa0] sm:$0xff]
    %v2049 = vld [vmem:[#allocation2 + $0xa8] sm:$0xff]
    %v2050 = vld [vmem:[#allocation2 + $0xb0] sm:$0xff]
    %v2051 = vld [vmem:[#allocation2 + $0xb8] sm:$0xff]
    %v2052 = vld [vmem:[#allocation2 + $0xc0] sm:$0xff]
    %v2053 = vld [vmem:[#allocation2 + $0xc8] sm:$0xff]
    %v2054 = vld [vmem:[#allocation2 + $0xd0] sm:$0xff]
    %v2055 = vld [vmem:[#allocation2 + $0xd8] sm:$0xff]
    %v2056 = vld [vmem:[#allocation2 + $0xe0] sm:$0xff]
    %v2057 = vld [vmem:[#allocation2 + $0xe8] sm:$0xff]
    %v2058 = vld [vmem:[#allocation2 + $0xf0] sm:$0xff]
    %v2059 = vld [vmem:[#allocation2 + $0xf8] sm:$0xff]
    %v2092 = vunpack.c.l.b16 %v2028
    %v2093 = vunpack.c.h.b16 %v2028
    %v2094 = vunpack.c.l.b16 %v2029
    %v2095 = vunpack.c.h.b16 %v2029
    %v2096 = vunpack.c.l.b16 %v2030
    %v2097 = vunpack.c.h.b16 %v2030
    %v2098 = vunpack.c.l.b16 %v2031
    %v2099 = vunpack.c.h.b16 %v2031
    %v2100 = vunpack.c.l.b16 %v2032
    %v2101 = vunpack.c.h.b16 %v2032
    %v2102 = vunpack.c.l.b16 %v2033
    %v2103 = vunpack.c.h.b16 %v2033
    %v2104 = vunpack.c.l.b16 %v2034
    %v2105 = vunpack.c.h.b16 %v2034
    %v2106 = vunpack.c.l.b16 %v2035
    %v2107 = vunpack.c.h.b16 %v2035
    %v2108 = vunpack.c.l.b16 %v2036
    %v2109 = vunpack.c.h.b16 %v2036
    %v2110 = vunpack.c.l.b16 %v2037
    %v2111 = vunpack.c.h.b16 %v2037
    %v2112 = vunpack.c.l.b16 %v2038
    %v2113 = vunpack.c.h.b16 %v2038
    %v2114 = vunpack.c.l.b16 %v2039
    %v2115 = vunpack.c.h.b16 %v2039
    %v2116 = vunpack.c.l.b16 %v2040
    %v2117 = vunpack.c.h.b16 %v2040
    %v2118 = vunpack.c.l.b16 %v2041
    %v2119 = vunpack.c.h.b16 %v2041
    %v2120 = vunpack.c.l.b16 %v2042
    %v2121 = vunpack.c.h.b16 %v2042
    %v2122 = vunpack.c.l.b16 %v2043
    %v2123 = vunpack.c.h.b16 %v2043
    %v2124 = vunpack.c.l.b16 %v2044
    %v2125 = vunpack.c.h.b16 %v2044
    %v2126 = vunpack.c.l.b16 %v2045
    %v2127 = vunpack.c.h.b16 %v2045
    %v2128 = vunpack.c.l.b16 %v2046
    %v2129 = vunpack.c.h.b16 %v2046
    %v2130 = vunpack.c.l.b16 %v2047
    %v2131 = vunpack.c.h.b16 %v2047
    %v2132 = vunpack.c.l.b16 %v2048
    %v2133 = vunpack.c.h.b16 %v2048
    %v2134 = vunpack.c.l.b16 %v2049
    %v2135 = vunpack.c.h.b16 %v2049
    %v2136 = vunpack.c.l.b16 %v2050
    %v2137 = vunpack.c.h.b16 %v2050
    %v2138 = vunpack.c.l.b16 %v2051
    %v2139 = vunpack.c.h.b16 %v2051
    %v2140 = vunpack.c.l.b16 %v2052
    %v2141 = vunpack.c.h.b16 %v2052
    %v2142 = vunpack.c.l.b16 %v2053
    %v2143 = vunpack.c.h.b16 %v2053
    %v2144 = vunpack.c.l.b16 %v2054
    %v2145 = vunpack.c.h.b16 %v2054
    %v2146 = vunpack.c.l.b16 %v2055
    %v2147 = vunpack.c.h.b16 %v2055
    %v2148 = vunpack.c.l.b16 %v2056
    %v2149 = vunpack.c.h.b16 %v2056
    %v2150 = vunpack.c.l.b16 %v2057
    %v2151 = vunpack.c.h.b16 %v2057
    %v2152 = vunpack.c.l.b16 %v2058
    %v2153 = vunpack.c.h.b16 %v2058
    %v2154 = vunpack.c.l.b16 %v2059
    %v2155 = vunpack.c.h.b16 %v2059
    %v2156 = vpack.c.b16 %v2096, %v2092
    %v2157 = vpack.c.b16 %v2097, %v2093
    %v2158 = vpack.c.b16 %v2098, %v2094
    %v2159 = vpack.c.b16 %v2099, %v2095
    %v2160 = vpack.c.b16 %v2104, %v2100
    %v2161 = vpack.c.b16 %v2105, %v2101
    %v2162 = vpack.c.b16 %v2106, %v2102
    %v2163 = vpack.c.b16 %v2107, %v2103
    %v2164 = vpack.c.b16 %v2112, %v2108
    %v2165 = vpack.c.b16 %v2113, %v2109
    %v2166 = vpack.c.b16 %v2114, %v2110
    %v2167 = vpack.c.b16 %v2115, %v2111
    %v2168 = vpack.c.b16 %v2120, %v2116
    %v2169 = vpack.c.b16 %v2121, %v2117
    %v2170 = vpack.c.b16 %v2122, %v2118
    %v2171 = vpack.c.b16 %v2123, %v2119
    %v2172 = vpack.c.b16 %v2128, %v2124
    %v2173 = vpack.c.b16 %v2129, %v2125
    %v2174 = vpack.c.b16 %v2130, %v2126
    %v2175 = vpack.c.b16 %v2131, %v2127
    %v2176 = vpack.c.b16 %v2136, %v2132
    %v2177 = vpack.c.b16 %v2137, %v2133
    %v2178 = vpack.c.b16 %v2138, %v2134
    %v2179 = vpack.c.b16 %v2139, %v2135
    %v2180 = vpack.c.b16 %v2144, %v2140
    %v2181 = vpack.c.b16 %v2145, %v2141
    %v2182 = vpack.c.b16 %v2146, %v2142
    %v2183 = vpack.c.b16 %v2147, %v2143
    %v2184 = vpack.c.b16 %v2152, %v2148
    %v2185 = vpack.c.b16 %v2153, %v2149
    %v2186 = vpack.c.b16 %v2154, %v2150
    %v2187 = vpack.c.b16 %v2155, %v2151
    %2220 = vmatpush.bf16.msra.mxu0 %v2184
    %2221 = vmatpush.bf16.msra.mxu0 %v2180
    %2222 = vmatpush.bf16.msra.mxu0 %v2176
    %2223 = vmatpush.bf16.msra.mxu0 %v2172
    %2224 = vmatpush.bf16.msra.mxu0 %v2168
    %2225 = vmatpush.bf16.msra.mxu0 %v2164
    %2226 = vmatpush.bf16.msra.mxu0 %v2160
    %2227 = vmatpush.bf16.msra.mxu0 %v2156
    %2228 = vmatmul.bf16.gmra.mxu0 %v2020
    %v2229 = vpop.f32.mrf.mxu0
    %v2230 = vadd.f32 0.0, %v2229
    %v2231 = vpop.f32.mrf.mxu0
    %2232 = vdwg.mxu0
    %2233 = vmatpush.bf16.msra.mxu0 %v2185
    %2234 = vmatpush.bf16.msra.mxu0 %v2181
    %2235 = vmatpush.bf16.msra.mxu0 %v2177
    %2236 = vmatpush.bf16.msra.mxu0 %v2173
    %2237 = vmatpush.bf16.msra.mxu0 %v2169
    %2238 = vmatpush.bf16.msra.mxu0 %v2165
    %2239 = vmatpush.bf16.msra.mxu0 %v2161
    %2240 = vmatpush.bf16.msra.mxu0 %v2157
    %2241 = vmatmul.bf16.gmra.mxu0 %v2020
    %v2242 = vpop.f32.mrf.mxu0
    %v2243 = vadd.f32 0.0, %v2242
    %v2244 = vpop.f32.mrf.mxu0
    %2245 = vdwg.mxu0
    %2246 = vmatpush.bf16.msra.mxu0 %v2186
    %2247 = vmatpush.bf16.msra.mxu0 %v2182
    %2248 = vmatpush.bf16.msra.mxu0 %v2178
    %2249 = vmatpush.bf16.msra.mxu0 %v2174
    %2250 = vmatpush.bf16.msra.mxu0 %v2170
    %2251 = vmatpush.bf16.msra.mxu0 %v2166
    %2252 = vmatpush.bf16.msra.mxu0 %v2162
    %2253 = vmatpush.bf16.msra.mxu0 %v2158
    %2254 = vmatmul.bf16.gmra.mxu0 %v2020
    %v2255 = vpop.f32.mrf.mxu0
    %v2256 = vadd.f32 0.0, %v2255
    %v2257 = vpop.f32.mrf.mxu0
    %2258 = vdwg.mxu0
    %2259 = vmatpush.bf16.msra.mxu0 %v2187
    %2260 = vmatpush.bf16.msra.mxu0 %v2183
    %2261 = vmatpush.bf16.msra.mxu0 %v2179
    %2262 = vmatpush.bf16.msra.mxu0 %v2175
    %2263 = vmatpush.bf16.msra.mxu0 %v2171
    %2264 = vmatpush.bf16.msra.mxu0 %v2167
    %2265 = vmatpush.bf16.msra.mxu0 %v2163
    %2266 = vmatpush.bf16.msra.mxu0 %v2159
    %2267 = vmatmul.bf16.gmra.mxu0 %v2020
    %v2268 = vpop.f32.mrf.mxu0
    %v2269 = vadd.f32 0.0, %v2268
    %v2270 = vpop.f32.mrf.mxu0
    %2271 = vdwg.mxu0
    %v2272 = vadd.f32 %v2024, %v2230
    %v2273 = vadd.f32 %v2025, %v2243
    %v2274 = vadd.f32 %v2026, %v2256
    %v2275 = vadd.f32 %v2027, %v2269
    %v2276 = vmul.f32 %v2272, 0.5
    %v2277 = vtanh.pop %v2276
    %v2278 = vadd.f32 %v2277, 1.0
    %v2279 = vmul.f32 %v2278, 0.5
    %v2280 = vmul.f32 %v2273, 0.5
    %v2281 = vtanh.pop %v2280
    %v2282 = vadd.f32 %v2281, 1.0
    %v2283 = vmul.f32 %v2282, 0.5
    %v2284 = vtanh.pop %v2274
    %v2285 = vmul.f32 %v2275, 0.5
    %v2286 = vtanh.pop %v2285
    %v2287 = vadd.f32 %v2286, 1.0
    %v2288 = vmul.f32 %v2287, 0.5
    %v2289 = vmul.f32 %v2283, %v2017
    %v2290 = vmul.f32 %v2279, %v2284
    %v2291 = vadd.f32 %v2289, %v2290
    %v2292 = vtanh.pop %v2291
    %v2293 = vmul.f32 %v2288, %v2292
    %v2294 = vpack.c.bf16 %v2293, %v2293
    %s2295 = scalar_lea.vmem %s2, 28
    %2296 = vst [vmem:[%s2295] sm:$0xf] %v2294
    %2297 = vst [vmem:[#allocation3] sm:$0xff] %v2293
    %2298 = vst [vmem:[#allocation4] sm:$0xff] %v2291
    %2299 = vst [vmem:[#allocation6] sm:$0xff] %v2293
    %2300 = vst [vmem:[#allocation8] sm:$0xff] %v2291
    // Predicated region
    $region29: #{stacked_lstm.5} parent=1 // pred_check
      _
    $region30: #{stacked_lstm.5} parent=1 // pred_check_branch
      %2302 = sbr.rel (0) target = $region32
    $region31: #{stacked_lstm.5} parent=1 // pred_region
      _
    $region32: #{stacked_lstm.5} parent=1 // pred_fallthru
      _
    // Predicated region
    $region33: #{stacked_lstm.5} parent=1 // pred_check
      _
    $region34: #{stacked_lstm.5} parent=1 // pred_check_branch
      %2304 = sbr.rel (0) target = $region36
    $region35: #{stacked_lstm.5} parent=1 // pred_region
      %2306 = vsyncadd [#allocation7], 0
      %s2308 = sshll.u32 [#allocation6], 4
      %s2309 = int_to_ptr.vmem [resolvable:$true] %s2308
      %s2310 = sshll.u32 %s3, 4
      %s2311 = int_to_ptr.hbm [resolvable:$true] %s2310
      %2313 = dma.vmem_to_hbm [thread:$0]  %s2309, 128, %s2311, [#allocation7]
    $region36: #{stacked_lstm.5} parent=1 // pred_fallthru
      _
    // Predicated region
    $region37: #{stacked_lstm.5} parent=1 // pred_check
      _
    $region38: #{stacked_lstm.5} parent=1 // pred_check_branch
      %2315 = sbr.rel (0) target = $region40
    $region39: #{stacked_lstm.5} parent=1 // pred_region
      %2317 = vsyncadd [#allocation9], 0
      %s2319 = sshll.u32 [#allocation8], 4
      %s2320 = int_to_ptr.vmem [resolvable:$true] %s2319
      %s2321 = sshll.u32 %s4, 4
      %s2322 = int_to_ptr.hbm [resolvable:$true] %s2321
      %2324 = dma.vmem_to_hbm [thread:$0]  %s2320, 128, %s2322, [#allocation9]
    $region40: #{stacked_lstm.5} parent=1 // pred_fallthru
      _
    // Predicated region
    $region41: #{stacked_lstm.5} parent=1 // pred_check
      _
    $region42: #{stacked_lstm.5} parent=1 // pred_check_branch
      %2326 = sbr.rel (0) target = $region44
    $region43: #{stacked_lstm.5} parent=1 // pred_region
      _
    $region44: #{stacked_lstm.5} parent=1 // pred_fallthru
      _
    // Predicated region
    $region45: #{stacked_lstm.5} parent=1 // pred_check
      _
    $region46: #{stacked_lstm.5} parent=1 // pred_check_branch
      %2328 = sbr.rel (0) target = $region48
    $region47: #{stacked_lstm.5} parent=1 // pred_region
      %2330 = dma.done [#allocation7], 128
    $region48: #{stacked_lstm.5} parent=1 // pred_fallthru
      _
    // Predicated region
    $region49: #{stacked_lstm.5} parent=1 // pred_check
      _
    $region50: #{stacked_lstm.5} parent=1 // pred_check_branch
      %2332 = sbr.rel (0) target = $region52
    $region51: #{stacked_lstm.5} parent=1 // pred_region
      %2334 = dma.done [#allocation9], 128
    $region52: #{stacked_lstm.5} parent=1 // pred_fallthru
      _
    %2335 = vsyncpa [#allocation7], 1
    %2336 = vsyncpa [#allocation9], 1
  %2337 = vsyncmov [#allocation5]
  %s2338 = vpop.sfrf %2337
  %p2339 = scmp.eq.s32.totalorder %s2338, 0
  %p2340 = pneg %p2339
  %2342 = shalt.err (%p2340)

// kernel: stacked_lstm.7
$region0: #{stacked_lstm.7}
  #allocation0 [shape = 'u32[]', space=smem, size = 0x4, offset = 0x4, fixed_abs, tag = 'smem constant byte address 0x4 - core index']
  #allocation1 [shape = 'u32[72,128]{1,0:T(1,128)}', space=vmem, size = 0x9000, scoped, tag = 'internal scratch']
  #allocation2 [shape = 'bf16[128,512]{1,0:T(8,128)(2,1)}', space=vmem, size = 0x20000, scoped, tag = 'scratch operand']
  #allocation3 [shape = 'f32[8,128]{1,0:T(8,128)}', space=vmem, size = 0x1000, scoped, tag = 'scratch operand']
  #allocation4 [shape = 'f32[8,128]{1,0:T(8,128)}', space=vmem, size = 0x1000, scoped, tag = 'scratch operand']
  #allocation5 [shape = 's32[1]{0}', space=sflag, size = 0x4, scoped, tag = 'scratch operand']
  #allocation6 [shape = 's32[]', space=sflag, size = 0x4, offset = 0, fixed_abs, tag = 'sflag constant byte address 0x0 - dummy sync flag']
  %s0 = inlined_call_operand.vmem [shape: f32[8,8,512], index: 0, kind: input, shape index: {}]
  %s1 = inlined_call_operand.vmem [shape: bf16[128,512], index: 1, kind: input, shape index: {}]
  %s2 = inlined_call_operand.vmem [shape: bf16[8,8,128], index: 2, kind: output, shape index: {0}]
  %s3 = inlined_call_operand.vmem [shape: f32[8,128], index: 3, kind: output, shape index: {1}]
  %s4 = inlined_call_operand.vmem [shape: f32[8,128], index: 4, kind: output, shape index: {2}]
  %5 = xla_tuple %s2, %s3, %s4
  %s6 = sld [smem:[#allocation0]]
  $region53: #{stacked_lstm.7} parent=0
    _
  %s8 = ssub.s32 1, %s6
  %s9 = scalar_select 0, %s8, %s6
  // Predicated region
  $region2: #{stacked_lstm.7} parent=0 // pred_check
    _
  $region3: #{stacked_lstm.7} parent=0 // pred_check_branch
    %11 = sbr.rel (0) target = $region5
  $region4: #{stacked_lstm.7} parent=0 // pred_region
    _
  $region5: #{stacked_lstm.7} parent=0 // pred_fallthru
    _
  %p12 = scmp.eq.s32.totalorder 0, 0
  // Predicated region
  $region6: #{stacked_lstm.7} parent=0 // pred_check
    %p13 = pneg %p12
  $region7: #{stacked_lstm.7} parent=0 // pred_check_branch
    %15 = sbr.rel (%p13) target = $region9
  $region8: #{stacked_lstm.7} parent=0 // pred_region
    // Predicated region
    $region10: #{stacked_lstm.7} parent=8 // pred_check
      _
    $region11: #{stacked_lstm.7} parent=8 // pred_check_branch
      %17 = sbr.rel (0) target = $region13
    $region12: #{stacked_lstm.7} parent=8 // pred_region
      loop: start=0, step=1, limit=1
      $region14: #{stacked_lstm.7} parent=12 // loop_pre_header
        _
      $region15: #{stacked_lstm.7} parent=12 // loop_header
        %s19 = sphi 0, %s23
        %p20 = scmp.ge.s32.totalorder %s19, 1
        %s24 = sphi %s1, %s1
        %s25 = sphi [#allocation2], [#allocation2]
      $region16: #{stacked_lstm.7} parent=12 // loop_header_branch
        %22 = sbr.rel (%p20) target = $region20
      $region17: #{stacked_lstm.7} parent=12 // loop_body
        %v26 = vld [vmem:[%s24] sm:$0xff]
        %27 = vst [vmem:[%s25] sm:$0xff] %v26
        %v28 = vld [vmem:[%s24 + $0x8] sm:$0xff]
        %29 = vst [vmem:[%s25 + $0x8] sm:$0xff] %v28
        %v30 = vld [vmem:[%s24 + $0x10] sm:$0xff]
        %31 = vst [vmem:[%s25 + $0x10] sm:$0xff] %v30
        %v32 = vld [vmem:[%s24 + $0x18] sm:$0xff]
        %33 = vst [vmem:[%s25 + $0x18] sm:$0xff] %v32
        %v34 = vld [vmem:[%s24 + $0x20] sm:$0xff]
        %35 = vst [vmem:[%s25 + $0x20] sm:$0xff] %v34
        %v36 = vld [vmem:[%s24 + $0x28] sm:$0xff]
        %37 = vst [vmem:[%s25 + $0x28] sm:$0xff] %v36
        %v38 = vld [vmem:[%s24 + $0x30] sm:$0xff]
        %39 = vst [vmem:[%s25 + $0x30] sm:$0xff] %v38
        %v40 = vld [vmem:[%s24 + $0x38] sm:$0xff]
        %41 = vst [vmem:[%s25 + $0x38] sm:$0xff] %v40
        %v42 = vld [vmem:[%s24 + $0x40] sm:$0xff]
        %43 = vst [vmem:[%s25 + $0x40] sm:$0xff] %v42
        %v44 = vld [vmem:[%s24 + $0x48] sm:$0xff]
        %45 = vst [vmem:[%s25 + $0x48] sm:$0xff] %v44
        %v46 = vld [vmem:[%s24 + $0x50] sm:$0xff]
        %47 = vst [vmem:[%s25 + $0x50] sm:$0xff] %v46
        %v48 = vld [vmem:[%s24 + $0x58] sm:$0xff]
        %49 = vst [vmem:[%s25 + $0x58] sm:$0xff] %v48
        %v50 = vld [vmem:[%s24 + $0x60] sm:$0xff]
        %51 = vst [vmem:[%s25 + $0x60] sm:$0xff] %v50
        %v52 = vld [vmem:[%s24 + $0x68] sm:$0xff]
        %53 = vst [vmem:[%s25 + $0x68] sm:$0xff] %v52
        %v54 = vld [vmem:[%s24 + $0x70] sm:$0xff]
        %55 = vst [vmem:[%s25 + $0x70] sm:$0xff] %v54
        %v56 = vld [vmem:[%s24 + $0x78] sm:$0xff]
        %57 = vst [vmem:[%s25 + $0x78] sm:$0xff] %v56
        %v58 = vld [vmem:[%s24 + $0x80] sm:$0xff]
        %59 = vst [vmem:[%s25 + $0x80] sm:$0xff] %v58
        %v60 = vld [vmem:[%s24 + $0x88] sm:$0xff]
        %61 = vst [vmem:[%s25 + $0x88] sm:$0xff] %v60
        %v62 = vld [vmem:[%s24 + $0x90] sm:$0xff]
        %63 = vst [vmem:[%s25 + $0x90] sm:$0xff] %v62
        %v64 = vld [vmem:[%s24 + $0x98] sm:$0xff]
        %65 = vst [vmem:[%s25 + $0x98] sm:$0xff] %v64
        %v66 = vld [vmem:[%s24 + $0xa0] sm:$0xff]
        %67 = vst [vmem:[%s25 + $0xa0] sm:$0xff] %v66
        %v68 = vld [vmem:[%s24 + $0xa8] sm:$0xff]
        %69 = vst [vmem:[%s25 + $0xa8] sm:$0xff] %v68
        %v70 = vld [vmem:[%s24 + $0xb0] sm:$0xff]
        %71 = vst [vmem:[%s25 + $0xb0] sm:$0xff] %v70
        %v72 = vld [vmem:[%s24 + $0xb8] sm:$0xff]
        %73 = vst [vmem:[%s25 + $0xb8] sm:$0xff] %v72
        %v74 = vld [vmem:[%s24 + $0xc0] sm:$0xff]
        %75 = vst [vmem:[%s25 + $0xc0] sm:$0xff] %v74
        %v76 = vld [vmem:[%s24 + $0xc8] sm:$0xff]
        %77 = vst [vmem:[%s25 + $0xc8] sm:$0xff] %v76
        %v78 = vld [vmem:[%s24 + $0xd0] sm:$0xff]
        %79 = vst [vmem:[%s25 + $0xd0] sm:$0xff] %v78
        %v80 = vld [vmem:[%s24 + $0xd8] sm:$0xff]
        %81 = vst [vmem:[%s25 + $0xd8] sm:$0xff] %v80
        %v82 = vld [vmem:[%s24 + $0xe0] sm:$0xff]
        %83 = vst [vmem:[%s25 + $0xe0] sm:$0xff] %v82
        %v84 = vld [vmem:[%s24 + $0xe8] sm:$0xff]
        %85 = vst [vmem:[%s25 + $0xe8] sm:$0xff] %v84
        %v86 = vld [vmem:[%s24 + $0xf0] sm:$0xff]
        %87 = vst [vmem:[%s25 + $0xf0] sm:$0xff] %v86
        %v88 = vld [vmem:[%s24 + $0xf8] sm:$0xff]
        %89 = vst [vmem:[%s25 + $0xf8] sm:$0xff] %v88
      $region18: #{stacked_lstm.7} parent=12 // loop_footer
        %s23 = sadd.s32 1, %s19
      $region19: #{stacked_lstm.7} parent=12 // loop_footer_branch
        %18 = sbr.rel target = $region15
      $region20: #{stacked_lstm.7} parent=12 // loop_exit
        _
    $region13: #{stacked_lstm.7} parent=8 // pred_fallthru
      _
    // Predicated region
    $region21: #{stacked_lstm.7} parent=8 // pred_check
      _
    $region22: #{stacked_lstm.7} parent=8 // pred_check_branch
      %91 = sbr.rel target = $region24
    $region23: #{stacked_lstm.7} parent=8 // pred_region
      _
    $region24: #{stacked_lstm.7} parent=8 // pred_fallthru
      _
    // Predicated region
    $region25: #{stacked_lstm.7} parent=8 // pred_check
      _
    $region26: #{stacked_lstm.7} parent=8 // pred_check_branch
      %94 = sbr.rel (0) target = $region28
    $region27: #{stacked_lstm.7} parent=8 // pred_region
      %95 = vsyncadd [#allocation5], 4096
    $region28: #{stacked_lstm.7} parent=8 // pred_fallthru
      _
    %s96 = smul.u32 4, 16
    %s97 = smul.u32 %s96, 4
    %s98 = sshll.u32 %s97, 4
    %99 = dma.done [#allocation5], %s98
    %100 = vst [vmem:[#allocation3] sm:$0xff] 0.0
    %101 = vst [vmem:[#allocation4] sm:$0xff] 0.0
  $region9: #{stacked_lstm.7} parent=0 // pred_fallthru
    _
  %v102 = vld [vmem:[#allocation3] sm:$0xff]
  %v103 = vld [vmem:[#allocation4] sm:$0xff]
  %v104 = vld [vmem:[%s0] sm:$0xff]
  %v105 = vld [vmem:[%s0 + $0x8] sm:$0xff]
  %v106 = vld [vmem:[%s0 + $0x10] sm:$0xff]
  %v107 = vld [vmem:[%s0 + $0x18] sm:$0xff]
  %v108 = vpack.c.bf16 %v102, %v102
  %v109 = vld [vmem:[#allocation2] sm:$0xff]
  %v110 = vld [vmem:[#allocation2 + $0x8] sm:$0xff]
  %v111 = vld [vmem:[#allocation2 + $0x10] sm:$0xff]
  %v112 = vld [vmem:[#allocation2 + $0x18] sm:$0xff]
  %v113 = vld [vmem:[#allocation2 + $0x20] sm:$0xff]
  %v114 = vld [vmem:[#allocation2 + $0x28] sm:$0xff]
  %v115 = vld [vmem:[#allocation2 + $0x30] sm:$0xff]
  %v116 = vld [vmem:[#allocation2 + $0x38] sm:$0xff]
  %v117 = vld [vmem:[#allocation2 + $0x40] sm:$0xff]
  %v118 = vld [vmem:[#allocation2 + $0x48] sm:$0xff]
  %v119 = vld [vmem:[#allocation2 + $0x50] sm:$0xff]
  %v120 = vld [vmem:[#allocation2 + $0x58] sm:$0xff]
  %v121 = vld [vmem:[#allocation2 + $0x60] sm:$0xff]
  %v122 = vld [vmem:[#allocation2 + $0x68] sm:$0xff]
  %v123 = vld [vmem:[#allocation2 + $0x70] sm:$0xff]
  %v124 = vld [vmem:[#allocation2 + $0x78] sm:$0xff]
  %v125 = vld [vmem:[#allocation2 + $0x80] sm:$0xff]
  %v126 = vld [vmem:[#allocation2 + $0x88] sm:$0xff]
  %v127 = vld [vmem:[#allocation2 + $0x90] sm:$0xff]
  %v128 = vld [vmem:[#allocation2 + $0x98] sm:$0xff]
  %v129 = vld [vmem:[#allocation2 + $0xa0] sm:$0xff]
  %v130 = vld [vmem:[#allocation2 + $0xa8] sm:$0xff]
  %v131 = vld [vmem:[#allocation2 + $0xb0] sm:$0xff]
  %v132 = vld [vmem:[#allocation2 + $0xb8] sm:$0xff]
  %v133 = vld [vmem:[#allocation2 + $0xc0] sm:$0xff]
  %v134 = vld [vmem:[#allocation2 + $0xc8] sm:$0xff]
  %v135 = vld [vmem:[#allocation2 + $0xd0] sm:$0xff]
  %v136 = vld [vmem:[#allocation2 + $0xd8] sm:$0xff]
  %v137 = vld [vmem:[#allocation2 + $0xe0] sm:$0xff]
  %v138 = vld [vmem:[#allocation2 + $0xe8] sm:$0xff]
  %v139 = vld [vmem:[#allocation2 + $0xf0] sm:$0xff]
  %v140 = vld [vmem:[#allocation2 + $0xf8] sm:$0xff]
  %v173 = vunpack.c.l.b16 %v109
  %v174 = vunpack.c.h.b16 %v109
  %v175 = vunpack.c.l.b16 %v110
  %v176 = vunpack.c.h.b16 %v110
  %v177 = vunpack.c.l.b16 %v111
  %v178 = vunpack.c.h.b16 %v111
  %v179 = vunpack.c.l.b16 %v112
  %v180 = vunpack.c.h.b16 %v112
  %v181 = vunpack.c.l.b16 %v113
  %v182 = vunpack.c.h.b16 %v113
  %v183 = vunpack.c.l.b16 %v114
  %v184 = vunpack.c.h.b16 %v114
  %v185 = vunpack.c.l.b16 %v115
  %v186 = vunpack.c.h.b16 %v115
  %v187 = vunpack.c.l.b16 %v116
  %v188 = vunpack.c.h.b16 %v116
  %v189 = vunpack.c.l.b16 %v117
  %v190 = vunpack.c.h.b16 %v117
  %v191 = vunpack.c.l.b16 %v118
  %v192 = vunpack.c.h.b16 %v118
  %v193 = vunpack.c.l.b16 %v119
  %v194 = vunpack.c.h.b16 %v119
  %v195 = vunpack.c.l.b16 %v120
  %v196 = vunpack.c.h.b16 %v120
  %v197 = vunpack.c.l.b16 %v121
  %v198 = vunpack.c.h.b16 %v121
  %v199 = vunpack.c.l.b16 %v122
  %v200 = vunpack.c.h.b16 %v122
  %v201 = vunpack.c.l.b16 %v123
  %v202 = vunpack.c.h.b16 %v123
  %v203 = vunpack.c.l.b16 %v124
  %v204 = vunpack.c.h.b16 %v124
  %v205 = vunpack.c.l.b16 %v125
  %v206 = vunpack.c.h.b16 %v125
  %v207 = vunpack.c.l.b16 %v126
  %v208 = vunpack.c.h.b16 %v126
  %v209 = vunpack.c.l.b16 %v127
  %v210 = vunpack.c.h.b16 %v127
  %v211 = vunpack.c.l.b16 %v128
  %v212 = vunpack.c.h.b16 %v128
  %v213 = vunpack.c.l.b16 %v129
  %v214 = vunpack.c.h.b16 %v129
  %v215 = vunpack.c.l.b16 %v130
  %v216 = vunpack.c.h.b16 %v130
  %v217 = vunpack.c.l.b16 %v131
  %v218 = vunpack.c.h.b16 %v131
  %v219 = vunpack.c.l.b16 %v132
  %v220 = vunpack.c.h.b16 %v132
  %v221 = vunpack.c.l.b16 %v133
  %v222 = vunpack.c.h.b16 %v133
  %v223 = vunpack.c.l.b16 %v134
  %v224 = vunpack.c.h.b16 %v134
  %v225 = vunpack.c.l.b16 %v135
  %v226 = vunpack.c.h.b16 %v135
  %v227 = vunpack.c.l.b16 %v136
  %v228 = vunpack.c.h.b16 %v136
  %v229 = vunpack.c.l.b16 %v137
  %v230 = vunpack.c.h.b16 %v137
  %v231 = vunpack.c.l.b16 %v138
  %v232 = vunpack.c.h.b16 %v138
  %v233 = vunpack.c.l.b16 %v139
  %v234 = vunpack.c.h.b16 %v139
  %v235 = vunpack.c.l.b16 %v140
  %v236 = vunpack.c.h.b16 %v140
  %v237 = vpack.c.b16 %v177, %v173
  %v238 = vpack.c.b16 %v178, %v174
  %v239 = vpack.c.b16 %v179, %v175
  %v240 = vpack.c.b16 %v180, %v176
  %v241 = vpack.c.b16 %v185, %v181
  %v242 = vpack.c.b16 %v186, %v182
  %v243 = vpack.c.b16 %v187, %v183
  %v244 = vpack.c.b16 %v188, %v184
  %v245 = vpack.c.b16 %v193, %v189
  %v246 = vpack.c.b16 %v194, %v190
  %v247 = vpack.c.b16 %v195, %v191
  %v248 = vpack.c.b16 %v196, %v192
  %v249 = vpack.c.b16 %v201, %v197
  %v250 = vpack.c.b16 %v202, %v198
  %v251 = vpack.c.b16 %v203, %v199
  %v252 = vpack.c.b16 %v204, %v200
  %v253 = vpack.c.b16 %v209, %v205
  %v254 = vpack.c.b16 %v210, %v206
  %v255 = vpack.c.b16 %v211, %v207
  %v256 = vpack.c.b16 %v212, %v208
  %v257 = vpack.c.b16 %v217, %v213
  %v258 = vpack.c.b16 %v218, %v214
  %v259 = vpack.c.b16 %v219, %v215
  %v260 = vpack.c.b16 %v220, %v216
  %v261 = vpack.c.b16 %v225, %v221
  %v262 = vpack.c.b16 %v226, %v222
  %v263 = vpack.c.b16 %v227, %v223
  %v264 = vpack.c.b16 %v228, %v224
  %v265 = vpack.c.b16 %v233, %v229
  %v266 = vpack.c.b16 %v234, %v230
  %v267 = vpack.c.b16 %v235, %v231
  %v268 = vpack.c.b16 %v236, %v232
  %301 = vmatpush.bf16.msra.mxu0 %v265
  %302 = vmatpush.bf16.msra.mxu0 %v261
  %303 = vmatpush.bf16.msra.mxu0 %v257
  %304 = vmatpush.bf16.msra.mxu0 %v253
  %305 = vmatpush.bf16.msra.mxu0 %v249
  %306 = vmatpush.bf16.msra.mxu0 %v245
  %307 = vmatpush.bf16.msra.mxu0 %v241
  %308 = vmatpush.bf16.msra.mxu0 %v237
  %309 = vmatmul.bf16.gmra.mxu0 %v108
  %v310 = vpop.f32.mrf.mxu0
  %v311 = vadd.f32 0.0, %v310
  %v312 = vpop.f32.mrf.mxu0
  %313 = vdwg.mxu0
  %314 = vmatpush.bf16.msra.mxu0 %v266
  %315 = vmatpush.bf16.msra.mxu0 %v262
  %316 = vmatpush.bf16.msra.mxu0 %v258
  %317 = vmatpush.bf16.msra.mxu0 %v254
  %318 = vmatpush.bf16.msra.mxu0 %v250
  %319 = vmatpush.bf16.msra.mxu0 %v246
  %320 = vmatpush.bf16.msra.mxu0 %v242
  %321 = vmatpush.bf16.msra.mxu0 %v238
  %322 = vmatmul.bf16.gmra.mxu0 %v108
  %v323 = vpop.f32.mrf.mxu0
  %v324 = vadd.f32 0.0, %v323
  %v325 = vpop.f32.mrf.mxu0
  %326 = vdwg.mxu0
  %327 = vmatpush.bf16.msra.mxu0 %v267
  %328 = vmatpush.bf16.msra.mxu0 %v263
  %329 = vmatpush.bf16.msra.mxu0 %v259
  %330 = vmatpush.bf16.msra.mxu0 %v255
  %331 = vmatpush.bf16.msra.mxu0 %v251
  %332 = vmatpush.bf16.msra.mxu0 %v247
  %333 = vmatpush.bf16.msra.mxu0 %v243
  %334 = vmatpush.bf16.msra.mxu0 %v239
  %335 = vmatmul.bf16.gmra.mxu0 %v108
  %v336 = vpop.f32.mrf.mxu0
  %v337 = vadd.f32 0.0, %v336
  %v338 = vpop.f32.mrf.mxu0
  %339 = vdwg.mxu0
  %340 = vmatpush.bf16.msra.mxu0 %v268
  %341 = vmatpush.bf16.msra.mxu0 %v264
  %342 = vmatpush.bf16.msra.mxu0 %v260
  %343 = vmatpush.bf16.msra.mxu0 %v256
  %344 = vmatpush.bf16.msra.mxu0 %v252
  %345 = vmatpush.bf16.msra.mxu0 %v248
  %346 = vmatpush.bf16.msra.mxu0 %v244
  %347 = vmatpush.bf16.msra.mxu0 %v240
  %348 = vmatmul.bf16.gmra.mxu0 %v108
  %v349 = vpop.f32.mrf.mxu0
  %v350 = vadd.f32 0.0, %v349
  %v351 = vpop.f32.mrf.mxu0
  %352 = vdwg.mxu0
  %v353 = vadd.f32 %v104, %v311
  %v354 = vadd.f32 %v105, %v324
  %v355 = vadd.f32 %v106, %v337
  %v356 = vadd.f32 %v107, %v350
  %v357 = vmul.f32 %v353, 0.5
  %v358 = vtanh.pop %v357
  %v359 = vadd.f32 %v358, 1.0
  %v360 = vmul.f32 %v359, 0.5
  %v361 = vmul.f32 %v354, 0.5
  %v362 = vtanh.pop %v361
  %v363 = vadd.f32 %v362, 1.0
  %v364 = vmul.f32 %v363, 0.5
  %v365 = vtanh.pop %v355
  %v366 = vmul.f32 %v356, 0.5
  %v367 = vtanh.pop %v366
  %v368 = vadd.f32 %v367, 1.0
  %v369 = vmul.f32 %v368, 0.5
  %v370 = vmul.f32 %v364, %v103
  %v371 = vmul.f32 %v360, %v365
  %v372 = vadd.f32 %v370, %v371
  %v373 = vtanh.pop %v372
  %v374 = vmul.f32 %v369, %v373
  %v375 = vpack.c.bf16 %v374, %v374
  %376 = vst [vmem:[%s2] sm:$0xf] %v375
  %s377 = scalar_lea.vmem %s0, 32
  %v378 = vld [vmem:[%s377] sm:$0xff]
  %v379 = vld [vmem:[%s377 + $0x8] sm:$0xff]
  %v380 = vld [vmem:[%s377 + $0x10] sm:$0xff]
  %v381 = vld [vmem:[%s377 + $0x18] sm:$0xff]
  %v382 = vld [vmem:[#allocation2] sm:$0xff]
  %v383 = vld [vmem:[#allocation2 + $0x8] sm:$0xff]
  %v384 = vld [vmem:[#allocation2 + $0x10] sm:$0xff]
  %v385 = vld [vmem:[#allocation2 + $0x18] sm:$0xff]
  %v386 = vld [vmem:[#allocation2 + $0x20] sm:$0xff]
  %v387 = vld [vmem:[#allocation2 + $0x28] sm:$0xff]
  %v388 = vld [vmem:[#allocation2 + $0x30] sm:$0xff]
  %v389 = vld [vmem:[#allocation2 + $0x38] sm:$0xff]
  %v390 = vld [vmem:[#allocation2 + $0x40] sm:$0xff]
  %v391 = vld [vmem:[#allocation2 + $0x48] sm:$0xff]
  %v392 = vld [vmem:[#allocation2 + $0x50] sm:$0xff]
  %v393 = vld [vmem:[#allocation2 + $0x58] sm:$0xff]
  %v394 = vld [vmem:[#allocation2 + $0x60] sm:$0xff]
  %v395 = vld [vmem:[#allocation2 + $0x68] sm:$0xff]
  %v396 = vld [vmem:[#allocation2 + $0x70] sm:$0xff]
  %v397 = vld [vmem:[#allocation2 + $0x78] sm:$0xff]
  %v398 = vld [vmem:[#allocation2 + $0x80] sm:$0xff]
  %v399 = vld [vmem:[#allocation2 + $0x88] sm:$0xff]
  %v400 = vld [vmem:[#allocation2 + $0x90] sm:$0xff]
  %v401 = vld [vmem:[#allocation2 + $0x98] sm:$0xff]
  %v402 = vld [vmem:[#allocation2 + $0xa0] sm:$0xff]
  %v403 = vld [vmem:[#allocation2 + $0xa8] sm:$0xff]
  %v404 = vld [vmem:[#allocation2 + $0xb0] sm:$0xff]
  %v405 = vld [vmem:[#allocation2 + $0xb8] sm:$0xff]
  %v406 = vld [vmem:[#allocation2 + $0xc0] sm:$0xff]
  %v407 = vld [vmem:[#allocation2 + $0xc8] sm:$0xff]
  %v408 = vld [vmem:[#allocation2 + $0xd0] sm:$0xff]
  %v409 = vld [vmem:[#allocation2 + $0xd8] sm:$0xff]
  %v410 = vld [vmem:[#allocation2 + $0xe0] sm:$0xff]
  %v411 = vld [vmem:[#allocation2 + $0xe8] sm:$0xff]
  %v412 = vld [vmem:[#allocation2 + $0xf0] sm:$0xff]
  %v413 = vld [vmem:[#allocation2 + $0xf8] sm:$0xff]
  %v446 = vunpack.c.l.b16 %v382
  %v447 = vunpack.c.h.b16 %v382
  %v448 = vunpack.c.l.b16 %v383
  %v449 = vunpack.c.h.b16 %v383
  %v450 = vunpack.c.l.b16 %v384
  %v451 = vunpack.c.h.b16 %v384
  %v452 = vunpack.c.l.b16 %v385
  %v453 = vunpack.c.h.b16 %v385
  %v454 = vunpack.c.l.b16 %v386
  %v455 = vunpack.c.h.b16 %v386
  %v456 = vunpack.c.l.b16 %v387
  %v457 = vunpack.c.h.b16 %v387
  %v458 = vunpack.c.l.b16 %v388
  %v459 = vunpack.c.h.b16 %v388
  %v460 = vunpack.c.l.b16 %v389
  %v461 = vunpack.c.h.b16 %v389
  %v462 = vunpack.c.l.b16 %v390
  %v463 = vunpack.c.h.b16 %v390
  %v464 = vunpack.c.l.b16 %v391
  %v465 = vunpack.c.h.b16 %v391
  %v466 = vunpack.c.l.b16 %v392
  %v467 = vunpack.c.h.b16 %v392
  %v468 = vunpack.c.l.b16 %v393
  %v469 = vunpack.c.h.b16 %v393
  %v470 = vunpack.c.l.b16 %v394
  %v471 = vunpack.c.h.b16 %v394
  %v472 = vunpack.c.l.b16 %v395
  %v473 = vunpack.c.h.b16 %v395
  %v474 = vunpack.c.l.b16 %v396
  %v475 = vunpack.c.h.b16 %v396
  %v476 = vunpack.c.l.b16 %v397
  %v477 = vunpack.c.h.b16 %v397
  %v478 = vunpack.c.l.b16 %v398
  %v479 = vunpack.c.h.b16 %v398
  %v480 = vunpack.c.l.b16 %v399
  %v481 = vunpack.c.h.b16 %v399
  %v482 = vunpack.c.l.b16 %v400
  %v483 = vunpack.c.h.b16 %v400
  %v484 = vunpack.c.l.b16 %v401
  %v485 = vunpack.c.h.b16 %v401
  %v486 = vunpack.c.l.b16 %v402
  %v487 = vunpack.c.h.b16 %v402
  %v488 = vunpack.c.l.b16 %v403
  %v489 = vunpack.c.h.b16 %v403
  %v490 = vunpack.c.l.b16 %v404
  %v491 = vunpack.c.h.b16 %v404
  %v492 = vunpack.c.l.b16 %v405
  %v493 = vunpack.c.h.b16 %v405
  %v494 = vunpack.c.l.b16 %v406
  %v495 = vunpack.c.h.b16 %v406
  %v496 = vunpack.c.l.b16 %v407
  %v497 = vunpack.c.h.b16 %v407
  %v498 = vunpack.c.l.b16 %v408
  %v499 = vunpack.c.h.b16 %v408
  %v500 = vunpack.c.l.b16 %v409
  %v501 = vunpack.c.h.b16 %v409
  %v502 = vunpack.c.l.b16 %v410
  %v503 = vunpack.c.h.b16 %v410
  %v504 = vunpack.c.l.b16 %v411
  %v505 = vunpack.c.h.b16 %v411
  %v506 = vunpack.c.l.b16 %v412
  %v507 = vunpack.c.h.b16 %v412
  %v508 = vunpack.c.l.b16 %v413
  %v509 = vunpack.c.h.b16 %v413
  %v510 = vpack.c.b16 %v450, %v446
  %v511 = vpack.c.b16 %v451, %v447
  %v512 = vpack.c.b16 %v452, %v448
  %v513 = vpack.c.b16 %v453, %v449
  %v514 = vpack.c.b16 %v458, %v454
  %v515 = vpack.c.b16 %v459, %v455
  %v516 = vpack.c.b16 %v460, %v456
  %v517 = vpack.c.b16 %v461, %v457
  %v518 = vpack.c.b16 %v466, %v462
  %v519 = vpack.c.b16 %v467, %v463
  %v520 = vpack.c.b16 %v468, %v464
  %v521 = vpack.c.b16 %v469, %v465
  %v522 = vpack.c.b16 %v474, %v470
  %v523 = vpack.c.b16 %v475, %v471
  %v524 = vpack.c.b16 %v476, %v472
  %v525 = vpack.c.b16 %v477, %v473
  %v526 = vpack.c.b16 %v482, %v478
  %v527 = vpack.c.b16 %v483, %v479
  %v528 = vpack.c.b16 %v484, %v480
  %v529 = vpack.c.b16 %v485, %v481
  %v530 = vpack.c.b16 %v490, %v486
  %v531 = vpack.c.b16 %v491, %v487
  %v532 = vpack.c.b16 %v492, %v488
  %v533 = vpack.c.b16 %v493, %v489
  %v534 = vpack.c.b16 %v498, %v494
  %v535 = vpack.c.b16 %v499, %v495
  %v536 = vpack.c.b16 %v500, %v496
  %v537 = vpack.c.b16 %v501, %v497
  %v538 = vpack.c.b16 %v506, %v502
  %v539 = vpack.c.b16 %v507, %v503
  %v540 = vpack.c.b16 %v508, %v504
  %v541 = vpack.c.b16 %v509, %v505
  %574 = vmatpush.bf16.msra.mxu0 %v538
  %575 = vmatpush.bf16.msra.mxu0 %v534
  %576 = vmatpush.bf16.msra.mxu0 %v530
  %577 = vmatpush.bf16.msra.mxu0 %v526
  %578 = vmatpush.bf16.msra.mxu0 %v522
  %579 = vmatpush.bf16.msra.mxu0 %v518
  %580 = vmatpush.bf16.msra.mxu0 %v514
  %581 = vmatpush.bf16.msra.mxu0 %v510
  %582 = vmatmul.bf16.gmra.mxu0 %v375
  %v583 = vpop.f32.mrf.mxu0
  %v584 = vadd.f32 0.0, %v583
  %v585 = vpop.f32.mrf.mxu0
  %586 = vdwg.mxu0
  %587 = vmatpush.bf16.msra.mxu0 %v539
  %588 = vmatpush.bf16.msra.mxu0 %v535
  %589 = vmatpush.bf16.msra.mxu0 %v531
  %590 = vmatpush.bf16.msra.mxu0 %v527
  %591 = vmatpush.bf16.msra.mxu0 %v523
  %592 = vmatpush.bf16.msra.mxu0 %v519
  %593 = vmatpush.bf16.msra.mxu0 %v515
  %594 = vmatpush.bf16.msra.mxu0 %v511
  %595 = vmatmul.bf16.gmra.mxu0 %v375
  %v596 = vpop.f32.mrf.mxu0
  %v597 = vadd.f32 0.0, %v596
  %v598 = vpop.f32.mrf.mxu0
  %599 = vdwg.mxu0
  %600 = vmatpush.bf16.msra.mxu0 %v540
  %601 = vmatpush.bf16.msra.mxu0 %v536
  %602 = vmatpush.bf16.msra.mxu0 %v532
  %603 = vmatpush.bf16.msra.mxu0 %v528
  %604 = vmatpush.bf16.msra.mxu0 %v524
  %605 = vmatpush.bf16.msra.mxu0 %v520
  %606 = vmatpush.bf16.msra.mxu0 %v516
  %607 = vmatpush.bf16.msra.mxu0 %v512
  %608 = vmatmul.bf16.gmra.mxu0 %v375
  %v609 = vpop.f32.mrf.mxu0
  %v610 = vadd.f32 0.0, %v609
  %v611 = vpop.f32.mrf.mxu0
  %612 = vdwg.mxu0
  %613 = vmatpush.bf16.msra.mxu0 %v541
  %614 = vmatpush.bf16.msra.mxu0 %v537
  %615 = vmatpush.bf16.msra.mxu0 %v533
  %616 = vmatpush.bf16.msra.mxu0 %v529
  %617 = vmatpush.bf16.msra.mxu0 %v525
  %618 = vmatpush.bf16.msra.mxu0 %v521
  %619 = vmatpush.bf16.msra.mxu0 %v517
  %620 = vmatpush.bf16.msra.mxu0 %v513
  %621 = vmatmul.bf16.gmra.mxu0 %v375
  %v622 = vpop.f32.mrf.mxu0
  %v623 = vadd.f32 0.0, %v622
  %v624 = vpop.f32.mrf.mxu0
  %625 = vdwg.mxu0
  %v626 = vadd.f32 %v378, %v584
  %v627 = vadd.f32 %v379, %v597
  %v628 = vadd.f32 %v380, %v610
  %v629 = vadd.f32 %v381, %v623
  %v630 = vmul.f32 %v626, 0.5
  %v631 = vtanh.pop %v630
  %v632 = vadd.f32 %v631, 1.0
  %v633 = vmul.f32 %v632, 0.5
  %v634 = vmul.f32 %v627, 0.5
  %v635 = vtanh.pop %v634
  %v636 = vadd.f32 %v635, 1.0
  %v637 = vmul.f32 %v636, 0.5
  %v638 = vtanh.pop %v628
  %v639 = vmul.f32 %v629, 0.5
  %v640 = vtanh.pop %v639
  %v641 = vadd.f32 %v640, 1.0
  %v642 = vmul.f32 %v641, 0.5
  %v643 = vmul.f32 %v637, %v372
  %v644 = vmul.f32 %v633, %v638
  %v645 = vadd.f32 %v643, %v644
  %v646 = vtanh.pop %v645
  %v647 = vmul.f32 %v642, %v646
  %v648 = vpack.c.bf16 %v647, %v647
  %s649 = scalar_lea.vmem %s2, 4
  %650 = vst [vmem:[%s649] sm:$0xf] %v648
  %s651 = scalar_lea.vmem %s0, 64
  %v652 = vld [vmem:[%s651] sm:$0xff]
  %v653 = vld [vmem:[%s651 + $0x8] sm:$0xff]
  %v654 = vld [vmem:[%s651 + $0x10] sm:$0xff]
  %v655 = vld [vmem:[%s651 + $0x18] sm:$0xff]
  %v656 = vld [vmem:[#allocation2] sm:$0xff]
  %v657 = vld [vmem:[#allocation2 + $0x8] sm:$0xff]
  %v658 = vld [vmem:[#allocation2 + $0x10] sm:$0xff]
  %v659 = vld [vmem:[#allocation2 + $0x18] sm:$0xff]
  %v660 = vld [vmem:[#allocation2 + $0x20] sm:$0xff]
  %v661 = vld [vmem:[#allocation2 + $0x28] sm:$0xff]
  %v662 = vld [vmem:[#allocation2 + $0x30] sm:$0xff]
  %v663 = vld [vmem:[#allocation2 + $0x38] sm:$0xff]
  %v664 = vld [vmem:[#allocation2 + $0x40] sm:$0xff]
  %v665 = vld [vmem:[#allocation2 + $0x48] sm:$0xff]
  %v666 = vld [vmem:[#allocation2 + $0x50] sm:$0xff]
  %v667 = vld [vmem:[#allocation2 + $0x58] sm:$0xff]
  %v668 = vld [vmem:[#allocation2 + $0x60] sm:$0xff]
  %v669 = vld [vmem:[#allocation2 + $0x68] sm:$0xff]
  %v670 = vld [vmem:[#allocation2 + $0x70] sm:$0xff]
  %v671 = vld [vmem:[#allocation2 + $0x78] sm:$0xff]
  %v672 = vld [vmem:[#allocation2 + $0x80] sm:$0xff]
  %v673 = vld [vmem:[#allocation2 + $0x88] sm:$0xff]
  %v674 = vld [vmem:[#allocation2 + $0x90] sm:$0xff]
  %v675 = vld [vmem:[#allocation2 + $0x98] sm:$0xff]
  %v676 = vld [vmem:[#allocation2 + $0xa0] sm:$0xff]
  %v677 = vld [vmem:[#allocation2 + $0xa8] sm:$0xff]
  %v678 = vld [vmem:[#allocation2 + $0xb0] sm:$0xff]
  %v679 = vld [vmem:[#allocation2 + $0xb8] sm:$0xff]
  %v680 = vld [vmem:[#allocation2 + $0xc0] sm:$0xff]
  %v681 = vld [vmem:[#allocation2 + $0xc8] sm:$0xff]
  %v682 = vld [vmem:[#allocation2 + $0xd0] sm:$0xff]
  %v683 = vld [vmem:[#allocation2 + $0xd8] sm:$0xff]
  %v684 = vld [vmem:[#allocation2 + $0xe0] sm:$0xff]
  %v685 = vld [vmem:[#allocation2 + $0xe8] sm:$0xff]
  %v686 = vld [vmem:[#allocation2 + $0xf0] sm:$0xff]
  %v687 = vld [vmem:[#allocation2 + $0xf8] sm:$0xff]
  %v720 = vunpack.c.l.b16 %v656
  %v721 = vunpack.c.h.b16 %v656
  %v722 = vunpack.c.l.b16 %v657
  %v723 = vunpack.c.h.b16 %v657
  %v724 = vunpack.c.l.b16 %v658
  %v725 = vunpack.c.h.b16 %v658
  %v726 = vunpack.c.l.b16 %v659
  %v727 = vunpack.c.h.b16 %v659
  %v728 = vunpack.c.l.b16 %v660
  %v729 = vunpack.c.h.b16 %v660
  %v730 = vunpack.c.l.b16 %v661
  %v731 = vunpack.c.h.b16 %v661
  %v732 = vunpack.c.l.b16 %v662
  %v733 = vunpack.c.h.b16 %v662
  %v734 = vunpack.c.l.b16 %v663
  %v735 = vunpack.c.h.b16 %v663
  %v736 = vunpack.c.l.b16 %v664
  %v737 = vunpack.c.h.b16 %v664
  %v738 = vunpack.c.l.b16 %v665
  %v739 = vunpack.c.h.b16 %v665
  %v740 = vunpack.c.l.b16 %v666
  %v741 = vunpack.c.h.b16 %v666
  %v742 = vunpack.c.l.b16 %v667
  %v743 = vunpack.c.h.b16 %v667
  %v744 = vunpack.c.l.b16 %v668
  %v745 = vunpack.c.h.b16 %v668
  %v746 = vunpack.c.l.b16 %v669
  %v747 = vunpack.c.h.b16 %v669
  %v748 = vunpack.c.l.b16 %v670
  %v749 = vunpack.c.h.b16 %v670
  %v750 = vunpack.c.l.b16 %v671
  %v751 = vunpack.c.h.b16 %v671
  %v752 = vunpack.c.l.b16 %v672
  %v753 = vunpack.c.h.b16 %v672
  %v754 = vunpack.c.l.b16 %v673
  %v755 = vunpack.c.h.b16 %v673
  %v756 = vunpack.c.l.b16 %v674
  %v757 = vunpack.c.h.b16 %v674
  %v758 = vunpack.c.l.b16 %v675
  %v759 = vunpack.c.h.b16 %v675
  %v760 = vunpack.c.l.b16 %v676
  %v761 = vunpack.c.h.b16 %v676
  %v762 = vunpack.c.l.b16 %v677
  %v763 = vunpack.c.h.b16 %v677
  %v764 = vunpack.c.l.b16 %v678
  %v765 = vunpack.c.h.b16 %v678
  %v766 = vunpack.c.l.b16 %v679
  %v767 = vunpack.c.h.b16 %v679
  %v768 = vunpack.c.l.b16 %v680
  %v769 = vunpack.c.h.b16 %v680
  %v770 = vunpack.c.l.b16 %v681
  %v771 = vunpack.c.h.b16 %v681
  %v772 = vunpack.c.l.b16 %v682
  %v773 = vunpack.c.h.b16 %v682
  %v774 = vunpack.c.l.b16 %v683
  %v775 = vunpack.c.h.b16 %v683
  %v776 = vunpack.c.l.b16 %v684
  %v777 = vunpack.c.h.b16 %v684
  %v778 = vunpack.c.l.b16 %v685
  %v779 = vunpack.c.h.b16 %v685
  %v780 = vunpack.c.l.b16 %v686
  %v781 = vunpack.c.h.b16 %v686
  %v782 = vunpack.c.l.b16 %v687
  %v783 = vunpack.c.h.b16 %v687
  %v784 = vpack.c.b16 %v724, %v720
  %v785 = vpack.c.b16 %v725, %v721
  %v786 = vpack.c.b16 %v726, %v722
  %v787 = vpack.c.b16 %v727, %v723
  %v788 = vpack.c.b16 %v732, %v728
  %v789 = vpack.c.b16 %v733, %v729
  %v790 = vpack.c.b16 %v734, %v730
  %v791 = vpack.c.b16 %v735, %v731
  %v792 = vpack.c.b16 %v740, %v736
  %v793 = vpack.c.b16 %v741, %v737
  %v794 = vpack.c.b16 %v742, %v738
  %v795 = vpack.c.b16 %v743, %v739
  %v796 = vpack.c.b16 %v748, %v744
  %v797 = vpack.c.b16 %v749, %v745
  %v798 = vpack.c.b16 %v750, %v746
  %v799 = vpack.c.b16 %v751, %v747
  %v800 = vpack.c.b16 %v756, %v752
  %v801 = vpack.c.b16 %v757, %v753
  %v802 = vpack.c.b16 %v758, %v754
  %v803 = vpack.c.b16 %v759, %v755
  %v804 = vpack.c.b16 %v764, %v760
  %v805 = vpack.c.b16 %v765, %v761
  %v806 = vpack.c.b16 %v766, %v762
  %v807 = vpack.c.b16 %v767, %v763
  %v808 = vpack.c.b16 %v772, %v768
  %v809 = vpack.c.b16 %v773, %v769
  %v810 = vpack.c.b16 %v774, %v770
  %v811 = vpack.c.b16 %v775, %v771
  %v812 = vpack.c.b16 %v780, %v776
  %v813 = vpack.c.b16 %v781, %v777
  %v814 = vpack.c.b16 %v782, %v778
  %v815 = vpack.c.b16 %v783, %v779
  %848 = vmatpush.bf16.msra.mxu0 %v812
  %849 = vmatpush.bf16.msra.mxu0 %v808
  %850 = vmatpush.bf16.msra.mxu0 %v804
  %851 = vmatpush.bf16.msra.mxu0 %v800
  %852 = vmatpush.bf16.msra.mxu0 %v796
  %853 = vmatpush.bf16.msra.mxu0 %v792
  %854 = vmatpush.bf16.msra.mxu0 %v788
  %855 = vmatpush.bf16.msra.mxu0 %v784
  %856 = vmatmul.bf16.gmra.mxu0 %v648
  %v857 = vpop.f32.mrf.mxu0
  %v858 = vadd.f32 0.0, %v857
  %v859 = vpop.f32.mrf.mxu0
  %860 = vdwg.mxu0
  %861 = vmatpush.bf16.msra.mxu0 %v813
  %862 = vmatpush.bf16.msra.mxu0 %v809
  %863 = vmatpush.bf16.msra.mxu0 %v805
  %864 = vmatpush.bf16.msra.mxu0 %v801
  %865 = vmatpush.bf16.msra.mxu0 %v797
  %866 = vmatpush.bf16.msra.mxu0 %v793
  %867 = vmatpush.bf16.msra.mxu0 %v789
  %868 = vmatpush.bf16.msra.mxu0 %v785
  %869 = vmatmul.bf16.gmra.mxu0 %v648
  %v870 = vpop.f32.mrf.mxu0
  %v871 = vadd.f32 0.0, %v870
  %v872 = vpop.f32.mrf.mxu0
  %873 = vdwg.mxu0
  %874 = vmatpush.bf16.msra.mxu0 %v814
  %875 = vmatpush.bf16.msra.mxu0 %v810
  %876 = vmatpush.bf16.msra.mxu0 %v806
  %877 = vmatpush.bf16.msra.mxu0 %v802
  %878 = vmatpush.bf16.msra.mxu0 %v798
  %879 = vmatpush.bf16.msra.mxu0 %v794
  %880 = vmatpush.bf16.msra.mxu0 %v790
  %881 = vmatpush.bf16.msra.mxu0 %v786
  %882 = vmatmul.bf16.gmra.mxu0 %v648
  %v883 = vpop.f32.mrf.mxu0
  %v884 = vadd.f32 0.0, %v883
  %v885 = vpop.f32.mrf.mxu0
  %886 = vdwg.mxu0
  %887 = vmatpush.bf16.msra.mxu0 %v815
  %888 = vmatpush.bf16.msra.mxu0 %v811
  %889 = vmatpush.bf16.msra.mxu0 %v807
  %890 = vmatpush.bf16.msra.mxu0 %v803
  %891 = vmatpush.bf16.msra.mxu0 %v799
  %892 = vmatpush.bf16.msra.mxu0 %v795
  %893 = vmatpush.bf16.msra.mxu0 %v791
  %894 = vmatpush.bf16.msra.mxu0 %v787
  %895 = vmatmul.bf16.gmra.mxu0 %v648
  %v896 = vpop.f32.mrf.mxu0
  %v897 = vadd.f32 0.0, %v896
  %v898 = vpop.f32.mrf.mxu0
  %899 = vdwg.mxu0
  %v900 = vadd.f32 %v652, %v858
  %v901 = vadd.f32 %v653, %v871
  %v902 = vadd.f32 %v654, %v884
  %v903 = vadd.f32 %v655, %v897
  %v904 = vmul.f32 %v900, 0.5
  %v905 = vtanh.pop %v904
  %v906 = vadd.f32 %v905, 1.0
  %v907 = vmul.f32 %v906, 0.5
  %v908 = vmul.f32 %v901, 0.5
  %v909 = vtanh.pop %v908
  %v910 = vadd.f32 %v909, 1.0
  %v911 = vmul.f32 %v910, 0.5
  %v912 = vtanh.pop %v902
  %v913 = vmul.f32 %v903, 0.5
  %v914 = vtanh.pop %v913
  %v915 = vadd.f32 %v914, 1.0
  %v916 = vmul.f32 %v915, 0.5
  %v917 = vmul.f32 %v911, %v645
  %v918 = vmul.f32 %v907, %v912
  %v919 = vadd.f32 %v917, %v918
  %v920 = vtanh.pop %v919
  %v921 = vmul.f32 %v916, %v920
  %v922 = vpack.c.bf16 %v921, %v921
  %s923 = scalar_lea.vmem %s2, 8
  %924 = vst [vmem:[%s923] sm:$0xf] %v922
  %s925 = scalar_lea.vmem %s0, 96
  %v926 = vld [vmem:[%s925] sm:$0xff]
  %v927 = vld [vmem:[%s925 + $0x8] sm:$0xff]
  %v928 = vld [vmem:[%s925 + $0x10] sm:$0xff]
  %v929 = vld [vmem:[%s925 + $0x18] sm:$0xff]
  %v930 = vld [vmem:[#allocation2] sm:$0xff]
  %v931 = vld [vmem:[#allocation2 + $0x8] sm:$0xff]
  %v932 = vld [vmem:[#allocation2 + $0x10] sm:$0xff]
  %v933 = vld [vmem:[#allocation2 + $0x18] sm:$0xff]
  %v934 = vld [vmem:[#allocation2 + $0x20] sm:$0xff]
  %v935 = vld [vmem:[#allocation2 + $0x28] sm:$0xff]
  %v936 = vld [vmem:[#allocation2 + $0x30] sm:$0xff]
  %v937 = vld [vmem:[#allocation2 + $0x38] sm:$0xff]
  %v938 = vld [vmem:[#allocation2 + $0x40] sm:$0xff]
  %v939 = vld [vmem:[#allocation2 + $0x48] sm:$0xff]
  %v940 = vld [vmem:[#allocation2 + $0x50] sm:$0xff]
  %v941 = vld [vmem:[#allocation2 + $0x58] sm:$0xff]
  %v942 = vld [vmem:[#allocation2 + $0x60] sm:$0xff]
  %v943 = vld [vmem:[#allocation2 + $0x68] sm:$0xff]
  %v944 = vld [vmem:[#allocation2 + $0x70] sm:$0xff]
  %v945 = vld [vmem:[#allocation2 + $0x78] sm:$0xff]
  %v946 = vld [vmem:[#allocation2 + $0x80] sm:$0xff]
  %v947 = vld [vmem:[#allocation2 + $0x88] sm:$0xff]
  %v948 = vld [vmem:[#allocation2 + $0x90] sm:$0xff]
  %v949 = vld [vmem:[#allocation2 + $0x98] sm:$0xff]
  %v950 = vld [vmem:[#allocation2 + $0xa0] sm:$0xff]
  %v951 = vld [vmem:[#allocation2 + $0xa8] sm:$0xff]
  %v952 = vld [vmem:[#allocation2 + $0xb0] sm:$0xff]
  %v953 = vld [vmem:[#allocation2 + $0xb8] sm:$0xff]
  %v954 = vld [vmem:[#allocation2 + $0xc0] sm:$0xff]
  %v955 = vld [vmem:[#allocation2 + $0xc8] sm:$0xff]
  %v956 = vld [vmem:[#allocation2 + $0xd0] sm:$0xff]
  %v957 = vld [vmem:[#allocation2 + $0xd8] sm:$0xff]
  %v958 = vld [vmem:[#allocation2 + $0xe0] sm:$0xff]
  %v959 = vld [vmem:[#allocation2 + $0xe8] sm:$0xff]
  %v960 = vld [vmem:[#allocation2 + $0xf0] sm:$0xff]
  %v961 = vld [vmem:[#allocation2 + $0xf8] sm:$0xff]
  %v994 = vunpack.c.l.b16 %v930
  %v995 = vunpack.c.h.b16 %v930
  %v996 = vunpack.c.l.b16 %v931
  %v997 = vunpack.c.h.b16 %v931
  %v998 = vunpack.c.l.b16 %v932
  %v999 = vunpack.c.h.b16 %v932
  %v1000 = vunpack.c.l.b16 %v933
  %v1001 = vunpack.c.h.b16 %v933
  %v1002 = vunpack.c.l.b16 %v934
  %v1003 = vunpack.c.h.b16 %v934
  %v1004 = vunpack.c.l.b16 %v935
  %v1005 = vunpack.c.h.b16 %v935
  %v1006 = vunpack.c.l.b16 %v936
  %v1007 = vunpack.c.h.b16 %v936
  %v1008 = vunpack.c.l.b16 %v937
  %v1009 = vunpack.c.h.b16 %v937
  %v1010 = vunpack.c.l.b16 %v938
  %v1011 = vunpack.c.h.b16 %v938
  %v1012 = vunpack.c.l.b16 %v939
  %v1013 = vunpack.c.h.b16 %v939
  %v1014 = vunpack.c.l.b16 %v940
  %v1015 = vunpack.c.h.b16 %v940
  %v1016 = vunpack.c.l.b16 %v941
  %v1017 = vunpack.c.h.b16 %v941
  %v1018 = vunpack.c.l.b16 %v942
  %v1019 = vunpack.c.h.b16 %v942
  %v1020 = vunpack.c.l.b16 %v943
  %v1021 = vunpack.c.h.b16 %v943
  %v1022 = vunpack.c.l.b16 %v944
  %v1023 = vunpack.c.h.b16 %v944
  %v1024 = vunpack.c.l.b16 %v945
  %v1025 = vunpack.c.h.b16 %v945
  %v1026 = vunpack.c.l.b16 %v946
  %v1027 = vunpack.c.h.b16 %v946
  %v1028 = vunpack.c.l.b16 %v947
  %v1029 = vunpack.c.h.b16 %v947
  %v1030 = vunpack.c.l.b16 %v948
  %v1031 = vunpack.c.h.b16 %v948
  %v1032 = vunpack.c.l.b16 %v949
  %v1033 = vunpack.c.h.b16 %v949
  %v1034 = vunpack.c.l.b16 %v950
  %v1035 = vunpack.c.h.b16 %v950
  %v1036 = vunpack.c.l.b16 %v951
  %v1037 = vunpack.c.h.b16 %v951
  %v1038 = vunpack.c.l.b16 %v952
  %v1039 = vunpack.c.h.b16 %v952
  %v1040 = vunpack.c.l.b16 %v953
  %v1041 = vunpack.c.h.b16 %v953
  %v1042 = vunpack.c.l.b16 %v954
  %v1043 = vunpack.c.h.b16 %v954
  %v1044 = vunpack.c.l.b16 %v955
  %v1045 = vunpack.c.h.b16 %v955
  %v1046 = vunpack.c.l.b16 %v956
  %v1047 = vunpack.c.h.b16 %v956
  %v1048 = vunpack.c.l.b16 %v957
  %v1049 = vunpack.c.h.b16 %v957
  %v1050 = vunpack.c.l.b16 %v958
  %v1051 = vunpack.c.h.b16 %v958
  %v1052 = vunpack.c.l.b16 %v959
  %v1053 = vunpack.c.h.b16 %v959
  %v1054 = vunpack.c.l.b16 %v960
  %v1055 = vunpack.c.h.b16 %v960
  %v1056 = vunpack.c.l.b16 %v961
  %v1057 = vunpack.c.h.b16 %v961
  %v1058 = vpack.c.b16 %v998, %v994
  %v1059 = vpack.c.b16 %v999, %v995
  %v1060 = vpack.c.b16 %v1000, %v996
  %v1061 = vpack.c.b16 %v1001, %v997
  %v1062 = vpack.c.b16 %v1006, %v1002
  %v1063 = vpack.c.b16 %v1007, %v1003
  %v1064 = vpack.c.b16 %v1008, %v1004
  %v1065 = vpack.c.b16 %v1009, %v1005
  %v1066 = vpack.c.b16 %v1014, %v1010
  %v1067 = vpack.c.b16 %v1015, %v1011
  %v1068 = vpack.c.b16 %v1016, %v1012
  %v1069 = vpack.c.b16 %v1017, %v1013
  %v1070 = vpack.c.b16 %v1022, %v1018
  %v1071 = vpack.c.b16 %v1023, %v1019
  %v1072 = vpack.c.b16 %v1024, %v1020
  %v1073 = vpack.c.b16 %v1025, %v1021
  %v1074 = vpack.c.b16 %v1030, %v1026
  %v1075 = vpack.c.b16 %v1031, %v1027
  %v1076 = vpack.c.b16 %v1032, %v1028
  %v1077 = vpack.c.b16 %v1033, %v1029
  %v1078 = vpack.c.b16 %v1038, %v1034
  %v1079 = vpack.c.b16 %v1039, %v1035
  %v1080 = vpack.c.b16 %v1040, %v1036
  %v1081 = vpack.c.b16 %v1041, %v1037
  %v1082 = vpack.c.b16 %v1046, %v1042
  %v1083 = vpack.c.b16 %v1047, %v1043
  %v1084 = vpack.c.b16 %v1048, %v1044
  %v1085 = vpack.c.b16 %v1049, %v1045
  %v1086 = vpack.c.b16 %v1054, %v1050
  %v1087 = vpack.c.b16 %v1055, %v1051
  %v1088 = vpack.c.b16 %v1056, %v1052
  %v1089 = vpack.c.b16 %v1057, %v1053
  %1122 = vmatpush.bf16.msra.mxu0 %v1086
  %1123 = vmatpush.bf16.msra.mxu0 %v1082
  %1124 = vmatpush.bf16.msra.mxu0 %v1078
  %1125 = vmatpush.bf16.msra.mxu0 %v1074
  %1126 = vmatpush.bf16.msra.mxu0 %v1070
  %1127 = vmatpush.bf16.msra.mxu0 %v1066
  %1128 = vmatpush.bf16.msra.mxu0 %v1062
  %1129 = vmatpush.bf16.msra.mxu0 %v1058
  %1130 = vmatmul.bf16.gmra.mxu0 %v922
  %v1131 = vpop.f32.mrf.mxu0
  %v1132 = vadd.f32 0.0, %v1131
  %v1133 = vpop.f32.mrf.mxu0
  %1134 = vdwg.mxu0
  %1135 = vmatpush.bf16.msra.mxu0 %v1087
  %1136 = vmatpush.bf16.msra.mxu0 %v1083
  %1137 = vmatpush.bf16.msra.mxu0 %v1079
  %1138 = vmatpush.bf16.msra.mxu0 %v1075
  %1139 = vmatpush.bf16.msra.mxu0 %v1071
  %1140 = vmatpush.bf16.msra.mxu0 %v1067
  %1141 = vmatpush.bf16.msra.mxu0 %v1063
  %1142 = vmatpush.bf16.msra.mxu0 %v1059
  %1143 = vmatmul.bf16.gmra.mxu0 %v922
  %v1144 = vpop.f32.mrf.mxu0
  %v1145 = vadd.f32 0.0, %v1144
  %v1146 = vpop.f32.mrf.mxu0
  %1147 = vdwg.mxu0
  %1148 = vmatpush.bf16.msra.mxu0 %v1088
  %1149 = vmatpush.bf16.msra.mxu0 %v1084
  %1150 = vmatpush.bf16.msra.mxu0 %v1080
  %1151 = vmatpush.bf16.msra.mxu0 %v1076
  %1152 = vmatpush.bf16.msra.mxu0 %v1072
  %1153 = vmatpush.bf16.msra.mxu0 %v1068
  %1154 = vmatpush.bf16.msra.mxu0 %v1064
  %1155 = vmatpush.bf16.msra.mxu0 %v1060
  %1156 = vmatmul.bf16.gmra.mxu0 %v922
  %v1157 = vpop.f32.mrf.mxu0
  %v1158 = vadd.f32 0.0, %v1157
  %v1159 = vpop.f32.mrf.mxu0
  %1160 = vdwg.mxu0
  %1161 = vmatpush.bf16.msra.mxu0 %v1089
  %1162 = vmatpush.bf16.msra.mxu0 %v1085
  %1163 = vmatpush.bf16.msra.mxu0 %v1081
  %1164 = vmatpush.bf16.msra.mxu0 %v1077
  %1165 = vmatpush.bf16.msra.mxu0 %v1073
  %1166 = vmatpush.bf16.msra.mxu0 %v1069
  %1167 = vmatpush.bf16.msra.mxu0 %v1065
  %1168 = vmatpush.bf16.msra.mxu0 %v1061
  %1169 = vmatmul.bf16.gmra.mxu0 %v922
  %v1170 = vpop.f32.mrf.mxu0
  %v1171 = vadd.f32 0.0, %v1170
  %v1172 = vpop.f32.mrf.mxu0
  %1173 = vdwg.mxu0
  %v1174 = vadd.f32 %v926, %v1132
  %v1175 = vadd.f32 %v927, %v1145
  %v1176 = vadd.f32 %v928, %v1158
  %v1177 = vadd.f32 %v929, %v1171
  %v1178 = vmul.f32 %v1174, 0.5
  %v1179 = vtanh.pop %v1178
  %v1180 = vadd.f32 %v1179, 1.0
  %v1181 = vmul.f32 %v1180, 0.5
  %v1182 = vmul.f32 %v1175, 0.5
  %v1183 = vtanh.pop %v1182
  %v1184 = vadd.f32 %v1183, 1.0
  %v1185 = vmul.f32 %v1184, 0.5
  %v1186 = vtanh.pop %v1176
  %v1187 = vmul.f32 %v1177, 0.5
  %v1188 = vtanh.pop %v1187
  %v1189 = vadd.f32 %v1188, 1.0
  %v1190 = vmul.f32 %v1189, 0.5
  %v1191 = vmul.f32 %v1185, %v919
  %v1192 = vmul.f32 %v1181, %v1186
  %v1193 = vadd.f32 %v1191, %v1192
  %v1194 = vtanh.pop %v1193
  %v1195 = vmul.f32 %v1190, %v1194
  %v1196 = vpack.c.bf16 %v1195, %v1195
  %s1197 = scalar_lea.vmem %s2, 12
  %1198 = vst [vmem:[%s1197] sm:$0xf] %v1196
  %s1199 = scalar_lea.vmem %s0, 128
  %v1200 = vld [vmem:[%s1199] sm:$0xff]
  %v1201 = vld [vmem:[%s1199 + $0x8] sm:$0xff]
  %v1202 = vld [vmem:[%s1199 + $0x10] sm:$0xff]
  %v1203 = vld [vmem:[%s1199 + $0x18] sm:$0xff]
  %v1204 = vld [vmem:[#allocation2] sm:$0xff]
  %v1205 = vld [vmem:[#allocation2 + $0x8] sm:$0xff]
  %v1206 = vld [vmem:[#allocation2 + $0x10] sm:$0xff]
  %v1207 = vld [vmem:[#allocation2 + $0x18] sm:$0xff]
  %v1208 = vld [vmem:[#allocation2 + $0x20] sm:$0xff]
  %v1209 = vld [vmem:[#allocation2 + $0x28] sm:$0xff]
  %v1210 = vld [vmem:[#allocation2 + $0x30] sm:$0xff]
  %v1211 = vld [vmem:[#allocation2 + $0x38] sm:$0xff]
  %v1212 = vld [vmem:[#allocation2 + $0x40] sm:$0xff]
  %v1213 = vld [vmem:[#allocation2 + $0x48] sm:$0xff]
  %v1214 = vld [vmem:[#allocation2 + $0x50] sm:$0xff]
  %v1215 = vld [vmem:[#allocation2 + $0x58] sm:$0xff]
  %v1216 = vld [vmem:[#allocation2 + $0x60] sm:$0xff]
  %v1217 = vld [vmem:[#allocation2 + $0x68] sm:$0xff]
  %v1218 = vld [vmem:[#allocation2 + $0x70] sm:$0xff]
  %v1219 = vld [vmem:[#allocation2 + $0x78] sm:$0xff]
  %v1220 = vld [vmem:[#allocation2 + $0x80] sm:$0xff]
  %v1221 = vld [vmem:[#allocation2 + $0x88] sm:$0xff]
  %v1222 = vld [vmem:[#allocation2 + $0x90] sm:$0xff]
  %v1223 = vld [vmem:[#allocation2 + $0x98] sm:$0xff]
  %v1224 = vld [vmem:[#allocation2 + $0xa0] sm:$0xff]
  %v1225 = vld [vmem:[#allocation2 + $0xa8] sm:$0xff]
  %v1226 = vld [vmem:[#allocation2 + $0xb0] sm:$0xff]
  %v1227 = vld [vmem:[#allocation2 + $0xb8] sm:$0xff]
  %v1228 = vld [vmem:[#allocation2 + $0xc0] sm:$0xff]
  %v1229 = vld [vmem:[#allocation2 + $0xc8] sm:$0xff]
  %v1230 = vld [vmem:[#allocation2 + $0xd0] sm:$0xff]
  %v1231 = vld [vmem:[#allocation2 + $0xd8] sm:$0xff]
  %v1232 = vld [vmem:[#allocation2 + $0xe0] sm:$0xff]
  %v1233 = vld [vmem:[#allocation2 + $0xe8] sm:$0xff]
  %v1234 = vld [vmem:[#allocation2 + $0xf0] sm:$0xff]
  %v1235 = vld [vmem:[#allocation2 + $0xf8] sm:$0xff]
  %v1268 = vunpack.c.l.b16 %v1204
  %v1269 = vunpack.c.h.b16 %v1204
  %v1270 = vunpack.c.l.b16 %v1205
  %v1271 = vunpack.c.h.b16 %v1205
  %v1272 = vunpack.c.l.b16 %v1206
  %v1273 = vunpack.c.h.b16 %v1206
  %v1274 = vunpack.c.l.b16 %v1207
  %v1275 = vunpack.c.h.b16 %v1207
  %v1276 = vunpack.c.l.b16 %v1208
  %v1277 = vunpack.c.h.b16 %v1208
  %v1278 = vunpack.c.l.b16 %v1209
  %v1279 = vunpack.c.h.b16 %v1209
  %v1280 = vunpack.c.l.b16 %v1210
  %v1281 = vunpack.c.h.b16 %v1210
  %v1282 = vunpack.c.l.b16 %v1211
  %v1283 = vunpack.c.h.b16 %v1211
  %v1284 = vunpack.c.l.b16 %v1212
  %v1285 = vunpack.c.h.b16 %v1212
  %v1286 = vunpack.c.l.b16 %v1213
  %v1287 = vunpack.c.h.b16 %v1213
  %v1288 = vunpack.c.l.b16 %v1214
  %v1289 = vunpack.c.h.b16 %v1214
  %v1290 = vunpack.c.l.b16 %v1215
  %v1291 = vunpack.c.h.b16 %v1215
  %v1292 = vunpack.c.l.b16 %v1216
  %v1293 = vunpack.c.h.b16 %v1216
  %v1294 = vunpack.c.l.b16 %v1217
  %v1295 = vunpack.c.h.b16 %v1217
  %v1296 = vunpack.c.l.b16 %v1218
  %v1297 = vunpack.c.h.b16 %v1218
  %v1298 = vunpack.c.l.b16 %v1219
  %v1299 = vunpack.c.h.b16 %v1219
  %v1300 = vunpack.c.l.b16 %v1220
  %v1301 = vunpack.c.h.b16 %v1220
  %v1302 = vunpack.c.l.b16 %v1221
  %v1303 = vunpack.c.h.b16 %v1221
  %v1304 = vunpack.c.l.b16 %v1222
  %v1305 = vunpack.c.h.b16 %v1222
  %v1306 = vunpack.c.l.b16 %v1223
  %v1307 = vunpack.c.h.b16 %v1223
  %v1308 = vunpack.c.l.b16 %v1224
  %v1309 = vunpack.c.h.b16 %v1224
  %v1310 = vunpack.c.l.b16 %v1225
  %v1311 = vunpack.c.h.b16 %v1225
  %v1312 = vunpack.c.l.b16 %v1226
  %v1313 = vunpack.c.h.b16 %v1226
  %v1314 = vunpack.c.l.b16 %v1227
  %v1315 = vunpack.c.h.b16 %v1227
  %v1316 = vunpack.c.l.b16 %v1228
  %v1317 = vunpack.c.h.b16 %v1228
  %v1318 = vunpack.c.l.b16 %v1229
  %v1319 = vunpack.c.h.b16 %v1229
  %v1320 = vunpack.c.l.b16 %v1230
  %v1321 = vunpack.c.h.b16 %v1230
  %v1322 = vunpack.c.l.b16 %v1231
  %v1323 = vunpack.c.h.b16 %v1231
  %v1324 = vunpack.c.l.b16 %v1232
  %v1325 = vunpack.c.h.b16 %v1232
  %v1326 = vunpack.c.l.b16 %v1233
  %v1327 = vunpack.c.h.b16 %v1233
  %v1328 = vunpack.c.l.b16 %v1234
  %v1329 = vunpack.c.h.b16 %v1234
  %v1330 = vunpack.c.l.b16 %v1235
  %v1331 = vunpack.c.h.b16 %v1235
  %v1332 = vpack.c.b16 %v1272, %v1268
  %v1333 = vpack.c.b16 %v1273, %v1269
  %v1334 = vpack.c.b16 %v1274, %v1270
  %v1335 = vpack.c.b16 %v1275, %v1271
  %v1336 = vpack.c.b16 %v1280, %v1276
  %v1337 = vpack.c.b16 %v1281, %v1277
  %v1338 = vpack.c.b16 %v1282, %v1278
  %v1339 = vpack.c.b16 %v1283, %v1279
  %v1340 = vpack.c.b16 %v1288, %v1284
  %v1341 = vpack.c.b16 %v1289, %v1285
  %v1342 = vpack.c.b16 %v1290, %v1286
  %v1343 = vpack.c.b16 %v1291, %v1287
  %v1344 = vpack.c.b16 %v1296, %v1292
  %v1345 = vpack.c.b16 %v1297, %v1293
  %v1346 = vpack.c.b16 %v1298, %v1294
  %v1347 = vpack.c.b16 %v1299, %v1295
  %v1348 = vpack.c.b16 %v1304, %v1300
  %v1349 = vpack.c.b16 %v1305, %v1301
  %v1350 = vpack.c.b16 %v1306, %v1302
  %v1351 = vpack.c.b16 %v1307, %v1303
  %v1352 = vpack.c.b16 %v1312, %v1308
  %v1353 = vpack.c.b16 %v1313, %v1309
  %v1354 = vpack.c.b16 %v1314, %v1310
  %v1355 = vpack.c.b16 %v1315, %v1311
  %v1356 = vpack.c.b16 %v1320, %v1316
  %v1357 = vpack.c.b16 %v1321, %v1317
  %v1358 = vpack.c.b16 %v1322, %v1318
  %v1359 = vpack.c.b16 %v1323, %v1319
  %v1360 = vpack.c.b16 %v1328, %v1324
  %v1361 = vpack.c.b16 %v1329, %v1325
  %v1362 = vpack.c.b16 %v1330, %v1326
  %v1363 = vpack.c.b16 %v1331, %v1327
  %1396 = vmatpush.bf16.msra.mxu0 %v1360
  %1397 = vmatpush.bf16.msra.mxu0 %v1356
  %1398 = vmatpush.bf16.msra.mxu0 %v1352
  %1399 = vmatpush.bf16.msra.mxu0 %v1348
  %1400 = vmatpush.bf16.msra.mxu0 %v1344
  %1401 = vmatpush.bf16.msra.mxu0 %v1340
  %1402 = vmatpush.bf16.msra.mxu0 %v1336
  %1403 = vmatpush.bf16.msra.mxu0 %v1332
  %1404 = vmatmul.bf16.gmra.mxu0 %v1196
  %v1405 = vpop.f32.mrf.mxu0
  %v1406 = vadd.f32 0.0, %v1405
  %v1407 = vpop.f32.mrf.mxu0
  %1408 = vdwg.mxu0
  %1409 = vmatpush.bf16.msra.mxu0 %v1361
  %1410 = vmatpush.bf16.msra.mxu0 %v1357
  %1411 = vmatpush.bf16.msra.mxu0 %v1353
  %1412 = vmatpush.bf16.msra.mxu0 %v1349
  %1413 = vmatpush.bf16.msra.mxu0 %v1345
  %1414 = vmatpush.bf16.msra.mxu0 %v1341
  %1415 = vmatpush.bf16.msra.mxu0 %v1337
  %1416 = vmatpush.bf16.msra.mxu0 %v1333
  %1417 = vmatmul.bf16.gmra.mxu0 %v1196
  %v1418 = vpop.f32.mrf.mxu0
  %v1419 = vadd.f32 0.0, %v1418
  %v1420 = vpop.f32.mrf.mxu0
  %1421 = vdwg.mxu0
  %1422 = vmatpush.bf16.msra.mxu0 %v1362
  %1423 = vmatpush.bf16.msra.mxu0 %v1358
  %1424 = vmatpush.bf16.msra.mxu0 %v1354
  %1425 = vmatpush.bf16.msra.mxu0 %v1350
  %1426 = vmatpush.bf16.msra.mxu0 %v1346
  %1427 = vmatpush.bf16.msra.mxu0 %v1342
  %1428 = vmatpush.bf16.msra.mxu0 %v1338
  %1429 = vmatpush.bf16.msra.mxu0 %v1334
  %1430 = vmatmul.bf16.gmra.mxu0 %v1196
  %v1431 = vpop.f32.mrf.mxu0
  %v1432 = vadd.f32 0.0, %v1431
  %v1433 = vpop.f32.mrf.mxu0
  %1434 = vdwg.mxu0
  %1435 = vmatpush.bf16.msra.mxu0 %v1363
  %1436 = vmatpush.bf16.msra.mxu0 %v1359
  %1437 = vmatpush.bf16.msra.mxu0 %v1355
  %1438 = vmatpush.bf16.msra.mxu0 %v1351
  %1439 = vmatpush.bf16.msra.mxu0 %v1347
  %1440 = vmatpush.bf16.msra.mxu0 %v1343
  %1441 = vmatpush.bf16.msra.mxu0 %v1339
  %1442 = vmatpush.bf16.msra.mxu0 %v1335
  %1443 = vmatmul.bf16.gmra.mxu0 %v1196
  %v1444 = vpop.f32.mrf.mxu0
  %v1445 = vadd.f32 0.0, %v1444
  %v1446 = vpop.f32.mrf.mxu0
  %1447 = vdwg.mxu0
  %v1448 = vadd.f32 %v1200, %v1406
  %v1449 = vadd.f32 %v1201, %v1419
  %v1450 = vadd.f32 %v1202, %v1432
  %v1451 = vadd.f32 %v1203, %v1445
  %v1452 = vmul.f32 %v1448, 0.5
  %v1453 = vtanh.pop %v1452
  %v1454 = vadd.f32 %v1453, 1.0
  %v1455 = vmul.f32 %v1454, 0.5
  %v1456 = vmul.f32 %v1449, 0.5
  %v1457 = vtanh.pop %v1456
  %v1458 = vadd.f32 %v1457, 1.0
  %v1459 = vmul.f32 %v1458, 0.5
  %v1460 = vtanh.pop %v1450
  %v1461 = vmul.f32 %v1451, 0.5
  %v1462 = vtanh.pop %v1461
  %v1463 = vadd.f32 %v1462, 1.0
  %v1464 = vmul.f32 %v1463, 0.5
  %v1465 = vmul.f32 %v1459, %v1193
  %v1466 = vmul.f32 %v1455, %v1460
  %v1467 = vadd.f32 %v1465, %v1466
  %v1468 = vtanh.pop %v1467
  %v1469 = vmul.f32 %v1464, %v1468
  %v1470 = vpack.c.bf16 %v1469, %v1469
  %s1471 = scalar_lea.vmem %s2, 16
  %1472 = vst [vmem:[%s1471] sm:$0xf] %v1470
  %s1473 = scalar_lea.vmem %s0, 160
  %v1474 = vld [vmem:[%s1473] sm:$0xff]
  %v1475 = vld [vmem:[%s1473 + $0x8] sm:$0xff]
  %v1476 = vld [vmem:[%s1473 + $0x10] sm:$0xff]
  %v1477 = vld [vmem:[%s1473 + $0x18] sm:$0xff]
  %v1478 = vld [vmem:[#allocation2] sm:$0xff]
  %v1479 = vld [vmem:[#allocation2 + $0x8] sm:$0xff]
  %v1480 = vld [vmem:[#allocation2 + $0x10] sm:$0xff]
  %v1481 = vld [vmem:[#allocation2 + $0x18] sm:$0xff]
  %v1482 = vld [vmem:[#allocation2 + $0x20] sm:$0xff]
  %v1483 = vld [vmem:[#allocation2 + $0x28] sm:$0xff]
  %v1484 = vld [vmem:[#allocation2 + $0x30] sm:$0xff]
  %v1485 = vld [vmem:[#allocation2 + $0x38] sm:$0xff]
  %v1486 = vld [vmem:[#allocation2 + $0x40] sm:$0xff]
  %v1487 = vld [vmem:[#allocation2 + $0x48] sm:$0xff]
  %v1488 = vld [vmem:[#allocation2 + $0x50] sm:$0xff]
  %v1489 = vld [vmem:[#allocation2 + $0x58] sm:$0xff]
  %v1490 = vld [vmem:[#allocation2 + $0x60] sm:$0xff]
  %v1491 = vld [vmem:[#allocation2 + $0x68] sm:$0xff]
  %v1492 = vld [vmem:[#allocation2 + $0x70] sm:$0xff]
  %v1493 = vld [vmem:[#allocation2 + $0x78] sm:$0xff]
  %v1494 = vld [vmem:[#allocation2 + $0x80] sm:$0xff]
  %v1495 = vld [vmem:[#allocation2 + $0x88] sm:$0xff]
  %v1496 = vld [vmem:[#allocation2 + $0x90] sm:$0xff]
  %v1497 = vld [vmem:[#allocation2 + $0x98] sm:$0xff]
  %v1498 = vld [vmem:[#allocation2 + $0xa0] sm:$0xff]
  %v1499 = vld [vmem:[#allocation2 + $0xa8] sm:$0xff]
  %v1500 = vld [vmem:[#allocation2 + $0xb0] sm:$0xff]
  %v1501 = vld [vmem:[#allocation2 + $0xb8] sm:$0xff]
  %v1502 = vld [vmem:[#allocation2 + $0xc0] sm:$0xff]
  %v1503 = vld [vmem:[#allocation2 + $0xc8] sm:$0xff]
  %v1504 = vld [vmem:[#allocation2 + $0xd0] sm:$0xff]
  %v1505 = vld [vmem:[#allocation2 + $0xd8] sm:$0xff]
  %v1506 = vld [vmem:[#allocation2 + $0xe0] sm:$0xff]
  %v1507 = vld [vmem:[#allocation2 + $0xe8] sm:$0xff]
  %v1508 = vld [vmem:[#allocation2 + $0xf0] sm:$0xff]
  %v1509 = vld [vmem:[#allocation2 + $0xf8] sm:$0xff]
  %v1542 = vunpack.c.l.b16 %v1478
  %v1543 = vunpack.c.h.b16 %v1478
  %v1544 = vunpack.c.l.b16 %v1479
  %v1545 = vunpack.c.h.b16 %v1479
  %v1546 = vunpack.c.l.b16 %v1480
  %v1547 = vunpack.c.h.b16 %v1480
  %v1548 = vunpack.c.l.b16 %v1481
  %v1549 = vunpack.c.h.b16 %v1481
  %v1550 = vunpack.c.l.b16 %v1482
  %v1551 = vunpack.c.h.b16 %v1482
  %v1552 = vunpack.c.l.b16 %v1483
  %v1553 = vunpack.c.h.b16 %v1483
  %v1554 = vunpack.c.l.b16 %v1484
  %v1555 = vunpack.c.h.b16 %v1484
  %v1556 = vunpack.c.l.b16 %v1485
  %v1557 = vunpack.c.h.b16 %v1485
  %v1558 = vunpack.c.l.b16 %v1486
  %v1559 = vunpack.c.h.b16 %v1486
  %v1560 = vunpack.c.l.b16 %v1487
  %v1561 = vunpack.c.h.b16 %v1487
  %v1562 = vunpack.c.l.b16 %v1488
  %v1563 = vunpack.c.h.b16 %v1488
  %v1564 = vunpack.c.l.b16 %v1489
  %v1565 = vunpack.c.h.b16 %v1489
  %v1566 = vunpack.c.l.b16 %v1490
  %v1567 = vunpack.c.h.b16 %v1490
  %v1568 = vunpack.c.l.b16 %v1491
  %v1569 = vunpack.c.h.b16 %v1491
  %v1570 = vunpack.c.l.b16 %v1492
  %v1571 = vunpack.c.h.b16 %v1492
  %v1572 = vunpack.c.l.b16 %v1493
  %v1573 = vunpack.c.h.b16 %v1493
  %v1574 = vunpack.c.l.b16 %v1494
  %v1575 = vunpack.c.h.b16 %v1494
  %v1576 = vunpack.c.l.b16 %v1495
  %v1577 = vunpack.c.h.b16 %v1495
  %v1578 = vunpack.c.l.b16 %v1496
  %v1579 = vunpack.c.h.b16 %v1496
  %v1580 = vunpack.c.l.b16 %v1497
  %v1581 = vunpack.c.h.b16 %v1497
  %v1582 = vunpack.c.l.b16 %v1498
  %v1583 = vunpack.c.h.b16 %v1498
  %v1584 = vunpack.c.l.b16 %v1499
  %v1585 = vunpack.c.h.b16 %v1499
  %v1586 = vunpack.c.l.b16 %v1500
  %v1587 = vunpack.c.h.b16 %v1500
  %v1588 = vunpack.c.l.b16 %v1501
  %v1589 = vunpack.c.h.b16 %v1501
  %v1590 = vunpack.c.l.b16 %v1502
  %v1591 = vunpack.c.h.b16 %v1502
  %v1592 = vunpack.c.l.b16 %v1503
  %v1593 = vunpack.c.h.b16 %v1503
  %v1594 = vunpack.c.l.b16 %v1504
  %v1595 = vunpack.c.h.b16 %v1504
  %v1596 = vunpack.c.l.b16 %v1505
  %v1597 = vunpack.c.h.b16 %v1505
  %v1598 = vunpack.c.l.b16 %v1506
  %v1599 = vunpack.c.h.b16 %v1506
  %v1600 = vunpack.c.l.b16 %v1507
  %v1601 = vunpack.c.h.b16 %v1507
  %v1602 = vunpack.c.l.b16 %v1508
  %v1603 = vunpack.c.h.b16 %v1508
  %v1604 = vunpack.c.l.b16 %v1509
  %v1605 = vunpack.c.h.b16 %v1509
  %v1606 = vpack.c.b16 %v1546, %v1542
  %v1607 = vpack.c.b16 %v1547, %v1543
  %v1608 = vpack.c.b16 %v1548, %v1544
  %v1609 = vpack.c.b16 %v1549, %v1545
  %v1610 = vpack.c.b16 %v1554, %v1550
  %v1611 = vpack.c.b16 %v1555, %v1551
  %v1612 = vpack.c.b16 %v1556, %v1552
  %v1613 = vpack.c.b16 %v1557, %v1553
  %v1614 = vpack.c.b16 %v1562, %v1558
  %v1615 = vpack.c.b16 %v1563, %v1559
  %v1616 = vpack.c.b16 %v1564, %v1560
  %v1617 = vpack.c.b16 %v1565, %v1561
  %v1618 = vpack.c.b16 %v1570, %v1566
  %v1619 = vpack.c.b16 %v1571, %v1567
  %v1620 = vpack.c.b16 %v1572, %v1568
  %v1621 = vpack.c.b16 %v1573, %v1569
  %v1622 = vpack.c.b16 %v1578, %v1574
  %v1623 = vpack.c.b16 %v1579, %v1575
  %v1624 = vpack.c.b16 %v1580, %v1576
  %v1625 = vpack.c.b16 %v1581, %v1577
  %v1626 = vpack.c.b16 %v1586, %v1582
  %v1627 = vpack.c.b16 %v1587, %v1583
  %v1628 = vpack.c.b16 %v1588, %v1584
  %v1629 = vpack.c.b16 %v1589, %v1585
  %v1630 = vpack.c.b16 %v1594, %v1590
  %v1631 = vpack.c.b16 %v1595, %v1591
  %v1632 = vpack.c.b16 %v1596, %v1592
  %v1633 = vpack.c.b16 %v1597, %v1593
  %v1634 = vpack.c.b16 %v1602, %v1598
  %v1635 = vpack.c.b16 %v1603, %v1599
  %v1636 = vpack.c.b16 %v1604, %v1600
  %v1637 = vpack.c.b16 %v1605, %v1601
  %1670 = vmatpush.bf16.msra.mxu0 %v1634
  %1671 = vmatpush.bf16.msra.mxu0 %v1630
  %1672 = vmatpush.bf16.msra.mxu0 %v1626
  %1673 = vmatpush.bf16.msra.mxu0 %v1622
  %1674 = vmatpush.bf16.msra.mxu0 %v1618
  %1675 = vmatpush.bf16.msra.mxu0 %v1614
  %1676 = vmatpush.bf16.msra.mxu0 %v1610
  %1677 = vmatpush.bf16.msra.mxu0 %v1606
  %1678 = vmatmul.bf16.gmra.mxu0 %v1470
  %v1679 = vpop.f32.mrf.mxu0
  %v1680 = vadd.f32 0.0, %v1679
  %v1681 = vpop.f32.mrf.mxu0
  %1682 = vdwg.mxu0
  %1683 = vmatpush.bf16.msra.mxu0 %v1635
  %1684 = vmatpush.bf16.msra.mxu0 %v1631
  %1685 = vmatpush.bf16.msra.mxu0 %v1627
  %1686 = vmatpush.bf16.msra.mxu0 %v1623
  %1687 = vmatpush.bf16.msra.mxu0 %v1619
  %1688 = vmatpush.bf16.msra.mxu0 %v1615
  %1689 = vmatpush.bf16.msra.mxu0 %v1611
  %1690 = vmatpush.bf16.msra.mxu0 %v1607
  %1691 = vmatmul.bf16.gmra.mxu0 %v1470
  %v1692 = vpop.f32.mrf.mxu0
  %v1693 = vadd.f32 0.0, %v1692
  %v1694 = vpop.f32.mrf.mxu0
  %1695 = vdwg.mxu0
  %1696 = vmatpush.bf16.msra.mxu0 %v1636
  %1697 = vmatpush.bf16.msra.mxu0 %v1632
  %1698 = vmatpush.bf16.msra.mxu0 %v1628
  %1699 = vmatpush.bf16.msra.mxu0 %v1624
  %1700 = vmatpush.bf16.msra.mxu0 %v1620
  %1701 = vmatpush.bf16.msra.mxu0 %v1616
  %1702 = vmatpush.bf16.msra.mxu0 %v1612
  %1703 = vmatpush.bf16.msra.mxu0 %v1608
  %1704 = vmatmul.bf16.gmra.mxu0 %v1470
  %v1705 = vpop.f32.mrf.mxu0
  %v1706 = vadd.f32 0.0, %v1705
  %v1707 = vpop.f32.mrf.mxu0
  %1708 = vdwg.mxu0
  %1709 = vmatpush.bf16.msra.mxu0 %v1637
  %1710 = vmatpush.bf16.msra.mxu0 %v1633
  %1711 = vmatpush.bf16.msra.mxu0 %v1629
  %1712 = vmatpush.bf16.msra.mxu0 %v1625
  %1713 = vmatpush.bf16.msra.mxu0 %v1621
  %1714 = vmatpush.bf16.msra.mxu0 %v1617
  %1715 = vmatpush.bf16.msra.mxu0 %v1613
  %1716 = vmatpush.bf16.msra.mxu0 %v1609
  %1717 = vmatmul.bf16.gmra.mxu0 %v1470
  %v1718 = vpop.f32.mrf.mxu0
  %v1719 = vadd.f32 0.0, %v1718
  %v1720 = vpop.f32.mrf.mxu0
  %1721 = vdwg.mxu0
  %v1722 = vadd.f32 %v1474, %v1680
  %v1723 = vadd.f32 %v1475, %v1693
  %v1724 = vadd.f32 %v1476, %v1706
  %v1725 = vadd.f32 %v1477, %v1719
  %v1726 = vmul.f32 %v1722, 0.5
  %v1727 = vtanh.pop %v1726
  %v1728 = vadd.f32 %v1727, 1.0
  %v1729 = vmul.f32 %v1728, 0.5
  %v1730 = vmul.f32 %v1723, 0.5
  %v1731 = vtanh.pop %v1730
  %v1732 = vadd.f32 %v1731, 1.0
  %v1733 = vmul.f32 %v1732, 0.5
  %v1734 = vtanh.pop %v1724
  %v1735 = vmul.f32 %v1725, 0.5
  %v1736 = vtanh.pop %v1735
  %v1737 = vadd.f32 %v1736, 1.0
  %v1738 = vmul.f32 %v1737, 0.5
  %v1739 = vmul.f32 %v1733, %v1467
  %v1740 = vmul.f32 %v1729, %v1734
  %v1741 = vadd.f32 %v1739, %v1740
  %v1742 = vtanh.pop %v1741
  %v1743 = vmul.f32 %v1738, %v1742
  %v1744 = vpack.c.bf16 %v1743, %v1743
  %s1745 = scalar_lea.vmem %s2, 20
  %1746 = vst [vmem:[%s1745] sm:$0xf] %v1744
  %s1747 = scalar_lea.vmem %s0, 192
  %v1748 = vld [vmem:[%s1747] sm:$0xff]
  %v1749 = vld [vmem:[%s1747 + $0x8] sm:$0xff]
  %v1750 = vld [vmem:[%s1747 + $0x10] sm:$0xff]
  %v1751 = vld [vmem:[%s1747 + $0x18] sm:$0xff]
  %v1752 = vld [vmem:[#allocation2] sm:$0xff]
  %v1753 = vld [vmem:[#allocation2 + $0x8] sm:$0xff]
  %v1754 = vld [vmem:[#allocation2 + $0x10] sm:$0xff]
  %v1755 = vld [vmem:[#allocation2 + $0x18] sm:$0xff]
  %v1756 = vld [vmem:[#allocation2 + $0x20] sm:$0xff]
  %v1757 = vld [vmem:[#allocation2 + $0x28] sm:$0xff]
  %v1758 = vld [vmem:[#allocation2 + $0x30] sm:$0xff]
  %v1759 = vld [vmem:[#allocation2 + $0x38] sm:$0xff]
  %v1760 = vld [vmem:[#allocation2 + $0x40] sm:$0xff]
  %v1761 = vld [vmem:[#allocation2 + $0x48] sm:$0xff]
  %v1762 = vld [vmem:[#allocation2 + $0x50] sm:$0xff]
  %v1763 = vld [vmem:[#allocation2 + $0x58] sm:$0xff]
  %v1764 = vld [vmem:[#allocation2 + $0x60] sm:$0xff]
  %v1765 = vld [vmem:[#allocation2 + $0x68] sm:$0xff]
  %v1766 = vld [vmem:[#allocation2 + $0x70] sm:$0xff]
  %v1767 = vld [vmem:[#allocation2 + $0x78] sm:$0xff]
  %v1768 = vld [vmem:[#allocation2 + $0x80] sm:$0xff]
  %v1769 = vld [vmem:[#allocation2 + $0x88] sm:$0xff]
  %v1770 = vld [vmem:[#allocation2 + $0x90] sm:$0xff]
  %v1771 = vld [vmem:[#allocation2 + $0x98] sm:$0xff]
  %v1772 = vld [vmem:[#allocation2 + $0xa0] sm:$0xff]
  %v1773 = vld [vmem:[#allocation2 + $0xa8] sm:$0xff]
  %v1774 = vld [vmem:[#allocation2 + $0xb0] sm:$0xff]
  %v1775 = vld [vmem:[#allocation2 + $0xb8] sm:$0xff]
  %v1776 = vld [vmem:[#allocation2 + $0xc0] sm:$0xff]
  %v1777 = vld [vmem:[#allocation2 + $0xc8] sm:$0xff]
  %v1778 = vld [vmem:[#allocation2 + $0xd0] sm:$0xff]
  %v1779 = vld [vmem:[#allocation2 + $0xd8] sm:$0xff]
  %v1780 = vld [vmem:[#allocation2 + $0xe0] sm:$0xff]
  %v1781 = vld [vmem:[#allocation2 + $0xe8] sm:$0xff]
  %v1782 = vld [vmem:[#allocation2 + $0xf0] sm:$0xff]
  %v1783 = vld [vmem:[#allocation2 + $0xf8] sm:$0xff]
  %v1816 = vunpack.c.l.b16 %v1752
  %v1817 = vunpack.c.h.b16 %v1752
  %v1818 = vunpack.c.l.b16 %v1753
  %v1819 = vunpack.c.h.b16 %v1753
  %v1820 = vunpack.c.l.b16 %v1754
  %v1821 = vunpack.c.h.b16 %v1754
  %v1822 = vunpack.c.l.b16 %v1755
  %v1823 = vunpack.c.h.b16 %v1755
  %v1824 = vunpack.c.l.b16 %v1756
  %v1825 = vunpack.c.h.b16 %v1756
  %v1826 = vunpack.c.l.b16 %v1757
  %v1827 = vunpack.c.h.b16 %v1757
  %v1828 = vunpack.c.l.b16 %v1758
  %v1829 = vunpack.c.h.b16 %v1758
  %v1830 = vunpack.c.l.b16 %v1759
  %v1831 = vunpack.c.h.b16 %v1759
  %v1832 = vunpack.c.l.b16 %v1760
  %v1833 = vunpack.c.h.b16 %v1760
  %v1834 = vunpack.c.l.b16 %v1761
  %v1835 = vunpack.c.h.b16 %v1761
  %v1836 = vunpack.c.l.b16 %v1762
  %v1837 = vunpack.c.h.b16 %v1762
  %v1838 = vunpack.c.l.b16 %v1763
  %v1839 = vunpack.c.h.b16 %v1763
  %v1840 = vunpack.c.l.b16 %v1764
  %v1841 = vunpack.c.h.b16 %v1764
  %v1842 = vunpack.c.l.b16 %v1765
  %v1843 = vunpack.c.h.b16 %v1765
  %v1844 = vunpack.c.l.b16 %v1766
  %v1845 = vunpack.c.h.b16 %v1766
  %v1846 = vunpack.c.l.b16 %v1767
  %v1847 = vunpack.c.h.b16 %v1767
  %v1848 = vunpack.c.l.b16 %v1768
  %v1849 = vunpack.c.h.b16 %v1768
  %v1850 = vunpack.c.l.b16 %v1769
  %v1851 = vunpack.c.h.b16 %v1769
  %v1852 = vunpack.c.l.b16 %v1770
  %v1853 = vunpack.c.h.b16 %v1770
  %v1854 = vunpack.c.l.b16 %v1771
  %v1855 = vunpack.c.h.b16 %v1771
  %v1856 = vunpack.c.l.b16 %v1772
  %v1857 = vunpack.c.h.b16 %v1772
  %v1858 = vunpack.c.l.b16 %v1773
  %v1859 = vunpack.c.h.b16 %v1773
  %v1860 = vunpack.c.l.b16 %v1774
  %v1861 = vunpack.c.h.b16 %v1774
  %v1862 = vunpack.c.l.b16 %v1775
  %v1863 = vunpack.c.h.b16 %v1775
  %v1864 = vunpack.c.l.b16 %v1776
  %v1865 = vunpack.c.h.b16 %v1776
  %v1866 = vunpack.c.l.b16 %v1777
  %v1867 = vunpack.c.h.b16 %v1777
  %v1868 = vunpack.c.l.b16 %v1778
  %v1869 = vunpack.c.h.b16 %v1778
  %v1870 = vunpack.c.l.b16 %v1779
  %v1871 = vunpack.c.h.b16 %v1779
  %v1872 = vunpack.c.l.b16 %v1780
  %v1873 = vunpack.c.h.b16 %v1780
  %v1874 = vunpack.c.l.b16 %v1781
  %v1875 = vunpack.c.h.b16 %v1781
  %v1876 = vunpack.c.l.b16 %v1782
  %v1877 = vunpack.c.h.b16 %v1782
  %v1878 = vunpack.c.l.b16 %v1783
  %v1879 = vunpack.c.h.b16 %v1783
  %v1880 = vpack.c.b16 %v1820, %v1816
  %v1881 = vpack.c.b16 %v1821, %v1817
  %v1882 = vpack.c.b16 %v1822, %v1818
  %v1883 = vpack.c.b16 %v1823, %v1819
  %v1884 = vpack.c.b16 %v1828, %v1824
  %v1885 = vpack.c.b16 %v1829, %v1825
  %v1886 = vpack.c.b16 %v1830, %v1826
  %v1887 = vpack.c.b16 %v1831, %v1827
  %v1888 = vpack.c.b16 %v1836, %v1832
  %v1889 = vpack.c.b16 %v1837, %v1833
  %v1890 = vpack.c.b16 %v1838, %v1834
  %v1891 = vpack.c.b16 %v1839, %v1835
  %v1892 = vpack.c.b16 %v1844, %v1840
  %v1893 = vpack.c.b16 %v1845, %v1841
  %v1894 = vpack.c.b16 %v1846, %v1842
  %v1895 = vpack.c.b16 %v1847, %v1843
  %v1896 = vpack.c.b16 %v1852, %v1848
  %v1897 = vpack.c.b16 %v1853, %v1849
  %v1898 = vpack.c.b16 %v1854, %v1850
  %v1899 = vpack.c.b16 %v1855, %v1851
  %v1900 = vpack.c.b16 %v1860, %v1856
  %v1901 = vpack.c.b16 %v1861, %v1857
  %v1902 = vpack.c.b16 %v1862, %v1858
  %v1903 = vpack.c.b16 %v1863, %v1859
  %v1904 = vpack.c.b16 %v1868, %v1864
  %v1905 = vpack.c.b16 %v1869, %v1865
  %v1906 = vpack.c.b16 %v1870, %v1866
  %v1907 = vpack.c.b16 %v1871, %v1867
  %v1908 = vpack.c.b16 %v1876, %v1872
  %v1909 = vpack.c.b16 %v1877, %v1873
  %v1910 = vpack.c.b16 %v1878, %v1874
  %v1911 = vpack.c.b16 %v1879, %v1875
  %1944 = vmatpush.bf16.msra.mxu0 %v1908
  %1945 = vmatpush.bf16.msra.mxu0 %v1904
  %1946 = vmatpush.bf16.msra.mxu0 %v1900
  %1947 = vmatpush.bf16.msra.mxu0 %v1896
  %1948 = vmatpush.bf16.msra.mxu0 %v1892
  %1949 = vmatpush.bf16.msra.mxu0 %v1888
  %1950 = vmatpush.bf16.msra.mxu0 %v1884
  %1951 = vmatpush.bf16.msra.mxu0 %v1880
  %1952 = vmatmul.bf16.gmra.mxu0 %v1744
  %v1953 = vpop.f32.mrf.mxu0
  %v1954 = vadd.f32 0.0, %v1953
  %v1955 = vpop.f32.mrf.mxu0
  %1956 = vdwg.mxu0
  %1957 = vmatpush.bf16.msra.mxu0 %v1909
  %1958 = vmatpush.bf16.msra.mxu0 %v1905
  %1959 = vmatpush.bf16.msra.mxu0 %v1901
  %1960 = vmatpush.bf16.msra.mxu0 %v1897
  %1961 = vmatpush.bf16.msra.mxu0 %v1893
  %1962 = vmatpush.bf16.msra.mxu0 %v1889
  %1963 = vmatpush.bf16.msra.mxu0 %v1885
  %1964 = vmatpush.bf16.msra.mxu0 %v1881
  %1965 = vmatmul.bf16.gmra.mxu0 %v1744
  %v1966 = vpop.f32.mrf.mxu0
  %v1967 = vadd.f32 0.0, %v1966
  %v1968 = vpop.f32.mrf.mxu0
  %1969 = vdwg.mxu0
  %1970 = vmatpush.bf16.msra.mxu0 %v1910
  %1971 = vmatpush.bf16.msra.mxu0 %v1906
  %1972 = vmatpush.bf16.msra.mxu0 %v1902
  %1973 = vmatpush.bf16.msra.mxu0 %v1898
  %1974 = vmatpush.bf16.msra.mxu0 %v1894
  %1975 = vmatpush.bf16.msra.mxu0 %v1890
  %1976 = vmatpush.bf16.msra.mxu0 %v1886
  %1977 = vmatpush.bf16.msra.mxu0 %v1882
  %1978 = vmatmul.bf16.gmra.mxu0 %v1744
  %v1979 = vpop.f32.mrf.mxu0
  %v1980 = vadd.f32 0.0, %v1979
  %v1981 = vpop.f32.mrf.mxu0
  %1982 = vdwg.mxu0
  %1983 = vmatpush.bf16.msra.mxu0 %v1911
  %1984 = vmatpush.bf16.msra.mxu0 %v1907
  %1985 = vmatpush.bf16.msra.mxu0 %v1903
  %1986 = vmatpush.bf16.msra.mxu0 %v1899
  %1987 = vmatpush.bf16.msra.mxu0 %v1895
  %1988 = vmatpush.bf16.msra.mxu0 %v1891
  %1989 = vmatpush.bf16.msra.mxu0 %v1887
  %1990 = vmatpush.bf16.msra.mxu0 %v1883
  %1991 = vmatmul.bf16.gmra.mxu0 %v1744
  %v1992 = vpop.f32.mrf.mxu0
  %v1993 = vadd.f32 0.0, %v1992
  %v1994 = vpop.f32.mrf.mxu0
  %1995 = vdwg.mxu0
  %v1996 = vadd.f32 %v1748, %v1954
  %v1997 = vadd.f32 %v1749, %v1967
  %v1998 = vadd.f32 %v1750, %v1980
  %v1999 = vadd.f32 %v1751, %v1993
  %v2000 = vmul.f32 %v1996, 0.5
  %v2001 = vtanh.pop %v2000
  %v2002 = vadd.f32 %v2001, 1.0
  %v2003 = vmul.f32 %v2002, 0.5
  %v2004 = vmul.f32 %v1997, 0.5
  %v2005 = vtanh.pop %v2004
  %v2006 = vadd.f32 %v2005, 1.0
  %v2007 = vmul.f32 %v2006, 0.5
  %v2008 = vtanh.pop %v1998
  %v2009 = vmul.f32 %v1999, 0.5
  %v2010 = vtanh.pop %v2009
  %v2011 = vadd.f32 %v2010, 1.0
  %v2012 = vmul.f32 %v2011, 0.5
  %v2013 = vmul.f32 %v2007, %v1741
  %v2014 = vmul.f32 %v2003, %v2008
  %v2015 = vadd.f32 %v2013, %v2014
  %v2016 = vtanh.pop %v2015
  %v2017 = vmul.f32 %v2012, %v2016
  %v2018 = vpack.c.bf16 %v2017, %v2017
  %s2019 = scalar_lea.vmem %s2, 24
  %2020 = vst [vmem:[%s2019] sm:$0xf] %v2018
  %s2021 = scalar_lea.vmem %s0, 224
  %v2022 = vld [vmem:[%s2021] sm:$0xff]
  %v2023 = vld [vmem:[%s2021 + $0x8] sm:$0xff]
  %v2024 = vld [vmem:[%s2021 + $0x10] sm:$0xff]
  %v2025 = vld [vmem:[%s2021 + $0x18] sm:$0xff]
  %v2026 = vld [vmem:[#allocation2] sm:$0xff]
  %v2027 = vld [vmem:[#allocation2 + $0x8] sm:$0xff]
  %v2028 = vld [vmem:[#allocation2 + $0x10] sm:$0xff]
  %v2029 = vld [vmem:[#allocation2 + $0x18] sm:$0xff]
  %v2030 = vld [vmem:[#allocation2 + $0x20] sm:$0xff]
  %v2031 = vld [vmem:[#allocation2 + $0x28] sm:$0xff]
  %v2032 = vld [vmem:[#allocation2 + $0x30] sm:$0xff]
  %v2033 = vld [vmem:[#allocation2 + $0x38] sm:$0xff]
  %v2034 = vld [vmem:[#allocation2 + $0x40] sm:$0xff]
  %v2035 = vld [vmem:[#allocation2 + $0x48] sm:$0xff]
  %v2036 = vld [vmem:[#allocation2 + $0x50] sm:$0xff]
  %v2037 = vld [vmem:[#allocation2 + $0x58] sm:$0xff]
  %v2038 = vld [vmem:[#allocation2 + $0x60] sm:$0xff]
  %v2039 = vld [vmem:[#allocation2 + $0x68] sm:$0xff]
  %v2040 = vld [vmem:[#allocation2 + $0x70] sm:$0xff]
  %v2041 = vld [vmem:[#allocation2 + $0x78] sm:$0xff]
  %v2042 = vld [vmem:[#allocation2 + $0x80] sm:$0xff]
  %v2043 = vld [vmem:[#allocation2 + $0x88] sm:$0xff]
  %v2044 = vld [vmem:[#allocation2 + $0x90] sm:$0xff]
  %v2045 = vld [vmem:[#allocation2 + $0x98] sm:$0xff]
  %v2046 = vld [vmem:[#allocation2 + $0xa0] sm:$0xff]
  %v2047 = vld [vmem:[#allocation2 + $0xa8] sm:$0xff]
  %v2048 = vld [vmem:[#allocation2 + $0xb0] sm:$0xff]
  %v2049 = vld [vmem:[#allocation2 + $0xb8] sm:$0xff]
  %v2050 = vld [vmem:[#allocation2 + $0xc0] sm:$0xff]
  %v2051 = vld [vmem:[#allocation2 + $0xc8] sm:$0xff]
  %v2052 = vld [vmem:[#allocation2 + $0xd0] sm:$0xff]
  %v2053 = vld [vmem:[#allocation2 + $0xd8] sm:$0xff]
  %v2054 = vld [vmem:[#allocation2 + $0xe0] sm:$0xff]
  %v2055 = vld [vmem:[#allocation2 + $0xe8] sm:$0xff]
  %v2056 = vld [vmem:[#allocation2 + $0xf0] sm:$0xff]
  %v2057 = vld [vmem:[#allocation2 + $0xf8] sm:$0xff]
  %v2090 = vunpack.c.l.b16 %v2026
  %v2091 = vunpack.c.h.b16 %v2026
  %v2092 = vunpack.c.l.b16 %v2027
  %v2093 = vunpack.c.h.b16 %v2027
  %v2094 = vunpack.c.l.b16 %v2028
  %v2095 = vunpack.c.h.b16 %v2028
  %v2096 = vunpack.c.l.b16 %v2029
  %v2097 = vunpack.c.h.b16 %v2029
  %v2098 = vunpack.c.l.b16 %v2030
  %v2099 = vunpack.c.h.b16 %v2030
  %v2100 = vunpack.c.l.b16 %v2031
  %v2101 = vunpack.c.h.b16 %v2031
  %v2102 = vunpack.c.l.b16 %v2032
  %v2103 = vunpack.c.h.b16 %v2032
  %v2104 = vunpack.c.l.b16 %v2033
  %v2105 = vunpack.c.h.b16 %v2033
  %v2106 = vunpack.c.l.b16 %v2034
  %v2107 = vunpack.c.h.b16 %v2034
  %v2108 = vunpack.c.l.b16 %v2035
  %v2109 = vunpack.c.h.b16 %v2035
  %v2110 = vunpack.c.l.b16 %v2036
  %v2111 = vunpack.c.h.b16 %v2036
  %v2112 = vunpack.c.l.b16 %v2037
  %v2113 = vunpack.c.h.b16 %v2037
  %v2114 = vunpack.c.l.b16 %v2038
  %v2115 = vunpack.c.h.b16 %v2038
  %v2116 = vunpack.c.l.b16 %v2039
  %v2117 = vunpack.c.h.b16 %v2039
  %v2118 = vunpack.c.l.b16 %v2040
  %v2119 = vunpack.c.h.b16 %v2040
  %v2120 = vunpack.c.l.b16 %v2041
  %v2121 = vunpack.c.h.b16 %v2041
  %v2122 = vunpack.c.l.b16 %v2042
  %v2123 = vunpack.c.h.b16 %v2042
  %v2124 = vunpack.c.l.b16 %v2043
  %v2125 = vunpack.c.h.b16 %v2043
  %v2126 = vunpack.c.l.b16 %v2044
  %v2127 = vunpack.c.h.b16 %v2044
  %v2128 = vunpack.c.l.b16 %v2045
  %v2129 = vunpack.c.h.b16 %v2045
  %v2130 = vunpack.c.l.b16 %v2046
  %v2131 = vunpack.c.h.b16 %v2046
  %v2132 = vunpack.c.l.b16 %v2047
  %v2133 = vunpack.c.h.b16 %v2047
  %v2134 = vunpack.c.l.b16 %v2048
  %v2135 = vunpack.c.h.b16 %v2048
  %v2136 = vunpack.c.l.b16 %v2049
  %v2137 = vunpack.c.h.b16 %v2049
  %v2138 = vunpack.c.l.b16 %v2050
  %v2139 = vunpack.c.h.b16 %v2050
  %v2140 = vunpack.c.l.b16 %v2051
  %v2141 = vunpack.c.h.b16 %v2051
  %v2142 = vunpack.c.l.b16 %v2052
  %v2143 = vunpack.c.h.b16 %v2052
  %v2144 = vunpack.c.l.b16 %v2053
  %v2145 = vunpack.c.h.b16 %v2053
  %v2146 = vunpack.c.l.b16 %v2054
  %v2147 = vunpack.c.h.b16 %v2054
  %v2148 = vunpack.c.l.b16 %v2055
  %v2149 = vunpack.c.h.b16 %v2055
  %v2150 = vunpack.c.l.b16 %v2056
  %v2151 = vunpack.c.h.b16 %v2056
  %v2152 = vunpack.c.l.b16 %v2057
  %v2153 = vunpack.c.h.b16 %v2057
  %v2154 = vpack.c.b16 %v2094, %v2090
  %v2155 = vpack.c.b16 %v2095, %v2091
  %v2156 = vpack.c.b16 %v2096, %v2092
  %v2157 = vpack.c.b16 %v2097, %v2093
  %v2158 = vpack.c.b16 %v2102, %v2098
  %v2159 = vpack.c.b16 %v2103, %v2099
  %v2160 = vpack.c.b16 %v2104, %v2100
  %v2161 = vpack.c.b16 %v2105, %v2101
  %v2162 = vpack.c.b16 %v2110, %v2106
  %v2163 = vpack.c.b16 %v2111, %v2107
  %v2164 = vpack.c.b16 %v2112, %v2108
  %v2165 = vpack.c.b16 %v2113, %v2109
  %v2166 = vpack.c.b16 %v2118, %v2114
  %v2167 = vpack.c.b16 %v2119, %v2115
  %v2168 = vpack.c.b16 %v2120, %v2116
  %v2169 = vpack.c.b16 %v2121, %v2117
  %v2170 = vpack.c.b16 %v2126, %v2122
  %v2171 = vpack.c.b16 %v2127, %v2123
  %v2172 = vpack.c.b16 %v2128, %v2124
  %v2173 = vpack.c.b16 %v2129, %v2125
  %v2174 = vpack.c.b16 %v2134, %v2130
  %v2175 = vpack.c.b16 %v2135, %v2131
  %v2176 = vpack.c.b16 %v2136, %v2132
  %v2177 = vpack.c.b16 %v2137, %v2133
  %v2178 = vpack.c.b16 %v2142, %v2138
  %v2179 = vpack.c.b16 %v2143, %v2139
  %v2180 = vpack.c.b16 %v2144, %v2140
  %v2181 = vpack.c.b16 %v2145, %v2141
  %v2182 = vpack.c.b16 %v2150, %v2146
  %v2183 = vpack.c.b16 %v2151, %v2147
  %v2184 = vpack.c.b16 %v2152, %v2148
  %v2185 = vpack.c.b16 %v2153, %v2149
  %2218 = vmatpush.bf16.msra.mxu0 %v2182
  %2219 = vmatpush.bf16.msra.mxu0 %v2178
  %2220 = vmatpush.bf16.msra.mxu0 %v2174
  %2221 = vmatpush.bf16.msra.mxu0 %v2170
  %2222 = vmatpush.bf16.msra.mxu0 %v2166
  %2223 = vmatpush.bf16.msra.mxu0 %v2162
  %2224 = vmatpush.bf16.msra.mxu0 %v2158
  %2225 = vmatpush.bf16.msra.mxu0 %v2154
  %2226 = vmatmul.bf16.gmra.mxu0 %v2018
  %v2227 = vpop.f32.mrf.mxu0
  %v2228 = vadd.f32 0.0, %v2227
  %v2229 = vpop.f32.mrf.mxu0
  %2230 = vdwg.mxu0
  %2231 = vmatpush.bf16.msra.mxu0 %v2183
  %2232 = vmatpush.bf16.msra.mxu0 %v2179
  %2233 = vmatpush.bf16.msra.mxu0 %v2175
  %2234 = vmatpush.bf16.msra.mxu0 %v2171
  %2235 = vmatpush.bf16.msra.mxu0 %v2167
  %2236 = vmatpush.bf16.msra.mxu0 %v2163
  %2237 = vmatpush.bf16.msra.mxu0 %v2159
  %2238 = vmatpush.bf16.msra.mxu0 %v2155
  %2239 = vmatmul.bf16.gmra.mxu0 %v2018
  %v2240 = vpop.f32.mrf.mxu0
  %v2241 = vadd.f32 0.0, %v2240
  %v2242 = vpop.f32.mrf.mxu0
  %2243 = vdwg.mxu0
  %2244 = vmatpush.bf16.msra.mxu0 %v2184
  %2245 = vmatpush.bf16.msra.mxu0 %v2180
  %2246 = vmatpush.bf16.msra.mxu0 %v2176
  %2247 = vmatpush.bf16.msra.mxu0 %v2172
  %2248 = vmatpush.bf16.msra.mxu0 %v2168
  %2249 = vmatpush.bf16.msra.mxu0 %v2164
  %2250 = vmatpush.bf16.msra.mxu0 %v2160
  %2251 = vmatpush.bf16.msra.mxu0 %v2156
  %2252 = vmatmul.bf16.gmra.mxu0 %v2018
  %v2253 = vpop.f32.mrf.mxu0
  %v2254 = vadd.f32 0.0, %v2253
  %v2255 = vpop.f32.mrf.mxu0
  %2256 = vdwg.mxu0
  %2257 = vmatpush.bf16.msra.mxu0 %v2185
  %2258 = vmatpush.bf16.msra.mxu0 %v2181
  %2259 = vmatpush.bf16.msra.mxu0 %v2177
  %2260 = vmatpush.bf16.msra.mxu0 %v2173
  %2261 = vmatpush.bf16.msra.mxu0 %v2169
  %2262 = vmatpush.bf16.msra.mxu0 %v2165
  %2263 = vmatpush.bf16.msra.mxu0 %v2161
  %2264 = vmatpush.bf16.msra.mxu0 %v2157
  %2265 = vmatmul.bf16.gmra.mxu0 %v2018
  %v2266 = vpop.f32.mrf.mxu0
  %v2267 = vadd.f32 0.0, %v2266
  %v2268 = vpop.f32.mrf.mxu0
  %2269 = vdwg.mxu0
  %v2270 = vadd.f32 %v2022, %v2228
  %v2271 = vadd.f32 %v2023, %v2241
  %v2272 = vadd.f32 %v2024, %v2254
  %v2273 = vadd.f32 %v2025, %v2267
  %v2274 = vmul.f32 %v2270, 0.5
  %v2275 = vtanh.pop %v2274
  %v2276 = vadd.f32 %v2275, 1.0
  %v2277 = vmul.f32 %v2276, 0.5
  %v2278 = vmul.f32 %v2271, 0.5
  %v2279 = vtanh.pop %v2278
  %v2280 = vadd.f32 %v2279, 1.0
  %v2281 = vmul.f32 %v2280, 0.5
  %v2282 = vtanh.pop %v2272
  %v2283 = vmul.f32 %v2273, 0.5
  %v2284 = vtanh.pop %v2283
  %v2285 = vadd.f32 %v2284, 1.0
  %v2286 = vmul.f32 %v2285, 0.5
  %v2287 = vmul.f32 %v2281, %v2015
  %v2288 = vmul.f32 %v2277, %v2282
  %v2289 = vadd.f32 %v2287, %v2288
  %v2290 = vtanh.pop %v2289
  %v2291 = vmul.f32 %v2286, %v2290
  %v2292 = vpack.c.bf16 %v2291, %v2291
  %s2293 = scalar_lea.vmem %s2, 28
  %2294 = vst [vmem:[%s2293] sm:$0xf] %v2292
  %2295 = vst [vmem:[#allocation3] sm:$0xff] %v2291
  %2296 = vst [vmem:[#allocation4] sm:$0xff] %v2289
  %2297 = vst [vmem:[%s3] sm:$0xff] %v2291
  %2298 = vst [vmem:[%s4] sm:$0xff] %v2289
  // Predicated region
  $region29: #{stacked_lstm.7} parent=0 // pred_check
    _
  $region30: #{stacked_lstm.7} parent=0 // pred_check_branch
    %2300 = sbr.rel (0) target = $region32
  $region31: #{stacked_lstm.7} parent=0 // pred_region
    _
  $region32: #{stacked_lstm.7} parent=0 // pred_fallthru
    _
  // Predicated region
  $region33: #{stacked_lstm.7} parent=0 // pred_check
    _
  $region34: #{stacked_lstm.7} parent=0 // pred_check_branch
    %2302 = sbr.rel (0) target = $region36
  $region35: #{stacked_lstm.7} parent=0 // pred_region
    _
  $region36: #{stacked_lstm.7} parent=0 // pred_fallthru
    _
  // Predicated region
  $region37: #{stacked_lstm.7} parent=0 // pred_check
    _
  $region38: #{stacked_lstm.7} parent=0 // pred_check_branch
    %2304 = sbr.rel (0) target = $region40
  $region39: #{stacked_lstm.7} parent=0 // pred_region
    _
  $region40: #{stacked_lstm.7} parent=0 // pred_fallthru
    _
  // Predicated region
  $region41: #{stacked_lstm.7} parent=0 // pred_check
    _
  $region42: #{stacked_lstm.7} parent=0 // pred_check_branch
    %2306 = sbr.rel (0) target = $region44
  $region43: #{stacked_lstm.7} parent=0 // pred_region
    _
  $region44: #{stacked_lstm.7} parent=0 // pred_fallthru
    _
  // Predicated region
  $region45: #{stacked_lstm.7} parent=0 // pred_check
    _
  $region46: #{stacked_lstm.7} parent=0 // pred_check_branch
    %2308 = sbr.rel (0) target = $region48
  $region47: #{stacked_lstm.7} parent=0 // pred_region
    _
  $region48: #{stacked_lstm.7} parent=0 // pred_fallthru
    _
  // Predicated region
  $region49: #{stacked_lstm.7} parent=0 // pred_check
    _
  $region50: #{stacked_lstm.7} parent=0 // pred_check_branch
    %2310 = sbr.rel (0) target = $region52
  $region51: #{stacked_lstm.7} parent=0 // pred_region
    _
  $region52: #{stacked_lstm.7} parent=0 // pred_fallthru
    _
  %2311 = vsyncmov [#allocation5]
  %s2312 = vpop.sfrf %2311
  %p2313 = scmp.eq.s32.totalorder %s2312, 0
  %p2314 = pneg %p2313
  %2316 = shalt.err (%p2314)

</llo_original>
